<compile_context>
chip_gen: v7x
topology: tpu7x:2x2x1
jax: 0.10.0
libtpu: 0.0.40
codegen_flags: <defaults>
</compile_context>

<pallas_src>
import math

import numpy as np
import jax
import jax.numpy as jnp
from jax.experimental import pallas as pl
from jax.experimental.pallas import tpu as pltpu


def _adaptive_avg_matrix(out_size, in_size):
    """1-D adaptive average-pool matrix (out_size, in_size), PyTorch region rules."""
    A = np.zeros((out_size, in_size), dtype=np.float32)
    for i in range(out_size):
        start = (i * in_size) // out_size
        end = math.ceil((i + 1) * in_size / out_size)
        A[i, start:end] = 1.0 / (end - start)
    return A


def _bilinear_matrix(out_size, in_size):
    """1-D bilinear interpolation matrix (out_size, in_size), align_corners=True."""
    A = np.zeros((out_size, in_size), dtype=np.float32)
    if in_size == 1:
        A[:, 0] = 1.0
        return A
    for o in range(out_size):
        src = o * (in_size - 1) / (out_size - 1) if out_size > 1 else 0.0
        i0 = min(int(math.floor(src)), in_size - 1)
        i1 = min(i0 + 1, in_size - 1)
        w = src - i0
        A[o, i0] += 1.0 - w
        A[o, i1] += w
    return A


def _pick_hw_tile(hw_pad, c, tot_r, max_tile=512):
    """Largest HW tile (multiple of 128, <= max_tile) dividing hw_pad whose
    streamed per-tile blocks stay within ~2 MiB (v5e-safe double-buffered).
    On v6e (128 MiB VMEM) max_tile=1024 is worth sweeping; keep 512 on v7x/v5e."""
    budget = 2 * 1024 * 1024
    for t in (1024, 512, 256):
        if t > max_tile:
            continue
        if hw_pad % t == 0 and max(c * t * 4, tot_r * t * 2) <= budget:
            return t
    return 128


def _const_spec(shape, index_map, single_buffer):
    """BlockSpec for an operand whose block index never changes.
    Single-buffering removes the useless second VMEM buffer (VMEM headroom on
    v7x/v5e); falls back to default double-buffering if Buffered(1) is rejected."""
    if single_buffer:
        return pl.BlockSpec(shape, index_map, pipeline_mode=pl.Buffered(1))
    return pl.BlockSpec(shape, index_map)


def _make_pool_conv_bn_relu_kernel(bins, reduction_dim):
    """Kernel 1: adaptive-avg-pool (all bins) + 1x1 conv + folded BN + ReLU.

    Channel-major.  The block-diagonal bin mask is built in-kernel from iota
    comparisons against static offsets, so no mask operand is streamed."""
    n_bins = len(bins)
    col_off = []
    off = 0
    for b in bins[:-1]:
        off += b * b
        col_off.append(off)  # cumulative pooled-position offsets per bin

    def kernel(x_ref, p_ref, w_ref, shift_ref, feat_ref, acc_ref):
        # x_ref:     (1, C, T_HW)    f32  NCHW input tile (lane dim = T_HW)
        # p_ref:     (T_HW, BB)      bf16 stacked adaptive-pool matrix tile
        # w_ref:     (tot_r, C)      bf16 per-bin conv weights, BN scale folded
        # shift_ref: (tot_r, 1)      f32  per-channel BN shift
        # feat_ref:  (1, tot_r, BB)  bf16 block-diagonal features (output)
        # acc_ref:   (C, BB)         f32  pooled accumulator (scratch)
        t = pl.program_id(1)

        @pl.when(t == 0)
        def _init():
            acc_ref[...] = jnp.zeros_like(acc_ref)

        # partial adaptive-avg-pool for this HW tile: (C, T_HW) @ (T_HW, BB)
        x_bf16 = x_ref[0].astype(jnp.bfloat16)
        acc_ref[...] += jnp.dot(x_bf16, p_ref[...],
                                preferred_element_type=jnp.float32)

        @pl.when(t == pl.num_programs(1) - 1)
        def _finalize():
            # pooled stays f32; upcast w once -> f32 conv matmul (tiny, per image)
            z = jnp.dot(w_ref[...].astype(jnp.float32), acc_ref[...],
                        preferred_element_type=jnp.float32)          # (tot_r, BB)
            z = jnp.maximum(z + shift_ref[...], 0.0)                 # BN shift + ReLU
            tot_r, bb = z.shape
            row = jax.lax.broadcasted_iota(jnp.int32, (tot_r, bb), 0)
            col = jax.lax.broadcasted_iota(jnp.int32, (tot_r, bb), 1)
            row_bin = jnp.zeros((tot_r, bb), jnp.int32)
            col_bin = jnp.zeros((tot_r, bb), jnp.int32)
            for i in range(1, n_bins):                               # static unroll
                row_bin += (row >= i * reduction_dim).astype(jnp.int32)
                col_bin += (col >= col_off[i - 1]).astype(jnp.int32)
            z = jnp.where(row_bin == col_bin, z, 0.0)                # block-diagonalize
            feat_ref[0] = z.astype(feat_ref.dtype)

    return kernel


def _upsample_kernel(f_ref, m_ref, o_ref):
    """Kernel 2: bilinear (align_corners=True) upsample of all bins, channel-major.

    f_ref: (1, tot_r, BB)     bf16 block-diagonal features
    m_ref: (BB, T_HW)         bf16 stacked interpolation matrix tile
    o_ref: (1, tot_r, T_HW)   bf16 lane-dense NCHW output tile (all bins)
    """
    o_ref[0] = jnp.dot(f_ref[0], m_ref[...],
                       preferred_element_type=jnp.float32).astype(o_ref.dtype)


def init_ppm_params(key, in_dim, reduction_dim, bins):
    """Deterministic synthetic parameters matching PPM.__init__ shapes."""
    params = []
    for b in bins:
        key, k_w, k_g, k_b, k_m, k_v = jax.random.split(key, 6)
        # Conv2d(in_dim, reduction_dim, 1, bias=False).weight -> (R, C, 1, 1) squeezed
        w = jax.random.normal(k_w, (reduction_dim, in_dim), jnp.float32) * 0.1
        gamma = 1.0 + 0.1 * jax.random.normal(k_g, (reduction_dim,), jnp.float32)
        beta = 0.1 * jax.random.normal(k_b, (reduction_dim,), jnp.float32)
        running_mean = 0.1 * jax.random.normal(k_m, (reduction_dim,), jnp.float32)
        running_var = jnp.abs(jax.random.normal(k_v, (reduction_dim,), jnp.float32)) + 0.5
        params.append(dict(bin=int(b), w=w, gamma=gamma, beta=beta,
                           mean=running_mean, var=running_var))
    return params


def ppm_forward(x, params, eps=1e-5, compute_dtype=jnp.bfloat16,
                single_buffer_constants=True, max_hw_tile=512):
    """x: (N, C, H, W) float32 -> (N, C + len(bins)*R, H, W)."""
    # TODO(synk): BatchNorm2d is applied in eval mode (running stats folded into a
    # per-channel affine); training-mode batch statistics are not computed.
    N, C, H, W = x.shape
    HW = H * W
    HW_pad = ((HW + 127) // 128) * 128
    bins = [int(p["bin"]) for p in params]
    R = params[0]["w"].shape[0]
    n_bins = len(bins)
    tot_r = n_bins * R
    bb = int(sum(b * b for b in bins))

    # ---- host-built, data-independent structural constants ------------------
    pool_rows, interp_cols, w_rows, shift_rows = [], [], [], []
    for p in params:
        b = int(p["bin"])
        pool_rows.append(np.kron(_adaptive_avg_matrix(b, H),
                                 _adaptive_avg_matrix(b, W)))      # (b*b, HW)
        interp_cols.append(np.kron(_bilinear_matrix(H, b),
                                   _bilinear_matrix(W, b)))        # (HW, b*b)
        inv_std = 1.0 / jnp.sqrt(p["var"] + eps)
        scale = p["gamma"] * inv_std                               # (R,)
        w_rows.append(p["w"] * scale[:, None])                     # (R, C) BN scale folded
        shift_rows.append(p["beta"] - p["mean"] * scale)           # (R,)

    # HW padded to a multiple of 128: zero pool rows / interp columns in the tail.
    pool_T_np = np.zeros((HW_pad, bb), np.float32)
    pool_T_np[:HW, :] = np.concatenate(pool_rows, axis=0).T        # (HW_pad, BB)
    interp_T_np = np.zeros((bb, HW_pad), np.float32)
    interp_T_np[:, :HW] = np.concatenate(interp_cols, axis=1).T    # (BB, HW_pad)

    pool_T = jnp.asarray(pool_T_np).astype(compute_dtype)
    interp_T = jnp.asarray(interp_T_np).astype(compute_dtype)
    w_allT = jnp.concatenate(w_rows, axis=0).astype(compute_dtype)               # (tot_r, C)
    shift_all = jnp.concatenate(shift_rows).reshape(tot_r, 1).astype(jnp.float32)

    # ---- x consumed directly in NCHW/f32: no wrapper transpose / cast pass ----
    x_chw = x.reshape(N, C, HW)
    if HW_pad != HW:
        x_chw = jnp.pad(x_chw, ((0, 0), (0, 0), (0, HW_pad - HW)))

    t_hw = _pick_hw_tile(HW_pad, C, tot_r, max_hw_tile)
    n_t = HW_pad // t_hw

    pool_kernel = _make_pool_conv_bn_relu_kernel(tuple(bins), R)

    # kernel 1: pool (all bins) + 1x1 conv + BN + ReLU; HW is the reduction axis.
    # TODO(synk): for v7x single-image inference (N == 1) both TensorCores only get
    # work if the HW reduction is additionally split into parallel halves.
    feat = pl.pallas_call(
        pool_kernel,
        out_shape=jax.ShapeDtypeStruct((N, tot_r, bb), compute_dtype),
        grid_spec=pltpu.PrefetchScalarGridSpec(
            num_scalar_prefetch=0,
            grid=(N, n_t),
            in_specs=[
                pl.BlockSpec((1, C, t_hw), lambda n, t: (n, 0, t)),
                pl.BlockSpec((t_hw, bb), lambda n, t: (t, 0)),
                _const_spec((tot_r, C), lambda n, t: (0, 0), single_buffer_constants),
                _const_spec((tot_r, 1), lambda n, t: (0, 0), single_buffer_constants),
            ],
            out_specs=pl.BlockSpec((1, tot_r, bb), lambda n, t: (n, 0, 0)),
            scratch_shapes=[pltpu.VMEM((C, bb), jnp.float32)],
        ),
        compiler_params=pltpu.CompilerParams(
            dimension_semantics=("parallel", "arbitrary"),
            vmem_limit_bytes=64 * 1024 * 1024),
    )(x_chw, pool_T, w_allT, shift_all)

    # kernel 2: bilinear upsample of all bins; channel-major output -> lane-dense
    # store (lane dim = t_hw) and a free reshape to NCHW (no transpose pass).
    # feat's block index only changes at image boundaries, so it is not re-DMA'd
    # across the inner HW-tile steps; the per-step interp tile (BB x t_hw) is the
    # smaller of the two for realistic reduction dims.
    branch = pl.pallas_call(
        _upsample_kernel,
        out_shape=jax.ShapeDtypeStruct((N, tot_r, HW_pad), compute_dtype),
        grid_spec=pltpu.PrefetchScalarGridSpec(
            num_scalar_prefetch=0,
            grid=(N, n_t),
            in_specs=[
                pl.BlockSpec((1, tot_r, bb), lambda n, t: (n, 0, 0)),
                pl.BlockSpec((bb, t_hw), lambda n, t: (0, t)),
            ],
            out_specs=pl.BlockSpec((1, tot_r, t_hw), lambda n, t: (n, 0, t)),
        ),
        compiler_params=pltpu.CompilerParams(
            dimension_semantics=("parallel", "parallel"),
            vmem_limit_bytes=64 * 1024 * 1024),
    )(feat, interp_T)

    if HW_pad != HW:
        branch = branch[:, :, :HW]
    branch_nchw = branch.reshape(N, tot_r, H, W).astype(x.dtype)
    return jnp.concatenate([x, branch_nchw], axis=1)


def ppm_reference(x, params, eps=1e-5):
    """Pure-JAX fp32 reference of the PyTorch module (eval-mode BN)."""
    N, C, H, W = x.shape
    outs = [x]
    for p in params:
        b = int(p["bin"])
        Ah = jnp.asarray(_adaptive_avg_matrix(b, H))
        Aw = jnp.asarray(_adaptive_avg_matrix(b, W))
        pooled = jnp.einsum("nchw,ph,qw->ncpq", x, Ah, Aw)
        conv = jnp.einsum("ncpq,rc->nrpq", pooled, p["w"])
        inv_std = 1.0 / jnp.sqrt(p["var"] + eps)
        scale = (p["gamma"] * inv_std)[None, :, None, None]
        shift = (p["beta"] - p["mean"] * p["gamma"] * inv_std)[None, :, None, None]
        act = jnp.maximum(conv * scale + shift, 0.0)
        Bh = jnp.asarray(_bilinear_matrix(H, b))
        Bw = jnp.asarray(_bilinear_matrix(W, b))
        outs.append(jnp.einsum("nrpq,hp,wq->nrhw", act, Bh, Bw))
    return jnp.concatenate(outs, axis=1)


if __name__ == "__main__":
    key = jax.random.PRNGKey(0)
    kx1, kx2, kp = jax.random.split(key, 3)

    C, reduction_dim, bins = 4, 8, (1, 2, 3, 6)
    params = init_ppm_params(kp, C, reduction_dim, bins)

    def run(x, single_buffer):
        fwd = jax.jit(lambda xx: ppm_forward(xx, params,
                                             single_buffer_constants=single_buffer))
        return jax.block_until_ready(fwd(x))

    def check(out, x):
        N, _, H, W = x.shape
        assert out.shape == (N, C + len(bins) * reduction_dim, H, W), out.shape
        assert bool(jnp.all(jnp.isfinite(out)))
        # identity branch of the concat must equal the input exactly
        assert bool(jnp.allclose(out[:, :C], x))
        # bf16-streamed branch vs fp32 reference (loose tolerance for bf16)
        ref = ppm_reference(x, params)
        err = float(jnp.max(jnp.abs(out - ref)))
        assert bool(jnp.allclose(out, ref, atol=5e-2, rtol=5e-2)), err

    # case 1: HW = 1024 -> two 512-row tiles (exercises the HW-reduction
    # accumulator path of kernel 1 and the tiled lane-dense store of kernel 2).
    x1 = jax.random.normal(kx1, (2, C, 32, 32), jnp.float32)
    try:
        out1 = run(x1, True)
        single_buffer = True
    except Exception:
        # pl.Buffered(1) unsupported on this jax build -> default double-buffering
        out1 = run(x1, False)
        single_buffer = False
    check(out1, x1)

    # case 2: HW = 288 -> host-padded to 384, three 128-row tiles
    # (exercises the HW-padding path for non-128-multiple spatial sizes).
    x2 = jax.random.normal(kx2, (2, C, 12, 24), jnp.float32)
    out2 = run(x2, single_buffer)
    check(out2, x2)

    print("KERNEL_OK")
</pallas_src>

<mosaic_0001>
module attributes {stable_mosaic.version = 11 : i64} {
  func.func @_upsample_kernel(%arg0: i32, %arg1: i32, %arg2: memref<1x32x50xbf16, #tpu.memory_space<vmem>>, %arg3: memref<50x512xbf16, #tpu.memory_space<vmem>>, %arg4: memref<1x32x512xbf16, #tpu.memory_space<vmem>>) attributes {dimension_semantics = [#tpu.dimension_semantics<parallel>, #tpu.dimension_semantics<parallel>], iteration_bounds = array<i64: 2, 2>, scalar_prefetch = 0 : i64, scratch_operands = 0 : i64, tpu.core_type = #tpu.core_type<tc>, window_params = [{transform_indices = @transform_0, window_bounds = array<i64: 1, 32, 50>}, {transform_indices = @transform_1, window_bounds = array<i64: 50, 512>}, {transform_indices = @transform_2, window_bounds = array<i64: 1, 32, 512>}]} {
    %c0 = arith.constant 0 : index
    %c0_0 = arith.constant 0 : index
    %c0_1 = arith.constant 0 : index
    %0 = vector.load %arg2[%c0, %c0_0, %c0_1] : memref<1x32x50xbf16, #tpu.memory_space<vmem>>, vector<1x32x50xbf16>
    %1 = vector.shape_cast %0 : vector<1x32x50xbf16> to vector<32x50xbf16>
    %c0_2 = arith.constant 0 : index
    %c0_3 = arith.constant 0 : index
    %2 = vector.load %arg3[%c0_2, %c0_3] : memref<50x512xbf16, #tpu.memory_space<vmem>>, vector<50x512xbf16>
    %cst = arith.constant dense<0.000000e+00> : vector<32x512xf32>
    %3 = tpu.matmul %1, %2, %cst {dimension_numbers = #tpu.dot_dimension_numbers<[1], [0], [0], [1], [0, 0, 1, 1], [], []>} : vector<32x50xbf16>, vector<50x512xbf16>, vector<32x512xf32> -> vector<32x512xf32>
    %4 = arith.truncf %3 : vector<32x512xf32> to vector<32x512xbf16>
    %c0_4 = arith.constant 0 : index
    %c0_5 = arith.constant 0 : index
    %c0_6 = arith.constant 0 : index
    %5 = vector.load %arg4[%c0_4, %c0_5, %c0_6] : memref<1x32x512xbf16, #tpu.memory_space<vmem>>, vector<1x32x512xbf16>
    %6 = vector.shape_cast %5 : vector<1x32x512xbf16> to vector<32x512xbf16>
    %7 = vector.shape_cast %4 : vector<32x512xbf16> to vector<1x32x512xbf16>
    tpu.vector_store %arg4[%c0_4, %c0_5, %c0_6], %7 {strides = array<i32>} : memref<1x32x512xbf16, #tpu.memory_space<vmem>>, vector<1x32x512xbf16>,
    return
  }
  func.func @transform_0(%arg0: i32, %arg1: i32) -> (i32, i32, i32) {
    %c0_i32 = arith.constant 0 : i32
    %c0_i32_0 = arith.constant 0 : i32
    %c0_i32_1 = arith.constant 0 : i32
    return %arg0, %c0_i32, %c0_i32_0 : i32, i32, i32
  }
  func.func @transform_1(%arg0: i32, %arg1: i32) -> (i32, i32) {
    %c0_i32 = arith.constant 0 : i32
    %c0_i32_0 = arith.constant 0 : i32
    return %c0_i32, %arg1 : i32, i32
  }
  func.func @transform_2(%arg0: i32, %arg1: i32) -> (i32, i32, i32) {
    %c0_i32 = arith.constant 0 : i32
    %c0_i32_0 = arith.constant 0 : i32
    return %arg0, %c0_i32, %arg1 : i32, i32, i32
  }
}

module attributes {stable_mosaic.version = 11 : i64} {
  func.func @kernel(%arg0: i32, %arg1: i32, %arg2: memref<1x4x512xf32, #tpu.memory_space<vmem>>, %arg3: memref<512x50xbf16, #tpu.memory_space<vmem>>, %arg4: memref<32x4xbf16, #tpu.memory_space<vmem>>, %arg5: memref<32x1xf32, #tpu.memory_space<vmem>>, %arg6: memref<1x32x50xbf16, #tpu.memory_space<vmem>>, %arg7: memref<4x50xf32, #tpu.memory_space<vmem>>) attributes {dimension_semantics = [#tpu.dimension_semantics<parallel>, #tpu.dimension_semantics<arbitrary>], iteration_bounds = array<i64: 2, 2>, scalar_prefetch = 0 : i64, scratch_operands = 1 : i64, tpu.core_type = #tpu.core_type<tc>, window_params = [{transform_indices = @transform_0, window_bounds = array<i64: 1, 4, 512>}, {transform_indices = @transform_1, window_bounds = array<i64: 512, 50>}, {pipeline_mode = #tpu.pipeline_mode<synchronous>, transform_indices = @transform_2, window_bounds = array<i64: 32, 4>}, {pipeline_mode = #tpu.pipeline_mode<synchronous>, transform_indices = @transform_3, window_bounds = array<i64: 32, 1>}, {transform_indices = @transform_4, window_bounds = array<i64: 1, 32, 50>}]} {
    %c0_i32 = arith.constant 0 : i32
    %0 = arith.cmpi eq, %arg1, %c0_i32 : i32
    %1 = arith.extui %0 : i1 to i32
    %c0_i32_0 = arith.constant 0 : i32
    %2 = arith.cmpi ne, %1, %c0_i32_0 : i32
    scf.if %2 {
      %cst_10 = arith.constant 0.000000e+00 : f32
      %14 = vector.broadcast %cst_10 : f32 to vector<4x50xf32>
      %c0_11 = arith.constant 0 : index
      %c0_12 = arith.constant 0 : index
      %15 = vector.load %arg7[%c0_11, %c0_12] : memref<4x50xf32, #tpu.memory_space<vmem>>, vector<4x50xf32>
      tpu.vector_store %arg7[%c0_11, %c0_12], %14 {strides = array<i32>} : memref<4x50xf32, #tpu.memory_space<vmem>>, vector<4x50xf32>,
    } else {
    }
    %c0 = arith.constant 0 : index
    %c0_1 = arith.constant 0 : index
    %c0_2 = arith.constant 0 : index
    %3 = vector.load %arg2[%c0, %c0_1, %c0_2] : memref<1x4x512xf32, #tpu.memory_space<vmem>>, vector<1x4x512xf32>
    %4 = vector.shape_cast %3 : vector<1x4x512xf32> to vector<4x512xf32>
    %5 = arith.truncf %4 : vector<4x512xf32> to vector<4x512xbf16>
    %c0_3 = arith.constant 0 : index
    %c0_4 = arith.constant 0 : index
    %6 = vector.load %arg7[%c0_3, %c0_4] : memref<4x50xf32, #tpu.memory_space<vmem>>, vector<4x50xf32>
    %c0_5 = arith.constant 0 : index
    %c0_6 = arith.constant 0 : index
    %7 = vector.load %arg3[%c0_5, %c0_6] : memref<512x50xbf16, #tpu.memory_space<vmem>>, vector<512x50xbf16>
    %cst = arith.constant dense<0.000000e+00> : vector<4x50xf32>
    %8 = tpu.matmul %5, %7, %cst {dimension_numbers = #tpu.dot_dimension_numbers<[1], [0], [0], [1], [0, 0, 1, 1], [], []>} : vector<4x512xbf16>, vector<512x50xbf16>, vector<4x50xf32> -> vector<4x50xf32>
    %9 = arith.addf %6, %8 : vector<4x50xf32>
    %c0_7 = arith.constant 0 : index
    %c0_8 = arith.constant 0 : index
    %10 = vector.load %arg7[%c0_7, %c0_8] : memref<4x50xf32, #tpu.memory_space<vmem>>, vector<4x50xf32>
    tpu.vector_store %arg7[%c0_7, %c0_8], %9 {strides = array<i32>} : memref<4x50xf32, #tpu.memory_space<vmem>>, vector<4x50xf32>,
    %c1_i32 = arith.constant 1 : i32
    %11 = arith.cmpi eq, %arg1, %c1_i32 : i32
    %12 = arith.extui %11 : i1 to i32
    %c0_i32_9 = arith.constant 0 : i32
    %13 = arith.cmpi ne, %12, %c0_i32_9 : i32
    scf.if %13 {
      %c0_10 = arith.constant 0 : index
      %c0_11 = arith.constant 0 : index
      %14 = vector.load %arg4[%c0_10, %c0_11] : memref<32x4xbf16, #tpu.memory_space<vmem>>, vector<32x4xbf16>
      %15 = arith.extf %14 : vector<32x4xbf16> to vector<32x4xf32>
      %c0_12 = arith.constant 0 : index
      %c0_13 = arith.constant 0 : index
      %16 = vector.load %arg7[%c0_12, %c0_13] : memref<4x50xf32, #tpu.memory_space<vmem>>, vector<4x50xf32>
      %cst_14 = arith.constant dense<0.000000e+00> : vector<32x50xf32>
      %17 = tpu.matmul %15, %16, %cst_14 {dimension_numbers = #tpu.dot_dimension_numbers<[1], [0], [0], [1], [0, 0, 1, 1], [], []>} : vector<32x4xf32>, vector<4x50xf32>, vector<32x50xf32> -> vector<32x50xf32>
      %c0_15 = arith.constant 0 : index
      %c0_16 = arith.constant 0 : index
      %18 = vector.load %arg5[%c0_15, %c0_16] : memref<32x1xf32, #tpu.memory_space<vmem>>, vector<32x1xf32>
      %19 = vector.broadcast %18 : vector<32x1xf32> to vector<32x50xf32>
      %20 = arith.addf %17, %19 : vector<32x50xf32>
      %cst_17 = arith.constant 0.000000e+00 : f32
      %21 = vector.broadcast %cst_17 : f32 to vector<32x50xf32>
      %22 = arith.maximumf %20, %21 : vector<32x50xf32>
      %23 = tpu.iota {dimensions = array<i32: 0>} : vector<32x50xi32>
      %24 = tpu.iota {dimensions = array<i32: 1>} : vector<32x50xi32>
      %c0_i32_18 = arith.constant 0 : i32
      %25 = vector.broadcast %c0_i32_18 : i32 to vector<32x50xi32>
      %c0_i32_19 = arith.constant 0 : i32
      %26 = vector.broadcast %c0_i32_19 : i32 to vector<32x50xi32>
      %c8_i32 = arith.constant 8 : i32
      %27 = vector.broadcast %c8_i32 : i32 to vector<32x50xi32>
      %28 = arith.cmpi sge, %23, %27 : vector<32x50xi32>
      %29 = arith.extui %28 : vector<32x50xi1> to vector<32x50xi32>
      %30 = arith.addi %25, %29 : vector<32x50xi32>
      %c1_i32_20 = arith.constant 1 : i32
      %31 = vector.broadcast %c1_i32_20 : i32 to vector<32x50xi32>
      %32 = arith.cmpi sge, %24, %31 : vector<32x50xi32>
      %33 = arith.extui %32 : vector<32x50xi1> to vector<32x50xi32>
      %34 = arith.addi %26, %33 : vector<32x50xi32>
      %c16_i32 = arith.constant 16 : i32
      %35 = vector.broadcast %c16_i32 : i32 to vector<32x50xi32>
      %36 = arith.cmpi sge, %23, %35 : vector<32x50xi32>
      %37 = arith.extui %36 : vector<32x50xi1> to vector<32x50xi32>
      %38 = arith.addi %30, %37 : vector<32x50xi32>
      %c5_i32 = arith.constant 5 : i32
      %39 = vector.broadcast %c5_i32 : i32 to vector<32x50xi32>
      %40 = arith.cmpi sge, %24, %39 : vector<32x50xi32>
      %41 = arith.extui %40 : vector<32x50xi1> to vector<32x50xi32>
      %42 = arith.addi %34, %41 : vector<32x50xi32>
      %c24_i32 = arith.constant 24 : i32
      %43 = vector.broadcast %c24_i32 : i32 to vector<32x50xi32>
      %44 = arith.cmpi sge, %23, %43 : vector<32x50xi32>
      %45 = arith.extui %44 : vector<32x50xi1> to vector<32x50xi32>
      %46 = arith.addi %38, %45 : vector<32x50xi32>
      %c14_i32 = arith.constant 14 : i32
      %47 = vector.broadcast %c14_i32 : i32 to vector<32x50xi32>
      %48 = arith.cmpi sge, %24, %47 : vector<32x50xi32>
      %49 = arith.extui %48 : vector<32x50xi1> to vector<32x50xi32>
      %50 = arith.addi %42, %49 : vector<32x50xi32>
      %51 = arith.cmpi eq, %46, %50 : vector<32x50xi32>
      %cst_21 = arith.constant 0.000000e+00 : f32
      %52 = vector.broadcast %cst_21 : f32 to vector<32x50xf32>
      %53 = arith.select %51, %22, %52 : vector<32x50xi1>, vector<32x50xf32>
      %54 = arith.truncf %53 : vector<32x50xf32> to vector<32x50xbf16>
      %c0_22 = arith.constant 0 : index
      %c0_23 = arith.constant 0 : index
      %c0_24 = arith.constant 0 : index
      %55 = vector.load %arg6[%c0_22, %c0_23, %c0_24] : memref<1x32x50xbf16, #tpu.memory_space<vmem>>, vector<1x32x50xbf16>
      %56 = vector.shape_cast %55 : vector<1x32x50xbf16> to vector<32x50xbf16>
      %57 = vector.shape_cast %54 : vector<32x50xbf16> to vector<1x32x50xbf16>
      tpu.vector_store %arg6[%c0_22, %c0_23, %c0_24], %57 {strides = array<i32>} : memref<1x32x50xbf16, #tpu.memory_space<vmem>>, vector<1x32x50xbf16>,
    } else {
    }
    return
  }
  func.func @transform_0(%arg0: i32, %arg1: i32) -> (i32, i32, i32) {
    %c0_i32 = arith.constant 0 : i32
    %c0_i32_0 = arith.constant 0 : i32
    return %arg0, %c0_i32, %arg1 : i32, i32, i32
  }
  func.func @transform_1(%arg0: i32, %arg1: i32) -> (i32, i32) {
    %c0_i32 = arith.constant 0 : i32
    %c0_i32_0 = arith.constant 0 : i32
    return %arg1, %c0_i32 : i32, i32
  }
  func.func @transform_2(%arg0: i32, %arg1: i32) -> (i32, i32) {
    %c0_i32 = arith.constant 0 : i32
    %c0_i32_0 = arith.constant 0 : i32
    %c0_i32_1 = arith.constant 0 : i32
    return %c0_i32, %c0_i32_0 : i32, i32
  }
  func.func @transform_3(%arg0: i32, %arg1: i32) -> (i32, i32) {
    %c0_i32 = arith.constant 0 : i32
    %c0_i32_0 = arith.constant 0 : i32
    %c0_i32_1 = arith.constant 0 : i32
    return %c0_i32, %c0_i32_0 : i32, i32
  }
  func.func @transform_4(%arg0: i32, %arg1: i32) -> (i32, i32, i32) {
    %c0_i32 = arith.constant 0 : i32
    %c0_i32_0 = arith.constant 0 : i32
    %c0_i32_1 = arith.constant 0 : i32
    return %arg0, %c0_i32, %c0_i32_0 : i32, i32, i32
  }
}

module attributes {stable_mosaic.version = 11 : i64} {
  func.func @_upsample_kernel(%arg0: i32, %arg1: i32, %arg2: memref<1x32x50xbf16, #tpu.memory_space<vmem>>, %arg3: memref<50x512xbf16, #tpu.memory_space<vmem>>, %arg4: memref<1x32x512xbf16, #tpu.memory_space<vmem>>) attributes {dimension_semantics = [#tpu.dimension_semantics<parallel>, #tpu.dimension_semantics<parallel>], iteration_bounds = array<i64: 2, 2>, scalar_prefetch = 0 : i64, scratch_operands = 0 : i64, tpu.core_type = #tpu.core_type<tc>, window_params = [{transform_indices = @transform_0, window_bounds = array<i64: 1, 32, 50>}, {transform_indices = @transform_1, window_bounds = array<i64: 50, 512>}, {transform_indices = @transform_2, window_bounds = array<i64: 1, 32, 512>}]} {
    %c0 = arith.constant 0 : index
    %c0_0 = arith.constant 0 : index
    %c0_1 = arith.constant 0 : index
    %0 = vector.load %arg2[%c0, %c0_0, %c0_1] : memref<1x32x50xbf16, #tpu.memory_space<vmem>>, vector<1x32x50xbf16>
    %1 = vector.shape_cast %0 : vector<1x32x50xbf16> to vector<32x50xbf16>
    %c0_2 = arith.constant 0 : index
    %c0_3 = arith.constant 0 : index
    %2 = vector.load %arg3[%c0_2, %c0_3] : memref<50x512xbf16, #tpu.memory_space<vmem>>, vector<50x512xbf16>
    %cst = arith.constant dense<0.000000e+00> : vector<32x512xf32>
    %3 = tpu.matmul %1, %2, %cst {dimension_numbers = #tpu.dot_dimension_numbers<[1], [0], [0], [1], [0, 0, 1, 1], [], []>} : vector<32x50xbf16>, vector<50x512xbf16>, vector<32x512xf32> -> vector<32x512xf32>
    %4 = arith.truncf %3 : vector<32x512xf32> to vector<32x512xbf16>
    %c0_4 = arith.constant 0 : index
    %c0_5 = arith.constant 0 : index
    %c0_6 = arith.constant 0 : index
    %5 = vector.load %arg4[%c0_4, %c0_5, %c0_6] : memref<1x32x512xbf16, #tpu.memory_space<vmem>>, vector<1x32x512xbf16>
    %6 = vector.shape_cast %5 : vector<1x32x512xbf16> to vector<32x512xbf16>
    %7 = vector.shape_cast %4 : vector<32x512xbf16> to vector<1x32x512xbf16>
    tpu.vector_store %arg4[%c0_4, %c0_5, %c0_6], %7 {strides = array<i32>} : memref<1x32x512xbf16, #tpu.memory_space<vmem>>, vector<1x32x512xbf16>,
    return
  }
  func.func @transform_0(%arg0: i32, %arg1: i32) -> (i32, i32, i32) {
    %c0_i32 = arith.constant 0 : i32
    %c0_i32_0 = arith.constant 0 : i32
    %c0_i32_1 = arith.constant 0 : i32
    return %arg0, %c0_i32, %c0_i32_0 : i32, i32, i32
  }
  func.func @transform_1(%arg0: i32, %arg1: i32) -> (i32, i32) {
    %c0_i32 = arith.constant 0 : i32
    %c0_i32_0 = arith.constant 0 : i32
    return %c0_i32, %arg1 : i32, i32
  }
  func.func @transform_2(%arg0: i32, %arg1: i32) -> (i32, i32, i32) {
    %c0_i32 = arith.constant 0 : i32
    %c0_i32_0 = arith.constant 0 : i32
    return %arg0, %c0_i32, %arg1 : i32, i32, i32
  }
}

module attributes {stable_mosaic.version = 11 : i64} {
  func.func @kernel(%arg0: i32, %arg1: i32, %arg2: memref<1x4x512xf32, #tpu.memory_space<vmem>>, %arg3: memref<512x50xbf16, #tpu.memory_space<vmem>>, %arg4: memref<32x4xbf16, #tpu.memory_space<vmem>>, %arg5: memref<32x1xf32, #tpu.memory_space<vmem>>, %arg6: memref<1x32x50xbf16, #tpu.memory_space<vmem>>, %arg7: memref<4x50xf32, #tpu.memory_space<vmem>>) attributes {dimension_semantics = [#tpu.dimension_semantics<parallel>, #tpu.dimension_semantics<arbitrary>], iteration_bounds = array<i64: 2, 2>, scalar_prefetch = 0 : i64, scratch_operands = 1 : i64, tpu.core_type = #tpu.core_type<tc>, window_params = [{transform_indices = @transform_0, window_bounds = array<i64: 1, 4, 512>}, {transform_indices = @transform_1, window_bounds = array<i64: 512, 50>}, {pipeline_mode = #tpu.pipeline_mode<synchronous>, transform_indices = @transform_2, window_bounds = array<i64: 32, 4>}, {pipeline_mode = #tpu.pipeline_mode<synchronous>, transform_indices = @transform_3, window_bounds = array<i64: 32, 1>}, {transform_indices = @transform_4, window_bounds = array<i64: 1, 32, 50>}]} {
    %c0_i32 = arith.constant 0 : i32
    %0 = arith.cmpi eq, %arg1, %c0_i32 : i32
    %1 = arith.extui %0 : i1 to i32
    %c0_i32_0 = arith.constant 0 : i32
    %2 = arith.cmpi ne, %1, %c0_i32_0 : i32
    scf.if %2 {
      %cst_10 = arith.constant 0.000000e+00 : f32
      %14 = vector.broadcast %cst_10 : f32 to vector<4x50xf32>
      %c0_11 = arith.constant 0 : index
      %c0_12 = arith.constant 0 : index
      %15 = vector.load %arg7[%c0_11, %c0_12] : memref<4x50xf32, #tpu.memory_space<vmem>>, vector<4x50xf32>
      tpu.vector_store %arg7[%c0_11, %c0_12], %14 {strides = array<i32>} : memref<4x50xf32, #tpu.memory_space<vmem>>, vector<4x50xf32>,
    } else {
    }
    %c0 = arith.constant 0 : index
    %c0_1 = arith.constant 0 : index
    %c0_2 = arith.constant 0 : index
    %3 = vector.load %arg2[%c0, %c0_1, %c0_2] : memref<1x4x512xf32, #tpu.memory_space<vmem>>, vector<1x4x512xf32>
    %4 = vector.shape_cast %3 : vector<1x4x512xf32> to vector<4x512xf32>
    %5 = arith.truncf %4 : vector<4x512xf32> to vector<4x512xbf16>
    %c0_3 = arith.constant 0 : index
    %c0_4 = arith.constant 0 : index
    %6 = vector.load %arg7[%c0_3, %c0_4] : memref<4x50xf32, #tpu.memory_space<vmem>>, vector<4x50xf32>
    %c0_5 = arith.constant 0 : index
    %c0_6 = arith.constant 0 : index
    %7 = vector.load %arg3[%c0_5, %c0_6] : memref<512x50xbf16, #tpu.memory_space<vmem>>, vector<512x50xbf16>
    %cst = arith.constant dense<0.000000e+00> : vector<4x50xf32>
    %8 = tpu.matmul %5, %7, %cst {dimension_numbers = #tpu.dot_dimension_numbers<[1], [0], [0], [1], [0, 0, 1, 1], [], []>} : vector<4x512xbf16>, vector<512x50xbf16>, vector<4x50xf32> -> vector<4x50xf32>
    %9 = arith.addf %6, %8 : vector<4x50xf32>
    %c0_7 = arith.constant 0 : index
    %c0_8 = arith.constant 0 : index
    %10 = vector.load %arg7[%c0_7, %c0_8] : memref<4x50xf32, #tpu.memory_space<vmem>>, vector<4x50xf32>
    tpu.vector_store %arg7[%c0_7, %c0_8], %9 {strides = array<i32>} : memref<4x50xf32, #tpu.memory_space<vmem>>, vector<4x50xf32>,
    %c1_i32 = arith.constant 1 : i32
    %11 = arith.cmpi eq, %arg1, %c1_i32 : i32
    %12 = arith.extui %11 : i1 to i32
    %c0_i32_9 = arith.constant 0 : i32
    %13 = arith.cmpi ne, %12, %c0_i32_9 : i32
    scf.if %13 {
      %c0_10 = arith.constant 0 : index
      %c0_11 = arith.constant 0 : index
      %14 = vector.load %arg4[%c0_10, %c0_11] : memref<32x4xbf16, #tpu.memory_space<vmem>>, vector<32x4xbf16>
      %15 = arith.extf %14 : vector<32x4xbf16> to vector<32x4xf32>
      %c0_12 = arith.constant 0 : index
      %c0_13 = arith.constant 0 : index
      %16 = vector.load %arg7[%c0_12, %c0_13] : memref<4x50xf32, #tpu.memory_space<vmem>>, vector<4x50xf32>
      %cst_14 = arith.constant dense<0.000000e+00> : vector<32x50xf32>
      %17 = tpu.matmul %15, %16, %cst_14 {dimension_numbers = #tpu.dot_dimension_numbers<[1], [0], [0], [1], [0, 0, 1, 1], [], []>} : vector<32x4xf32>, vector<4x50xf32>, vector<32x50xf32> -> vector<32x50xf32>
      %c0_15 = arith.constant 0 : index
      %c0_16 = arith.constant 0 : index
      %18 = vector.load %arg5[%c0_15, %c0_16] : memref<32x1xf32, #tpu.memory_space<vmem>>, vector<32x1xf32>
      %19 = vector.broadcast %18 : vector<32x1xf32> to vector<32x50xf32>
      %20 = arith.addf %17, %19 : vector<32x50xf32>
      %cst_17 = arith.constant 0.000000e+00 : f32
      %21 = vector.broadcast %cst_17 : f32 to vector<32x50xf32>
      %22 = arith.maximumf %20, %21 : vector<32x50xf32>
      %23 = tpu.iota {dimensions = array<i32: 0>} : vector<32x50xi32>
      %24 = tpu.iota {dimensions = array<i32: 1>} : vector<32x50xi32>
      %c0_i32_18 = arith.constant 0 : i32
      %25 = vector.broadcast %c0_i32_18 : i32 to vector<32x50xi32>
      %c0_i32_19 = arith.constant 0 : i32
      %26 = vector.broadcast %c0_i32_19 : i32 to vector<32x50xi32>
      %c8_i32 = arith.constant 8 : i32
      %27 = vector.broadcast %c8_i32 : i32 to vector<32x50xi32>
      %28 = arith.cmpi sge, %23, %27 : vector<32x50xi32>
      %29 = arith.extui %28 : vector<32x50xi1> to vector<32x50xi32>
      %30 = arith.addi %25, %29 : vector<32x50xi32>
      %c1_i32_20 = arith.constant 1 : i32
      %31 = vector.broadcast %c1_i32_20 : i32 to vector<32x50xi32>
      %32 = arith.cmpi sge, %24, %31 : vector<32x50xi32>
      %33 = arith.extui %32 : vector<32x50xi1> to vector<32x50xi32>
      %34 = arith.addi %26, %33 : vector<32x50xi32>
      %c16_i32 = arith.constant 16 : i32
      %35 = vector.broadcast %c16_i32 : i32 to vector<32x50xi32>
      %36 = arith.cmpi sge, %23, %35 : vector<32x50xi32>
      %37 = arith.extui %36 : vector<32x50xi1> to vector<32x50xi32>
      %38 = arith.addi %30, %37 : vector<32x50xi32>
      %c5_i32 = arith.constant 5 : i32
      %39 = vector.broadcast %c5_i32 : i32 to vector<32x50xi32>
      %40 = arith.cmpi sge, %24, %39 : vector<32x50xi32>
      %41 = arith.extui %40 : vector<32x50xi1> to vector<32x50xi32>
      %42 = arith.addi %34, %41 : vector<32x50xi32>
      %c24_i32 = arith.constant 24 : i32
      %43 = vector.broadcast %c24_i32 : i32 to vector<32x50xi32>
      %44 = arith.cmpi sge, %23, %43 : vector<32x50xi32>
      %45 = arith.extui %44 : vector<32x50xi1> to vector<32x50xi32>
      %46 = arith.addi %38, %45 : vector<32x50xi32>
      %c14_i32 = arith.constant 14 : i32
      %47 = vector.broadcast %c14_i32 : i32 to vector<32x50xi32>
      %48 = arith.cmpi sge, %24, %47 : vector<32x50xi32>
      %49 = arith.extui %48 : vector<32x50xi1> to vector<32x50xi32>
      %50 = arith.addi %42, %49 : vector<32x50xi32>
      %51 = arith.cmpi eq, %46, %50 : vector<32x50xi32>
      %cst_21 = arith.constant 0.000000e+00 : f32
      %52 = vector.broadcast %cst_21 : f32 to vector<32x50xf32>
      %53 = arith.select %51, %22, %52 : vector<32x50xi1>, vector<32x50xf32>
      %54 = arith.truncf %53 : vector<32x50xf32> to vector<32x50xbf16>
      %c0_22 = arith.constant 0 : index
      %c0_23 = arith.constant 0 : index
      %c0_24 = arith.constant 0 : index
      %55 = vector.load %arg6[%c0_22, %c0_23, %c0_24] : memref<1x32x50xbf16, #tpu.memory_space<vmem>>, vector<1x32x50xbf16>
      %56 = vector.shape_cast %55 : vector<1x32x50xbf16> to vector<32x50xbf16>
      %57 = vector.shape_cast %54 : vector<32x50xbf16> to vector<1x32x50xbf16>
      tpu.vector_store %arg6[%c0_22, %c0_23, %c0_24], %57 {strides = array<i32>} : memref<1x32x50xbf16, #tpu.memory_space<vmem>>, vector<1x32x50xbf16>,
    } else {
    }
    return
  }
  func.func @transform_0(%arg0: i32, %arg1: i32) -> (i32, i32, i32) {
    %c0_i32 = arith.constant 0 : i32
    %c0_i32_0 = arith.constant 0 : i32
    return %arg0, %c0_i32, %arg1 : i32, i32, i32
  }
  func.func @transform_1(%arg0: i32, %arg1: i32) -> (i32, i32) {
    %c0_i32 = arith.constant 0 : i32
    %c0_i32_0 = arith.constant 0 : i32
    return %arg1, %c0_i32 : i32, i32
  }
  func.func @transform_2(%arg0: i32, %arg1: i32) -> (i32, i32) {
    %c0_i32 = arith.constant 0 : i32
    %c0_i32_0 = arith.constant 0 : i32
    %c0_i32_1 = arith.constant 0 : i32
    return %c0_i32, %c0_i32_0 : i32, i32
  }
  func.func @transform_3(%arg0: i32, %arg1: i32) -> (i32, i32) {
    %c0_i32 = arith.constant 0 : i32
    %c0_i32_0 = arith.constant 0 : i32
    %c0_i32_1 = arith.constant 0 : i32
    return %c0_i32, %c0_i32_0 : i32, i32
  }
  func.func @transform_4(%arg0: i32, %arg1: i32) -> (i32, i32, i32) {
    %c0_i32 = arith.constant 0 : i32
    %c0_i32_0 = arith.constant 0 : i32
    %c0_i32_1 = arith.constant 0 : i32
    return %arg0, %c0_i32, %c0_i32_0 : i32, i32, i32
  }
}

</mosaic_0001>

<llo_original>
// kernel: _lambda_.3
$region0: #{_lambda_.3}
  #allocation0 [shape = 'u32[]', space=smem, size = 0x4, offset = 0x4, fixed_abs, tag = 'smem constant byte address 0x4 - core index']
  #allocation1 [shape = 'u32[144,128]{1,0:T(1,128)}', space=vmem, size = 0x12000, scoped, tag = 'internal scratch']
  %s0 = inlined_call_operand.hbm [shape: bf16[2,32,50], index: 0, kind: input, shape index: {}]
  %s1 = inlined_call_operand.hbm [shape: bf16[50,1024], index: 1, kind: input, shape index: {}]
  %s2 = inlined_call_operand.hbm [shape: bf16[2,32,1024], index: 2, kind: output, shape index: {}]
  %s3 = sld [smem:[#allocation0]]
  $region49: #{_lambda_.3} parent=0
    _
  %s5 = ssub.s32 1, %s3
  %s6 = scalar_select 0, %s5, %s3
  $region1: #{_lambda_.3} parent=0
    #allocation2 [shape = 'u8[16384]{0}', space=vmem, size = 0x4000, scoped, tag = 'input window, operand 0']
    #allocation3 [shape = 's32[2]{0}', space=sflag, size = 0x8, scoped, tag = 'scoped memory for _lambda_.3']
    #allocation4 [shape = 's32[2]{0}', space=sflag, size = 0x8, scoped, tag = 'scoped memory for _lambda_.3']
    #allocation5 [shape = 'u8[114688]{0}', space=vmem, size = 0x1c000, scoped, tag = 'input window, operand 1']
    #allocation6 [shape = 's32[2]{0}', space=sflag, size = 0x8, scoped, tag = 'scoped memory for _lambda_.3']
    #allocation7 [shape = 'u8[65536]{0}', space=vmem, size = 0x10000, scoped, tag = 'output window, operand 0']
    %7 = vsyncpa [#allocation3], 0
    %s8 = scalar_lea.sflag [#allocation3], 1
    %9 = vsyncpa %s8, 0
    %10 = vsyncpa [#allocation6], 0
    %s11 = scalar_lea.sflag [#allocation6], 1
    %12 = vsyncpa %s11, 0
    %13 = vsyncpa [#allocation4], 0
    %s14 = scalar_lea.sflag [#allocation4], 1
    %15 = vsyncpa %s14, 0
    loop: start=0, step=1, limit=6
    $region2: #{_lambda_.3} parent=1 // loop_pre_header
      _
    $region3: #{_lambda_.3} parent=1 // loop_header
      %s17 = sphi 0, %s21
      %p18 = scmp.ge.s32.totalorder %s17, 6
      %s24 = sphi 0, %s36
      %s25 = sphi 0, %s32
      %s26 = sphi 0, %s24
      %s27 = sphi 0, %s25
      %s28 = sphi 0, %s26
      %s29 = sphi 0, %s27
      %s39 = sphi 0, %s41
      %s42 = sphi 0, %s39
      %s43 = sphi 0, %s42
      %s59 = sphi 0, %s43
      %s65 = sphi 0, %s67
      %s68 = sphi 0, %s65
      %s69 = sphi 0, %s68
      %s85 = sphi 0, %s69
      %s93 = sphi 0, %s95
      %s96 = sphi 0, %s93
      %s97 = sphi 0, %s96
      %s113 = sphi 0, %s97
    $region4: #{_lambda_.3} parent=1 // loop_header_branch
      %20 = sbr.rel (%p18) target = $region8
    $region5: #{_lambda_.3} parent=1 // loop_body
      %s22 = ssub.s32 %s17, 1
      %s23 = ssub.s32 %s17, 2
      %s30 = sadd.s32 1, %s25
      %p31 = scmp.ge.s32.totalorder %s30, 2
      %s32 = scalar_select %p31, 0, %s30
      %s33 = sadd.s32 1, %s24
      %s34 = scalar_select %p31, %s33, %s24
      %p35 = scmp.ge.s32.totalorder %s34, 2
      %s36 = scalar_select %p35, 0, %s34
      %s37 = ssub.s32 %s24, %s36
      %p38 = scmp.eq.s32.totalorder %s37, 0
      %s40 = sadd.s32 %s39, 1
      %s41 = scalar_select %p38, %s39, %s40
      %p44 = pneg %p38
      %p45 = scmp.eq.s32.totalorder %s17, 3
      %p46 = por %p44, %p45
      %p47 = scmp.ne.s32.totalorder %s39, %s42
      %p48 = scmp.eq.s32.totalorder %s17, 0
      %p49 = por %p47, %p48
      %p50 = scmp.ne.s32.totalorder %s39, %s42
      %p51 = scmp.eq.s32.totalorder %s22, 3
      %p52 = por %p50, %p51
      %p53 = scmp.ne.s32.totalorder %s42, %s43
      %p54 = scmp.eq.s32.totalorder %s22, 0
      %p55 = por %p53, %p54
      %p56 = scmp.ne.s32.totalorder %s42, %s43
      %p57 = scmp.eq.s32.totalorder %s23, 3
      %p58 = por %p56, %p57
      %p60 = scmp.ne.s32.totalorder %s43, %s59
      %p61 = scmp.eq.s32.totalorder %s23, 0
      %p62 = por %p60, %p61
      %s63 = ssub.s32 %s25, %s32
      %p64 = scmp.eq.s32.totalorder %s63, 0
      %s66 = sadd.s32 %s65, 1
      %s67 = scalar_select %p64, %s65, %s66
      %p70 = pneg %p64
      %p71 = scmp.eq.s32.totalorder %s17, 3
      %p72 = por %p70, %p71
      %p73 = scmp.ne.s32.totalorder %s65, %s68
      %p74 = scmp.eq.s32.totalorder %s17, 0
      %p75 = por %p73, %p74
      %p76 = scmp.ne.s32.totalorder %s65, %s68
      %p77 = scmp.eq.s32.totalorder %s22, 3
      %p78 = por %p76, %p77
      %p79 = scmp.ne.s32.totalorder %s68, %s69
      %p80 = scmp.eq.s32.totalorder %s22, 0
      %p81 = por %p79, %p80
      %p82 = scmp.ne.s32.totalorder %s68, %s69
      %p83 = scmp.eq.s32.totalorder %s23, 3
      %p84 = por %p82, %p83
      %p86 = scmp.ne.s32.totalorder %s69, %s85
      %p87 = scmp.eq.s32.totalorder %s23, 0
      %p88 = por %p86, %p87
      %s89 = ssub.s32 %s24, %s36
      %s90 = ssub.s32 %s25, %s32
      %s91 = sor.u32 %s89, %s90
      %p92 = scmp.eq.s32.totalorder %s91, 0
      %s94 = sadd.s32 %s93, 1
      %s95 = scalar_select %p92, %s93, %s94
      %p98 = pneg %p92
      %p99 = scmp.eq.s32.totalorder %s17, 3
      %p100 = por %p98, %p99
      %p101 = scmp.ne.s32.totalorder %s93, %s96
      %p102 = scmp.eq.s32.totalorder %s17, 0
      %p103 = por %p101, %p102
      %p104 = scmp.ne.s32.totalorder %s93, %s96
      %p105 = scmp.eq.s32.totalorder %s22, 3
      %p106 = por %p104, %p105
      %p107 = scmp.ne.s32.totalorder %s96, %s97
      %p108 = scmp.eq.s32.totalorder %s22, 0
      %p109 = por %p107, %p108
      %p110 = scmp.ne.s32.totalorder %s96, %s97
      %p111 = scmp.eq.s32.totalorder %s23, 3
      %p112 = por %p110, %p111
      %p114 = scmp.ne.s32.totalorder %s97, %s113
      %p115 = scmp.eq.s32.totalorder %s23, 0
      %p116 = por %p114, %p115
      %p117 = scmp.le.s32.totalorder 1, %s17
      %p118 = scmp.lt.s32.totalorder %s17, 5
      %p119 = pnand %p117, %p118
      %p120 = pneg %p119
      // Predicated region
      $region9: #{_lambda_.3} parent=5 // pred_check
        _
      $region10: #{_lambda_.3} parent=5 // pred_check_branch
        %122 = sbr.rel (%p119) target = $region12
      $region11: #{_lambda_.3} parent=5 // pred_region
        %s123 = ssub.s32 %s17, 1
      $region12: #{_lambda_.3} parent=5 // pred_fallthru
        _
      %p124 = scmp.lt.s32.totalorder %s17, 4
      // Predicated region
      $region13: #{_lambda_.3} parent=5 // pred_check
        %p125 = pneg %p124
      $region14: #{_lambda_.3} parent=5 // pred_check_branch
        %127 = sbr.rel (%p125) target = $region16
      $region15: #{_lambda_.3} parent=5 // pred_region
        // Predicated region
        $region17: #{_lambda_.3} parent=15 // pred_check
          %p128 = pneg %p49
        $region18: #{_lambda_.3} parent=15 // pred_check_branch
          %130 = sbr.rel (%p128) target = $region20
        $region19: #{_lambda_.3} parent=15 // pred_region
          %s131 = sand.u32 %s39, 1
          %s132 = scalar_lea.sflag [#allocation3], %s131
          %s133 = sand.u32 %s39, 1
          %s134 = smul.addr %s133, 16
          %s135 = scalar_lea.vmem [#allocation2], %s134
          %s137 = ssub.s32 256, 256
          %138 = vsyncadd %s132, %s137
          %s139 = smul.addr %s24, 4
          %s140 = smul.addr %s139, 64
          %s141 = scalar_lea.hbm %s0, %s140
          %s142 = sshll.u32 %s135, 4
          %s143 = int_to_ptr.vmem [resolvable:$true] %s142
          %148 = dma.hbm_to_vmem [thread:$0]  %s141, 256, %s143, %s132, 64, 64, 4
        $region20: #{_lambda_.3} parent=15 // pred_fallthru
          _
        // Predicated region
        $region21: #{_lambda_.3} parent=15 // pred_check
          %p149 = pneg %p75
        $region22: #{_lambda_.3} parent=15 // pred_check_branch
          %151 = sbr.rel (%p149) target = $region24
        $region23: #{_lambda_.3} parent=15 // pred_region
          %s152 = sand.u32 %s65, 1
          %s153 = scalar_lea.sflag [#allocation6], %s152
          %s154 = sand.u32 %s65, 1
          %s155 = smul.addr %s154, 112
          %s156 = scalar_lea.vmem [#allocation5], %s155
          %s157 = smul.u32 4, %s25
          %s159 = ssub.s32 1792, 1792
          %160 = vsyncadd %s153, %s159
          %s161 = smul.addr %s157, 64
          %s162 = scalar_lea.hbm %s1, %s161
          %s163 = sshll.u32 %s156, 4
          %s164 = int_to_ptr.vmem [resolvable:$true] %s163
          %169 = dma.hbm_to_vmem [thread:$0]  %s162, 1792, %s164, %s153, 512, 256, 16
        $region24: #{_lambda_.3} parent=15 // pred_fallthru
          _
      $region16: #{_lambda_.3} parent=5 // pred_fallthru
        _
      %p170 = scmp.le.s32.totalorder 1, %s17
      %p171 = scmp.lt.s32.totalorder %s17, 5
      %p172 = pnand %p170, %p171
      %p173 = pneg %p172
      // Predicated region
      $region25: #{_lambda_.3} parent=5 // pred_check
        _
      $region26: #{_lambda_.3} parent=5 // pred_check_branch
        %175 = sbr.rel (%p172) target = $region28
      $region27: #{_lambda_.3} parent=5 // pred_region
        %s176 = ssub.s32 %s17, 1
        %s177 = sand.u32 %s42, 1
        %s178 = scalar_lea.sflag [#allocation3], %s177
        %s179 = sand.u32 %s42, 1
        %s180 = smul.addr %s179, 16
        %s181 = scalar_lea.vmem [#allocation2], %s180
        // Predicated region
        $region29: #{_lambda_.3} parent=27 // pred_check
          %p182 = pneg %p55
        $region30: #{_lambda_.3} parent=27 // pred_check_branch
          %184 = sbr.rel (%p182) target = $region32
        $region31: #{_lambda_.3} parent=27 // pred_region
          %185 = dma.done %s178, 256
        $region32: #{_lambda_.3} parent=27 // pred_fallthru
          _
        %s186 = sand.u32 %s68, 1
        %s187 = scalar_lea.sflag [#allocation6], %s186
        %s188 = sand.u32 %s68, 1
        %s189 = smul.addr %s188, 112
        %s190 = scalar_lea.vmem [#allocation5], %s189
        // Predicated region
        $region33: #{_lambda_.3} parent=27 // pred_check
          %p191 = pneg %p81
        $region34: #{_lambda_.3} parent=27 // pred_check_branch
          %193 = sbr.rel (%p191) target = $region36
        $region35: #{_lambda_.3} parent=27 // pred_region
          %194 = dma.done %s187, 1792
        $region36: #{_lambda_.3} parent=27 // pred_fallthru
          _
        %s195 = sand.u32 %s42, 1
        %s196 = scalar_lea.sflag [#allocation3], %s195
        %s197 = sand.u32 %s42, 1
        %s198 = smul.addr %s197, 16
        %s199 = scalar_lea.vmem [#allocation2], %s198
        %p200 = pneg %p55
        %p201 = pneg %p52
        %s202 = sand.u32 %s68, 1
        %s203 = scalar_lea.sflag [#allocation6], %s202
        %s204 = sand.u32 %s68, 1
        %s205 = smul.addr %s204, 112
        %s206 = scalar_lea.vmem [#allocation5], %s205
        %p207 = pneg %p81
        %p208 = pneg %p78
        %p209 = pneg %p109
        %p210 = pneg %p106
        %s211 = sand.u32 %s96, 1
        %s212 = scalar_lea.sflag [#allocation4], %s211
        %s213 = sand.u32 %s96, 1
        %s214 = smul.addr %s213, 64
        %s215 = scalar_lea.vmem [#allocation7], %s214
        %s216 = smul.u32 4, %s27
        %s217 = smul.u32 4, %s27
        %v219 = vld [vmem:[%s181] sm:$0xf]
        %v220 = vld [vmem:[%s181 + $0x4] sm:$0xf]
        %v221 = vld [vmem:[%s181 + $0x8] sm:$0xf]
        %v222 = vld [vmem:[%s181 + $0xc] sm:$0xf]
        %v223 = vld [vmem:[%s190] sm:$0xff]
        %v224 = vld [vmem:[%s190 + $0x8] sm:$0xff]
        %v225 = vld [vmem:[%s190 + $0x10] sm:$0xff]
        %v226 = vld [vmem:[%s190 + $0x18] sm:$0xff]
        %v227 = vld [vmem:[%s190 + $0x20] sm:$0xff]
        %v228 = vld [vmem:[%s190 + $0x28] sm:$0xff]
        %v229 = vld [vmem:[%s190 + $0x30] sm:$0xff]
        %v230 = vld [vmem:[%s190 + $0x38] sm:$0xff]
        %v231 = vld [vmem:[%s190 + $0x40] sm:$0xff]
        %v232 = vld [vmem:[%s190 + $0x48] sm:$0xff]
        %v233 = vld [vmem:[%s190 + $0x50] sm:$0xff]
        %v234 = vld [vmem:[%s190 + $0x58] sm:$0xff]
        %v235 = vld [vmem:[%s190 + $0x60] sm:$0x11]
        %v236 = vld [vmem:[%s190 + $0x68] sm:$0x11]
        %v241 = vunpack.c.l.b16 %v219
        %v242 = vunpack.c.l.b16 %v220
        %v243 = vunpack.c.l.b16 %v221
        %v244 = vunpack.c.l.b16 %v222
        %v245 = vpack.c.b16 %v242, %v241
        %v246 = vpack.c.b16 %v244, %v243
        %v261 = vunpack.c.l.b16 %v223
        %v262 = vunpack.c.h.b16 %v223
        %v263 = vunpack.c.l.b16 %v224
        %v264 = vunpack.c.h.b16 %v224
        %v265 = vunpack.c.l.b16 %v225
        %v266 = vunpack.c.h.b16 %v225
        %v267 = vunpack.c.l.b16 %v226
        %v268 = vunpack.c.h.b16 %v226
        %v269 = vunpack.c.l.b16 %v227
        %v270 = vunpack.c.h.b16 %v227
        %v271 = vunpack.c.l.b16 %v228
        %v272 = vunpack.c.h.b16 %v228
        %v273 = vunpack.c.l.b16 %v229
        %v274 = vunpack.c.h.b16 %v229
        %v275 = vunpack.c.l.b16 %v230
        %v276 = vunpack.c.h.b16 %v230
        %v277 = vunpack.c.l.b16 %v231
        %v278 = vunpack.c.h.b16 %v231
        %v279 = vunpack.c.l.b16 %v232
        %v280 = vunpack.c.h.b16 %v232
        %v281 = vunpack.c.l.b16 %v233
        %v282 = vunpack.c.h.b16 %v233
        %v283 = vunpack.c.l.b16 %v234
        %v284 = vunpack.c.h.b16 %v234
        %v285 = vunpack.c.l.b16 %v235
        %v286 = vunpack.c.h.b16 %v235
        %v287 = vunpack.c.l.b16 %v236
        %v288 = vunpack.c.h.b16 %v236
        %v289 = vpack.c.b16 %v265, %v261
        %v290 = vpack.c.b16 %v266, %v262
        %v291 = vpack.c.b16 %v267, %v263
        %v292 = vpack.c.b16 %v268, %v264
        %v293 = vpack.c.b16 %v273, %v269
        %v294 = vpack.c.b16 %v274, %v270
        %v295 = vpack.c.b16 %v275, %v271
        %v296 = vpack.c.b16 %v276, %v272
        %v297 = vpack.c.b16 %v281, %v277
        %v298 = vpack.c.b16 %v282, %v278
        %v299 = vpack.c.b16 %v283, %v279
        %v300 = vpack.c.b16 %v284, %v280
        %v301 = vpack.c.b16 %v285, %v285
        %v302 = vpack.c.b16 %v286, %v286
        %v303 = vpack.c.b16 %v287, %v287
        %v304 = vpack.c.b16 %v288, %v288
        %vm317 = vcmask 408576
        %v319 = vsel %vm317, %v245, 0
        %v322 = vsel %vm317, %v246, 0
        %vm324 = vcmask 1040384
        %v326 = vsel %vm324, %v301, 0
        %v329 = vsel %vm324, %v302, 0
        %v332 = vsel %vm324, %v303, 0
        %v335 = vsel %vm324, %v304, 0
        %337 = vmatprep.subr.bf16.mxu0 %v290
        %338 = vmatpush1.bf16.msra.mxu0 %v289
        %339 = vmatprep.subr.bf16.mxu0 %v294
        %340 = vmatpush1.bf16.msra.mxu0 %v293
        %341 = vmatprep.subr.bf16.mxu0 %v298
        %342 = vmatpush1.bf16.msra.mxu0 %v297
        %343 = vmatprep.subr.bf16.mxu0 %v329
        %344 = vmatpush1.bf16.msra.mxu0 %v326
        %345 = vmatprep.subr.bf16.mxu0 0
        %346 = vmatpush1.bf16.msra.mxu0 0
        %347 = vmatprep.subr.bf16.mxu0 0
        %348 = vmatpush1.bf16.msra.mxu0 0
        %349 = vmatprep.subr.bf16.mxu0 0
        %350 = vmatpush1.bf16.msra.mxu0 0
        %351 = vmatprep.subr.bf16.mxu0 0
        %352 = vmatpush1.bf16.msra.mxu0 0
        %353 = vmatprep.subr.bf16.mxu0 0
        %354 = vmatpush1.bf16.msra.mxu0 0
        %355 = vmatprep.subr.bf16.mxu0 0
        %356 = vmatpush1.bf16.msra.mxu0 0
        %357 = vmatprep.subr.bf16.mxu0 0
        %358 = vmatpush1.bf16.msra.mxu0 0
        %359 = vmatprep.subr.bf16.mxu0 0
        %360 = vmatpush1.bf16.msra.mxu0 0
        %361 = vmatprep.subr.bf16.mxu0 0
        %362 = vmatpush1.bf16.msra.mxu0 0
        %363 = vmatprep.subr.bf16.mxu0 0
        %364 = vmatpush1.bf16.msra.mxu0 0
        %365 = vmatprep.subr.bf16.mxu0 0
        %366 = vmatpush1.bf16.msra.mxu0 0
        %367 = vmatprep.subr.bf16.mxu0 0
        %368 = vmatpush1.bf16.msra.mxu0 0
        %369 = vmatprep.mubr.bf16.mxu0 0
        %370 = vmatmul.mubr.bf16.gmra.mrb[0].mxu0 %v319
        %v371 = vpop.f32.mrb[0].mxu0
        %v372 = vadd.f32 0.0, %v371
        %v373 = vpop.f32.mrb[0].mxu0
        %v374 = vadd.f32 0.0, %v373
        %v375 = vpop.f32.mrb[0].mxu0
        %v376 = vadd.f32 0.0, %v375
        %v377 = vpop.f32.mrb[0].mxu0
        %v378 = vadd.f32 0.0, %v377
        %379 = vmatprep.mubr.bf16.mxu0 0
        %380 = vmatmul.mubr.bf16.gmra.mrb[0].mxu0 %v322
        %v381 = vpop.f32.mrb[0].mxu0
        %v382 = vadd.f32 0.0, %v381
        %v383 = vpop.f32.mrb[0].mxu0
        %v384 = vadd.f32 0.0, %v383
        %v385 = vpop.f32.mrb[0].mxu0
        %v386 = vadd.f32 0.0, %v385
        %v387 = vpop.f32.mrb[0].mxu0
        %v388 = vadd.f32 0.0, %v387
        %389 = vdwg.mxu0
        %390 = vmatprep.subr.bf16.mxu0 %v292
        %391 = vmatpush1.bf16.msra.mxu0 %v291
        %392 = vmatprep.subr.bf16.mxu0 %v296
        %393 = vmatpush1.bf16.msra.mxu0 %v295
        %394 = vmatprep.subr.bf16.mxu0 %v300
        %395 = vmatpush1.bf16.msra.mxu0 %v299
        %396 = vmatprep.subr.bf16.mxu0 %v335
        %397 = vmatpush1.bf16.msra.mxu0 %v332
        %398 = vmatprep.subr.bf16.mxu0 0
        %399 = vmatpush1.bf16.msra.mxu0 0
        %400 = vmatprep.subr.bf16.mxu0 0
        %401 = vmatpush1.bf16.msra.mxu0 0
        %402 = vmatprep.subr.bf16.mxu0 0
        %403 = vmatpush1.bf16.msra.mxu0 0
        %404 = vmatprep.subr.bf16.mxu0 0
        %405 = vmatpush1.bf16.msra.mxu0 0
        %406 = vmatprep.subr.bf16.mxu0 0
        %407 = vmatpush1.bf16.msra.mxu0 0
        %408 = vmatprep.subr.bf16.mxu0 0
        %409 = vmatpush1.bf16.msra.mxu0 0
        %410 = vmatprep.subr.bf16.mxu0 0
        %411 = vmatpush1.bf16.msra.mxu0 0
        %412 = vmatprep.subr.bf16.mxu0 0
        %413 = vmatpush1.bf16.msra.mxu0 0
        %414 = vmatprep.subr.bf16.mxu0 0
        %415 = vmatpush1.bf16.msra.mxu0 0
        %416 = vmatprep.subr.bf16.mxu0 0
        %417 = vmatpush1.bf16.msra.mxu0 0
        %418 = vmatprep.subr.bf16.mxu0 0
        %419 = vmatpush1.bf16.msra.mxu0 0
        %420 = vmatprep.subr.bf16.mxu0 0
        %421 = vmatpush1.bf16.msra.mxu0 0
        %422 = vmatprep.mubr.bf16.mxu0 0
        %423 = vmatmul.mubr.bf16.gmra.mrb[0].mxu0 %v319
        %v424 = vpop.f32.mrb[0].mxu0
        %v425 = vadd.f32 0.0, %v424
        %v426 = vpop.f32.mrb[0].mxu0
        %v427 = vadd.f32 0.0, %v426
        %v428 = vpop.f32.mrb[0].mxu0
        %v429 = vadd.f32 0.0, %v428
        %v430 = vpop.f32.mrb[0].mxu0
        %v431 = vadd.f32 0.0, %v430
        %432 = vmatprep.mubr.bf16.mxu0 0
        %433 = vmatmul.mubr.bf16.gmra.mrb[0].mxu0 %v322
        %v434 = vpop.f32.mrb[0].mxu0
        %v435 = vadd.f32 0.0, %v434
        %v436 = vpop.f32.mrb[0].mxu0
        %v437 = vadd.f32 0.0, %v436
        %v438 = vpop.f32.mrb[0].mxu0
        %v439 = vadd.f32 0.0, %v438
        %v440 = vpop.f32.mrb[0].mxu0
        %v441 = vadd.f32 0.0, %v440
        %442 = vdwg.mxu0
        %v443 = vpack.c.bf16 %v376, %v372
        %v444 = vpack.c.bf16 %v378, %v374
        %v445 = vpack.c.bf16 %v429, %v425
        %v446 = vpack.c.bf16 %v431, %v427
        %v447 = vpack.c.bf16 %v386, %v382
        %v448 = vpack.c.bf16 %v388, %v384
        %v449 = vpack.c.bf16 %v439, %v435
        %v450 = vpack.c.bf16 %v441, %v437
        %v459 = vunpack.c.l.b16 %v443
        %v460 = vunpack.c.l.b16 %v444
        %v461 = vunpack.c.l.b16 %v445
        %v462 = vunpack.c.l.b16 %v446
        %v463 = vunpack.c.h.b16 %v443
        %v464 = vunpack.c.h.b16 %v444
        %v465 = vunpack.c.h.b16 %v445
        %v466 = vunpack.c.h.b16 %v446
        %v467 = vunpack.c.l.b16 %v447
        %v468 = vunpack.c.l.b16 %v448
        %v469 = vunpack.c.l.b16 %v449
        %v470 = vunpack.c.l.b16 %v450
        %v471 = vunpack.c.h.b16 %v447
        %v472 = vunpack.c.h.b16 %v448
        %v473 = vunpack.c.h.b16 %v449
        %v474 = vunpack.c.h.b16 %v450
        %v475 = vpack.c.b16 %v460, %v459
        %v476 = vpack.c.b16 %v462, %v461
        %v477 = vpack.c.b16 %v464, %v463
        %v478 = vpack.c.b16 %v466, %v465
        %v479 = vpack.c.b16 %v468, %v467
        %v480 = vpack.c.b16 %v470, %v469
        %v481 = vpack.c.b16 %v472, %v471
        %v482 = vpack.c.b16 %v474, %v473
        %491 = vst [vmem:[%s215] sm:$0xff] %v475
        %492 = vst [vmem:[%s215 + $0x8] sm:$0xff] %v476
        %493 = vst [vmem:[%s215 + $0x10] sm:$0xff] %v477
        %494 = vst [vmem:[%s215 + $0x18] sm:$0xff] %v478
        %495 = vst [vmem:[%s215 + $0x20] sm:$0xff] %v479
        %496 = vst [vmem:[%s215 + $0x28] sm:$0xff] %v480
        %497 = vst [vmem:[%s215 + $0x30] sm:$0xff] %v481
        %498 = vst [vmem:[%s215 + $0x38] sm:$0xff] %v482
        %s499 = sand.u32 %s96, 1
        %s500 = scalar_lea.sflag [#allocation4], %s499
        %s501 = sand.u32 %s96, 1
        %s502 = smul.addr %s501, 64
        %s503 = scalar_lea.vmem [#allocation7], %s502
        // Predicated region
        $region37: #{_lambda_.3} parent=27 // pred_check
          %p504 = pneg %p106
        $region38: #{_lambda_.3} parent=27 // pred_check_branch
          %506 = sbr.rel (%p504) target = $region40
        $region39: #{_lambda_.3} parent=27 // pred_region
          %s507 = smul.u32 4, %s27
          %s509 = ssub.s32 1024, 1024
          %510 = vsyncadd %s500, %s509
          %s511 = smul.addr %s26, 32
          %s512 = sadd.s32 %s507, %s511
          %s513 = smul.addr %s512, 64
          %s514 = scalar_lea.hbm %s2, %s513
          %s515 = sshll.u32 %s503, 4
          %s516 = int_to_ptr.vmem [resolvable:$true] %s515
          %521 = dma.vmem_to_hbm [thread:$0]  %s516, 1024, %s514, %s500, 256, 512, 16
        $region40: #{_lambda_.3} parent=27 // pred_fallthru
          _
      $region28: #{_lambda_.3} parent=5 // pred_fallthru
        _
      %p522 = scmp.le.s32.totalorder 2, %s17
      // Predicated region
      $region41: #{_lambda_.3} parent=5 // pred_check
        %p523 = pneg %p522
      $region42: #{_lambda_.3} parent=5 // pred_check_branch
        %525 = sbr.rel (%p523) target = $region44
      $region43: #{_lambda_.3} parent=5 // pred_region
        %s526 = ssub.s32 %s17, 2
        // Predicated region
        $region45: #{_lambda_.3} parent=43 // pred_check
          %p527 = pneg %p112
        $region46: #{_lambda_.3} parent=43 // pred_check_branch
          %529 = sbr.rel (%p527) target = $region48
        $region47: #{_lambda_.3} parent=43 // pred_region
          %s530 = sand.u32 %s97, 1
          %s531 = scalar_lea.sflag [#allocation4], %s530
          %s532 = sand.u32 %s97, 1
          %s533 = smul.addr %s532, 64
          %s534 = scalar_lea.vmem [#allocation7], %s533
          %535 = dma.done %s531, 1024
        $region48: #{_lambda_.3} parent=43 // pred_fallthru
          _
      $region44: #{_lambda_.3} parent=5 // pred_fallthru
        _
    $region6: #{_lambda_.3} parent=1 // loop_footer
      %s21 = sadd.s32 1, %s17
    $region7: #{_lambda_.3} parent=1 // loop_footer_branch
      %16 = sbr.rel target = $region3
    $region8: #{_lambda_.3} parent=1 // loop_exit
      _
    %536 = vsyncpa [#allocation3], 1
    %s537 = scalar_lea.sflag [#allocation3], 1
    %538 = vsyncpa %s537, 1
    %539 = vsyncpa [#allocation6], 1
    %s540 = scalar_lea.sflag [#allocation6], 1
    %541 = vsyncpa %s540, 1
    %542 = vsyncpa [#allocation4], 1
    %s543 = scalar_lea.sflag [#allocation4], 1
    %544 = vsyncpa %s543, 1

// kernel: _lambda_.2
$region0: #{_lambda_.2}
  #allocation0 [shape = 'u32[]', space=smem, size = 0x4, offset = 0x4, fixed_abs, tag = 'smem constant byte address 0x4 - core index']
  #allocation1 [shape = 'u32[144,128]{1,0:T(1,128)}', space=vmem, size = 0x12000, scoped, tag = 'internal scratch']
  #allocation2 [shape = 'f32[4,50]{1,0:T(4,128)}', space=vmem, size = 0x800, scoped, tag = 'scratch operand']
  %s0 = inlined_call_operand.hbm [shape: f32[2,4,1024], index: 0, kind: input, shape index: {}]
  %s1 = inlined_call_operand.hbm [shape: bf16[1024,50], index: 1, kind: input, shape index: {}]
  %s2 = inlined_call_operand.hbm [shape: bf16[32,4], index: 2, kind: input, shape index: {}]
  %s3 = inlined_call_operand.hbm [shape: f32[32,1], index: 3, kind: input, shape index: {}]
  %s4 = inlined_call_operand.hbm [shape: bf16[2,32,50], index: 4, kind: output, shape index: {}]
  %s5 = sld [smem:[#allocation0]]
  $region73: #{_lambda_.2} parent=0
    _
  %s7 = ssub.s32 1, %s5
  %s8 = scalar_select 0, %s7, %s5
  $region1: #{_lambda_.2} parent=0
    #allocation3 [shape = 'u8[16384]{0}', space=vmem, size = 0x4000, scoped, tag = 'input window, operand 0']
    #allocation4 [shape = 's32[2]{0}', space=sflag, size = 0x8, scoped, tag = 'scoped memory for _lambda_.2']
    #allocation5 [shape = 's32[2]{0}', space=sflag, size = 0x8, scoped, tag = 'scoped memory for _lambda_.2']
    #allocation6 [shape = 'u8[262144]{0}', space=vmem, size = 0x40000, scoped, tag = 'input window, operand 1']
    #allocation7 [shape = 's32[2]{0}', space=sflag, size = 0x8, scoped, tag = 'scoped memory for _lambda_.2']
    #allocation8 [shape = 'u8[8192]{0}', space=vmem, size = 0x2000, scoped, tag = 'input window, operand 2, single buffered']
    #allocation9 [shape = 'u8[16384]{0}', space=vmem, size = 0x4000, scoped, tag = 'input window, operand 3, single buffered']
    #allocation10 [shape = 's32[1]{0}', space=sflag, size = 0x4, scoped, tag = 'scoped memory for _lambda_.2']
    #allocation11 [shape = 'u8[16384]{0}', space=vmem, size = 0x4000, scoped, tag = 'output window, operand 0']
    %9 = vsyncpa [#allocation4], 0
    %s10 = scalar_lea.sflag [#allocation4], 1
    %11 = vsyncpa %s10, 0
    %12 = vsyncpa [#allocation7], 0
    %s13 = scalar_lea.sflag [#allocation7], 1
    %14 = vsyncpa %s13, 0
    %15 = vsyncpa [#allocation10], 0
    %16 = vsyncpa [#allocation5], 0
    %s17 = scalar_lea.sflag [#allocation5], 1
    %18 = vsyncpa %s17, 0
    loop: start=0, step=1, limit=6
    $region2: #{_lambda_.2} parent=1 // loop_pre_header
      _
    $region3: #{_lambda_.2} parent=1 // loop_header
      %s20 = sphi 0, %s24
      %p21 = scmp.ge.s32.totalorder %s20, 6
      %s27 = sphi 0, %s39
      %s28 = sphi 0, %s35
      %s29 = sphi 0, %s27
      %s30 = sphi 0, %s28
      %s31 = sphi 0, %s29
      %s32 = sphi 0, %s30
      %s44 = sphi 0, %s46
      %s47 = sphi 0, %s44
      %s48 = sphi 0, %s47
      %s64 = sphi 0, %s48
      %s70 = sphi 0, %s72
      %s73 = sphi 0, %s70
      %s74 = sphi 0, %s73
      %s90 = sphi 0, %s74
      %s94 = sphi 0, %s94
      %s96 = sphi 0, %s94
      %s97 = sphi 0, %s96
      %s111 = sphi 0, %s97
      %s115 = sphi 0, %s115
      %s117 = sphi 0, %s115
      %s118 = sphi 0, %s117
      %s132 = sphi 0, %s118
      %s138 = sphi 0, %s140
      %s141 = sphi 0, %s138
      %s142 = sphi 0, %s141
      %s158 = sphi 0, %s142
    $region4: #{_lambda_.2} parent=1 // loop_header_branch
      %23 = sbr.rel (%p21) target = $region8
    $region5: #{_lambda_.2} parent=1 // loop_body
      %s25 = ssub.s32 %s20, 1
      %s26 = ssub.s32 %s20, 2
      %s33 = sadd.s32 1, %s28
      %p34 = scmp.ge.s32.totalorder %s33, 2
      %s35 = scalar_select %p34, 0, %s33
      %s36 = sadd.s32 1, %s27
      %s37 = scalar_select %p34, %s36, %s27
      %p38 = scmp.ge.s32.totalorder %s37, 2
      %s39 = scalar_select %p38, 0, %s37
      %s40 = ssub.s32 %s27, %s39
      %s41 = ssub.s32 %s28, %s35
      %s42 = sor.u32 %s40, %s41
      %p43 = scmp.eq.s32.totalorder %s42, 0
      %s45 = sadd.s32 %s44, 1
      %s46 = scalar_select %p43, %s44, %s45
      %p49 = pneg %p43
      %p50 = scmp.eq.s32.totalorder %s20, 3
      %p51 = por %p49, %p50
      %p52 = scmp.ne.s32.totalorder %s44, %s47
      %p53 = scmp.eq.s32.totalorder %s20, 0
      %p54 = por %p52, %p53
      %p55 = scmp.ne.s32.totalorder %s44, %s47
      %p56 = scmp.eq.s32.totalorder %s25, 3
      %p57 = por %p55, %p56
      %p58 = scmp.ne.s32.totalorder %s47, %s48
      %p59 = scmp.eq.s32.totalorder %s25, 0
      %p60 = por %p58, %p59
      %p61 = scmp.ne.s32.totalorder %s47, %s48
      %p62 = scmp.eq.s32.totalorder %s26, 3
      %p63 = por %p61, %p62
      %p65 = scmp.ne.s32.totalorder %s48, %s64
      %p66 = scmp.eq.s32.totalorder %s26, 0
      %p67 = por %p65, %p66
      %s68 = ssub.s32 %s28, %s35
      %p69 = scmp.eq.s32.totalorder %s68, 0
      %s71 = sadd.s32 %s70, 1
      %s72 = scalar_select %p69, %s70, %s71
      %p75 = pneg %p69
      %p76 = scmp.eq.s32.totalorder %s20, 3
      %p77 = por %p75, %p76
      %p78 = scmp.ne.s32.totalorder %s70, %s73
      %p79 = scmp.eq.s32.totalorder %s20, 0
      %p80 = por %p78, %p79
      %p81 = scmp.ne.s32.totalorder %s70, %s73
      %p82 = scmp.eq.s32.totalorder %s25, 3
      %p83 = por %p81, %p82
      %p84 = scmp.ne.s32.totalorder %s73, %s74
      %p85 = scmp.eq.s32.totalorder %s25, 0
      %p86 = por %p84, %p85
      %p87 = scmp.ne.s32.totalorder %s73, %s74
      %p88 = scmp.eq.s32.totalorder %s26, 3
      %p89 = por %p87, %p88
      %p91 = scmp.ne.s32.totalorder %s74, %s90
      %p92 = scmp.eq.s32.totalorder %s26, 0
      %p93 = por %p91, %p92
      %s95 = sadd.s32 %s94, 1
      %p98 = scmp.eq.s32.totalorder %s20, 3
      %p99 = scmp.ne.s32.totalorder %s94, %s96
      %p100 = scmp.eq.s32.totalorder %s20, 0
      %p101 = por %p99, %p100
      %p102 = scmp.ne.s32.totalorder %s94, %s96
      %p103 = scmp.eq.s32.totalorder %s25, 3
      %p104 = por %p102, %p103
      %p105 = scmp.ne.s32.totalorder %s96, %s97
      %p106 = scmp.eq.s32.totalorder %s25, 0
      %p107 = por %p105, %p106
      %p108 = scmp.ne.s32.totalorder %s96, %s97
      %p109 = scmp.eq.s32.totalorder %s26, 3
      %p110 = por %p108, %p109
      %p112 = scmp.ne.s32.totalorder %s97, %s111
      %p113 = scmp.eq.s32.totalorder %s26, 0
      %p114 = por %p112, %p113
      %s116 = sadd.s32 %s115, 1
      %p119 = scmp.eq.s32.totalorder %s20, 3
      %p120 = scmp.ne.s32.totalorder %s115, %s117
      %p121 = scmp.eq.s32.totalorder %s20, 0
      %p122 = por %p120, %p121
      %p123 = scmp.ne.s32.totalorder %s115, %s117
      %p124 = scmp.eq.s32.totalorder %s25, 3
      %p125 = por %p123, %p124
      %p126 = scmp.ne.s32.totalorder %s117, %s118
      %p127 = scmp.eq.s32.totalorder %s25, 0
      %p128 = por %p126, %p127
      %p129 = scmp.ne.s32.totalorder %s117, %s118
      %p130 = scmp.eq.s32.totalorder %s26, 3
      %p131 = por %p129, %p130
      %p133 = scmp.ne.s32.totalorder %s118, %s132
      %p134 = scmp.eq.s32.totalorder %s26, 0
      %p135 = por %p133, %p134
      %s136 = ssub.s32 %s27, %s39
      %p137 = scmp.eq.s32.totalorder %s136, 0
      %s139 = sadd.s32 %s138, 1
      %s140 = scalar_select %p137, %s138, %s139
      %p143 = pneg %p137
      %p144 = scmp.eq.s32.totalorder %s20, 3
      %p145 = por %p143, %p144
      %p146 = scmp.ne.s32.totalorder %s138, %s141
      %p147 = scmp.eq.s32.totalorder %s20, 0
      %p148 = por %p146, %p147
      %p149 = scmp.ne.s32.totalorder %s138, %s141
      %p150 = scmp.eq.s32.totalorder %s25, 3
      %p151 = por %p149, %p150
      %p152 = scmp.ne.s32.totalorder %s141, %s142
      %p153 = scmp.eq.s32.totalorder %s25, 0
      %p154 = por %p152, %p153
      %p155 = scmp.ne.s32.totalorder %s141, %s142
      %p156 = scmp.eq.s32.totalorder %s26, 3
      %p157 = por %p155, %p156
      %p159 = scmp.ne.s32.totalorder %s142, %s158
      %p160 = scmp.eq.s32.totalorder %s26, 0
      %p161 = por %p159, %p160
      %p162 = scmp.le.s32.totalorder 1, %s20
      %p163 = scmp.lt.s32.totalorder %s20, 5
      %p164 = pnand %p162, %p163
      %p165 = pneg %p164
      // Predicated region
      $region9: #{_lambda_.2} parent=5 // pred_check
        _
      $region10: #{_lambda_.2} parent=5 // pred_check_branch
        %167 = sbr.rel (%p164) target = $region12
      $region11: #{_lambda_.2} parent=5 // pred_region
        %s168 = ssub.s32 %s20, 1
        // Predicated region
        $region13: #{_lambda_.2} parent=11 // pred_check
          %p169 = pneg %p107
        $region14: #{_lambda_.2} parent=11 // pred_check_branch
          %171 = sbr.rel (%p169) target = $region16
        $region15: #{_lambda_.2} parent=11 // pred_region
          %s173 = ssub.s32 256, 256
          %174 = vsyncadd [#allocation7], %s173
          %s175 = sshll.u32 [#allocation8], 4
          %s176 = int_to_ptr.vmem [resolvable:$true] %s175
          %181 = dma.hbm_to_vmem [thread:$0]  %s2, 256, %s176, [#allocation7], 64, 64, 4
        $region16: #{_lambda_.2} parent=11 // pred_fallthru
          _
        // Predicated region
        $region17: #{_lambda_.2} parent=11 // pred_check
          %p182 = pneg %p128
        $region18: #{_lambda_.2} parent=11 // pred_check_branch
          %184 = sbr.rel (%p182) target = $region20
        $region19: #{_lambda_.2} parent=11 // pred_region
          %s186 = ssub.s32 512, 512
          %187 = vsyncadd [#allocation10], %s186
          %s188 = sshll.u32 [#allocation9], 4
          %s189 = int_to_ptr.vmem [resolvable:$true] %s188
          %194 = dma.hbm_to_vmem [thread:$0]  %s3, 512, %s189, [#allocation10], 128, 128, 8
        $region20: #{_lambda_.2} parent=11 // pred_fallthru
          _
      $region12: #{_lambda_.2} parent=5 // pred_fallthru
        _
      %p195 = scmp.lt.s32.totalorder %s20, 4
      // Predicated region
      $region21: #{_lambda_.2} parent=5 // pred_check
        %p196 = pneg %p195
      $region22: #{_lambda_.2} parent=5 // pred_check_branch
        %198 = sbr.rel (%p196) target = $region24
      $region23: #{_lambda_.2} parent=5 // pred_region
        // Predicated region
        $region25: #{_lambda_.2} parent=23 // pred_check
          %p199 = pneg %p54
        $region26: #{_lambda_.2} parent=23 // pred_check_branch
          %201 = sbr.rel (%p199) target = $region28
        $region27: #{_lambda_.2} parent=23 // pred_region
          %s202 = sand.u32 %s44, 1
          %s203 = scalar_lea.sflag [#allocation4], %s202
          %s204 = sand.u32 %s44, 1
          %s205 = smul.addr %s204, 16
          %s206 = scalar_lea.vmem [#allocation3], %s205
          %s207 = smul.u32 4, %s28
          %s209 = ssub.s32 256, 256
          %210 = vsyncadd %s203, %s209
          %s211 = smul.addr %s27, 8
          %s212 = sadd.s32 %s207, %s211
          %s213 = smul.addr %s212, 64
          %s214 = scalar_lea.hbm %s0, %s213
          %s216 = sshll.u32 %s206, 4
          %s217 = int_to_ptr.vmem [resolvable:$true] %s216
          %219 = dma.hbm_to_vmem [thread:$0]  %s214, 256, %s217, %s203
        $region28: #{_lambda_.2} parent=23 // pred_fallthru
          _
        // Predicated region
        $region29: #{_lambda_.2} parent=23 // pred_check
          %p220 = pneg %p80
        $region30: #{_lambda_.2} parent=23 // pred_check_branch
          %222 = sbr.rel (%p220) target = $region32
        $region31: #{_lambda_.2} parent=23 // pred_region
          %s223 = sand.u32 %s20, 1
          %s224 = scalar_lea.sflag [#allocation7], %s223
          %s225 = sand.u32 %s70, 1
          %s226 = smul.addr %s225, 256
          %s227 = scalar_lea.vmem [#allocation6], %s226
          %s228 = smul.u32 64, %s28
          %s230 = ssub.s32 4096, 4096
          %231 = vsyncadd %s224, %s230
          %s232 = smul.addr %s228, 64
          %s233 = scalar_lea.hbm %s1, %s232
          %s234 = sshll.u32 %s227, 4
          %s235 = int_to_ptr.vmem [resolvable:$true] %s234
          %240 = dma.hbm_to_vmem [thread:$0]  %s233, 4096, %s235, %s224, 64, 64, 4
        $region32: #{_lambda_.2} parent=23 // pred_fallthru
          _
      $region24: #{_lambda_.2} parent=5 // pred_fallthru
        _
      %p241 = scmp.le.s32.totalorder 1, %s20
      %p242 = scmp.lt.s32.totalorder %s20, 5
      %p243 = pnand %p241, %p242
      %p244 = pneg %p243
      // Predicated region
      $region33: #{_lambda_.2} parent=5 // pred_check
        _
      $region34: #{_lambda_.2} parent=5 // pred_check_branch
        %246 = sbr.rel (%p243) target = $region36
      $region35: #{_lambda_.2} parent=5 // pred_region
        %s247 = ssub.s32 %s20, 1
        %s248 = sand.u32 %s47, 1
        %s249 = scalar_lea.sflag [#allocation4], %s248
        %s250 = sand.u32 %s47, 1
        %s251 = smul.addr %s250, 16
        %s252 = scalar_lea.vmem [#allocation3], %s251
        // Predicated region
        $region37: #{_lambda_.2} parent=35 // pred_check
          %p253 = pneg %p60
        $region38: #{_lambda_.2} parent=35 // pred_check_branch
          %255 = sbr.rel (%p253) target = $region40
        $region39: #{_lambda_.2} parent=35 // pred_region
          %256 = dma.done %s249, 256
        $region40: #{_lambda_.2} parent=35 // pred_fallthru
          _
        %s257 = sand.u32 %s25, 1
        %s258 = scalar_lea.sflag [#allocation7], %s257
        %s259 = sand.u32 %s73, 1
        %s260 = smul.addr %s259, 256
        %s261 = scalar_lea.vmem [#allocation6], %s260
        // Predicated region
        $region41: #{_lambda_.2} parent=35 // pred_check
          %p262 = pneg %p86
        $region42: #{_lambda_.2} parent=35 // pred_check_branch
          %264 = sbr.rel (%p262) target = $region44
        $region43: #{_lambda_.2} parent=35 // pred_region
          %265 = dma.done %s258, 4096
        $region44: #{_lambda_.2} parent=35 // pred_fallthru
          _
        // Predicated region
        $region45: #{_lambda_.2} parent=35 // pred_check
          %p266 = pneg %p107
        $region46: #{_lambda_.2} parent=35 // pred_check_branch
          %268 = sbr.rel (%p266) target = $region48
        $region47: #{_lambda_.2} parent=35 // pred_region
          %269 = dma.done [#allocation7], 256
        $region48: #{_lambda_.2} parent=35 // pred_fallthru
          _
        // Predicated region
        $region49: #{_lambda_.2} parent=35 // pred_check
          %p270 = pneg %p128
        $region50: #{_lambda_.2} parent=35 // pred_check_branch
          %272 = sbr.rel (%p270) target = $region52
        $region51: #{_lambda_.2} parent=35 // pred_region
          %273 = dma.done [#allocation10], 512
        $region52: #{_lambda_.2} parent=35 // pred_fallthru
          _
        %s274 = sand.u32 %s47, 1
        %s275 = scalar_lea.sflag [#allocation4], %s274
        %s276 = sand.u32 %s47, 1
        %s277 = smul.addr %s276, 16
        %s278 = scalar_lea.vmem [#allocation3], %s277
        %p279 = pneg %p60
        %p280 = pneg %p57
        %s281 = sand.u32 %s25, 1
        %s282 = scalar_lea.sflag [#allocation7], %s281
        %s283 = sand.u32 %s73, 1
        %s284 = smul.addr %s283, 256
        %s285 = scalar_lea.vmem [#allocation6], %s284
        %p286 = pneg %p86
        %p287 = pneg %p83
        %p288 = pneg %p107
        %p289 = pneg %p104
        %p290 = pneg %p128
        %p291 = pneg %p125
        %p292 = pneg %p154
        %p293 = pneg %p151
        %s294 = sand.u32 %s141, 1
        %s295 = scalar_lea.sflag [#allocation5], %s294
        %s296 = sand.u32 %s141, 1
        %s297 = smul.addr %s296, 16
        %s298 = scalar_lea.vmem [#allocation11], %s297
        %s299 = smul.u32 4, %s30
        %s300 = smul.u32 64, %s30
        %p302 = scmp.eq.s32.totalorder %s30, 0
        // Predicated region
        $region53: #{_lambda_.2} parent=35 // pred_check
          %p303 = pneg %p302
        $region54: #{_lambda_.2} parent=35 // pred_check_branch
          %305 = sbr.rel (%p303) target = $region56
        $region55: #{_lambda_.2} parent=35 // pred_region
          %vm306 = vcmask 404480
          %307 = vst.msk [vmem:[#allocation2] sm:$0xf] %vm306, 0.0
        $region56: #{_lambda_.2} parent=35 // pred_fallthru
          _
        %v308 = vld [vmem:[%s252] sm:$0xff]
        %v309 = vld [vmem:[%s252 + $0x8] sm:$0xff]
        %v312 = vcombine.high %v308, %v308
        %v313 = vcombine.high %v309, %v309
        %v316 = vpack.c.bf16 %v308, %v308
        %v317 = vpack.c.bf16 %v312, %v312
        %v318 = vpack.c.bf16 %v309, %v309
        %v319 = vpack.c.bf16 %v313, %v313
        %v320 = vld [vmem:[#allocation2] sm:$0xf]
        %v321 = vld [vmem:[%s261] sm:$0xf]
        %v322 = vld [vmem:[%s261 + $0x4] sm:$0xf]
        %v323 = vld [vmem:[%s261 + $0x8] sm:$0xf]
        %v324 = vld [vmem:[%s261 + $0xc] sm:$0xf]
        %v325 = vld [vmem:[%s261 + $0x10] sm:$0xf]
        %v326 = vld [vmem:[%s261 + $0x14] sm:$0xf]
        %v327 = vld [vmem:[%s261 + $0x18] sm:$0xf]
        %v328 = vld [vmem:[%s261 + $0x1c] sm:$0xf]
        %v329 = vld [vmem:[%s261 + $0x20] sm:$0xf]
        %v330 = vld [vmem:[%s261 + $0x24] sm:$0xf]
        %v331 = vld [vmem:[%s261 + $0x28] sm:$0xf]
        %v332 = vld [vmem:[%s261 + $0x2c] sm:$0xf]
        %v333 = vld [vmem:[%s261 + $0x30] sm:$0xf]
        %v334 = vld [vmem:[%s261 + $0x34] sm:$0xf]
        %v335 = vld [vmem:[%s261 + $0x38] sm:$0xf]
        %v336 = vld [vmem:[%s261 + $0x3c] sm:$0xf]
        %v337 = vld [vmem:[%s261 + $0x40] sm:$0xf]
        %v338 = vld [vmem:[%s261 + $0x44] sm:$0xf]
        %v339 = vld [vmem:[%s261 + $0x48] sm:$0xf]
        %v340 = vld [vmem:[%s261 + $0x4c] sm:$0xf]
        %v341 = vld [vmem:[%s261 + $0x50] sm:$0xf]
        %v342 = vld [vmem:[%s261 + $0x54] sm:$0xf]
        %v343 = vld [vmem:[%s261 + $0x58] sm:$0xf]
        %v344 = vld [vmem:[%s261 + $0x5c] sm:$0xf]
        %v345 = vld [vmem:[%s261 + $0x60] sm:$0xf]
        %v346 = vld [vmem:[%s261 + $0x64] sm:$0xf]
        %v347 = vld [vmem:[%s261 + $0x68] sm:$0xf]
        %v348 = vld [vmem:[%s261 + $0x6c] sm:$0xf]
        %v349 = vld [vmem:[%s261 + $0x70] sm:$0xf]
        %v350 = vld [vmem:[%s261 + $0x74] sm:$0xf]
        %v351 = vld [vmem:[%s261 + $0x78] sm:$0xf]
        %v352 = vld [vmem:[%s261 + $0x7c] sm:$0xf]
        %v353 = vld [vmem:[%s261 + $0x80] sm:$0xf]
        %v354 = vld [vmem:[%s261 + $0x84] sm:$0xf]
        %v355 = vld [vmem:[%s261 + $0x88] sm:$0xf]
        %v356 = vld [vmem:[%s261 + $0x8c] sm:$0xf]
        %v357 = vld [vmem:[%s261 + $0x90] sm:$0xf]
        %v358 = vld [vmem:[%s261 + $0x94] sm:$0xf]
        %v359 = vld [vmem:[%s261 + $0x98] sm:$0xf]
        %v360 = vld [vmem:[%s261 + $0x9c] sm:$0xf]
        %v361 = vld [vmem:[%s261 + $0xa0] sm:$0xf]
        %v362 = vld [vmem:[%s261 + $0xa4] sm:$0xf]
        %v363 = vld [vmem:[%s261 + $0xa8] sm:$0xf]
        %v364 = vld [vmem:[%s261 + $0xac] sm:$0xf]
        %v365 = vld [vmem:[%s261 + $0xb0] sm:$0xf]
        %v366 = vld [vmem:[%s261 + $0xb4] sm:$0xf]
        %v367 = vld [vmem:[%s261 + $0xb8] sm:$0xf]
        %v368 = vld [vmem:[%s261 + $0xbc] sm:$0xf]
        %v369 = vld [vmem:[%s261 + $0xc0] sm:$0xf]
        %v370 = vld [vmem:[%s261 + $0xc4] sm:$0xf]
        %v371 = vld [vmem:[%s261 + $0xc8] sm:$0xf]
        %v372 = vld [vmem:[%s261 + $0xcc] sm:$0xf]
        %v373 = vld [vmem:[%s261 + $0xd0] sm:$0xf]
        %v374 = vld [vmem:[%s261 + $0xd4] sm:$0xf]
        %v375 = vld [vmem:[%s261 + $0xd8] sm:$0xf]
        %v376 = vld [vmem:[%s261 + $0xdc] sm:$0xf]
        %v377 = vld [vmem:[%s261 + $0xe0] sm:$0xf]
        %v378 = vld [vmem:[%s261 + $0xe4] sm:$0xf]
        %v379 = vld [vmem:[%s261 + $0xe8] sm:$0xf]
        %v380 = vld [vmem:[%s261 + $0xec] sm:$0xf]
        %v381 = vld [vmem:[%s261 + $0xf0] sm:$0xf]
        %v382 = vld [vmem:[%s261 + $0xf4] sm:$0xf]
        %v383 = vld [vmem:[%s261 + $0xf8] sm:$0xf]
        %v384 = vld [vmem:[%s261 + $0xfc] sm:$0xf]
        %v449 = vunpack.c.l.b16 %v321
        %v450 = vunpack.c.l.b16 %v322
        %v451 = vunpack.c.l.b16 %v323
        %v452 = vunpack.c.l.b16 %v324
        %v453 = vunpack.c.l.b16 %v325
        %v454 = vunpack.c.l.b16 %v326
        %v455 = vunpack.c.l.b16 %v327
        %v456 = vunpack.c.l.b16 %v328
        %v457 = vunpack.c.l.b16 %v329
        %v458 = vunpack.c.l.b16 %v330
        %v459 = vunpack.c.l.b16 %v331
        %v460 = vunpack.c.l.b16 %v332
        %v461 = vunpack.c.l.b16 %v333
        %v462 = vunpack.c.l.b16 %v334
        %v463 = vunpack.c.l.b16 %v335
        %v464 = vunpack.c.l.b16 %v336
        %v465 = vunpack.c.l.b16 %v337
        %v466 = vunpack.c.l.b16 %v338
        %v467 = vunpack.c.l.b16 %v339
        %v468 = vunpack.c.l.b16 %v340
        %v469 = vunpack.c.l.b16 %v341
        %v470 = vunpack.c.l.b16 %v342
        %v471 = vunpack.c.l.b16 %v343
        %v472 = vunpack.c.l.b16 %v344
        %v473 = vunpack.c.l.b16 %v345
        %v474 = vunpack.c.l.b16 %v346
        %v475 = vunpack.c.l.b16 %v347
        %v476 = vunpack.c.l.b16 %v348
        %v477 = vunpack.c.l.b16 %v349
        %v478 = vunpack.c.l.b16 %v350
        %v479 = vunpack.c.l.b16 %v351
        %v480 = vunpack.c.l.b16 %v352
        %v481 = vunpack.c.l.b16 %v353
        %v482 = vunpack.c.l.b16 %v354
        %v483 = vunpack.c.l.b16 %v355
        %v484 = vunpack.c.l.b16 %v356
        %v485 = vunpack.c.l.b16 %v357
        %v486 = vunpack.c.l.b16 %v358
        %v487 = vunpack.c.l.b16 %v359
        %v488 = vunpack.c.l.b16 %v360
        %v489 = vunpack.c.l.b16 %v361
        %v490 = vunpack.c.l.b16 %v362
        %v491 = vunpack.c.l.b16 %v363
        %v492 = vunpack.c.l.b16 %v364
        %v493 = vunpack.c.l.b16 %v365
        %v494 = vunpack.c.l.b16 %v366
        %v495 = vunpack.c.l.b16 %v367
        %v496 = vunpack.c.l.b16 %v368
        %v497 = vunpack.c.l.b16 %v369
        %v498 = vunpack.c.l.b16 %v370
        %v499 = vunpack.c.l.b16 %v371
        %v500 = vunpack.c.l.b16 %v372
        %v501 = vunpack.c.l.b16 %v373
        %v502 = vunpack.c.l.b16 %v374
        %v503 = vunpack.c.l.b16 %v375
        %v504 = vunpack.c.l.b16 %v376
        %v505 = vunpack.c.l.b16 %v377
        %v506 = vunpack.c.l.b16 %v378
        %v507 = vunpack.c.l.b16 %v379
        %v508 = vunpack.c.l.b16 %v380
        %v509 = vunpack.c.l.b16 %v381
        %v510 = vunpack.c.l.b16 %v382
        %v511 = vunpack.c.l.b16 %v383
        %v512 = vunpack.c.l.b16 %v384
        %v513 = vpack.c.b16 %v450, %v449
        %v514 = vpack.c.b16 %v452, %v451
        %v515 = vpack.c.b16 %v454, %v453
        %v516 = vpack.c.b16 %v456, %v455
        %v517 = vpack.c.b16 %v458, %v457
        %v518 = vpack.c.b16 %v460, %v459
        %v519 = vpack.c.b16 %v462, %v461
        %v520 = vpack.c.b16 %v464, %v463
        %v521 = vpack.c.b16 %v466, %v465
        %v522 = vpack.c.b16 %v468, %v467
        %v523 = vpack.c.b16 %v470, %v469
        %v524 = vpack.c.b16 %v472, %v471
        %v525 = vpack.c.b16 %v474, %v473
        %v526 = vpack.c.b16 %v476, %v475
        %v527 = vpack.c.b16 %v478, %v477
        %v528 = vpack.c.b16 %v480, %v479
        %v529 = vpack.c.b16 %v482, %v481
        %v530 = vpack.c.b16 %v484, %v483
        %v531 = vpack.c.b16 %v486, %v485
        %v532 = vpack.c.b16 %v488, %v487
        %v533 = vpack.c.b16 %v490, %v489
        %v534 = vpack.c.b16 %v492, %v491
        %v535 = vpack.c.b16 %v494, %v493
        %v536 = vpack.c.b16 %v496, %v495
        %v537 = vpack.c.b16 %v498, %v497
        %v538 = vpack.c.b16 %v500, %v499
        %v539 = vpack.c.b16 %v502, %v501
        %v540 = vpack.c.b16 %v504, %v503
        %v541 = vpack.c.b16 %v506, %v505
        %v542 = vpack.c.b16 %v508, %v507
        %v543 = vpack.c.b16 %v510, %v509
        %v544 = vpack.c.b16 %v512, %v511
        %577 = vmatprep.subr.bf16.mxu0 0
        %578 = vmatpush1.bf16.msra.mxu0 %v513
        %579 = vmatprep.subr.bf16.mxu0 0
        %580 = vmatpush1.bf16.msra.mxu0 %v514
        %581 = vmatprep.subr.bf16.mxu0 0
        %582 = vmatpush1.bf16.msra.mxu0 %v515
        %583 = vmatprep.subr.bf16.mxu0 0
        %584 = vmatpush1.bf16.msra.mxu0 %v516
        %585 = vmatprep.subr.bf16.mxu0 0
        %586 = vmatpush1.bf16.msra.mxu0 %v517
        %587 = vmatprep.subr.bf16.mxu0 0
        %588 = vmatpush1.bf16.msra.mxu0 %v518
        %589 = vmatprep.subr.bf16.mxu0 0
        %590 = vmatpush1.bf16.msra.mxu0 %v519
        %591 = vmatprep.subr.bf16.mxu0 0
        %592 = vmatpush1.bf16.msra.mxu0 %v520
        %593 = vmatprep.subr.bf16.mxu0 0
        %594 = vmatpush1.bf16.msra.mxu0 %v521
        %595 = vmatprep.subr.bf16.mxu0 0
        %596 = vmatpush1.bf16.msra.mxu0 %v522
        %597 = vmatprep.subr.bf16.mxu0 0
        %598 = vmatpush1.bf16.msra.mxu0 %v523
        %599 = vmatprep.subr.bf16.mxu0 0
        %600 = vmatpush1.bf16.msra.mxu0 %v524
        %601 = vmatprep.subr.bf16.mxu0 0
        %602 = vmatpush1.bf16.msra.mxu0 %v525
        %603 = vmatprep.subr.bf16.mxu0 0
        %604 = vmatpush1.bf16.msra.mxu0 %v526
        %605 = vmatprep.subr.bf16.mxu0 0
        %606 = vmatpush1.bf16.msra.mxu0 %v527
        %607 = vmatprep.subr.bf16.mxu0 0
        %608 = vmatpush1.bf16.msra.mxu0 %v528
        %609 = vmatprep.mubr.bf16.mxu0 %v317
        %610 = vmatmul.mubr.bf16.gmra.mrb[0].mxu0 %v316
        %v611 = vpop.f32.mrb[0].mxu0
        %v612 = vadd.f32 0.0, %v611
        %v613 = vpop.f32.mrb[0].mxu0
        %v614 = vpop.f32.mrb[0].mxu0
        %v615 = vpop.f32.mrb[0].mxu0
        %616 = vdwg.mxu0
        %617 = vmatprep.subr.bf16.mxu0 0
        %618 = vmatpush1.bf16.msra.mxu0 %v529
        %619 = vmatprep.subr.bf16.mxu0 0
        %620 = vmatpush1.bf16.msra.mxu0 %v530
        %621 = vmatprep.subr.bf16.mxu0 0
        %622 = vmatpush1.bf16.msra.mxu0 %v531
        %623 = vmatprep.subr.bf16.mxu0 0
        %624 = vmatpush1.bf16.msra.mxu0 %v532
        %625 = vmatprep.subr.bf16.mxu0 0
        %626 = vmatpush1.bf16.msra.mxu0 %v533
        %627 = vmatprep.subr.bf16.mxu0 0
        %628 = vmatpush1.bf16.msra.mxu0 %v534
        %629 = vmatprep.subr.bf16.mxu0 0
        %630 = vmatpush1.bf16.msra.mxu0 %v535
        %631 = vmatprep.subr.bf16.mxu0 0
        %632 = vmatpush1.bf16.msra.mxu0 %v536
        %633 = vmatprep.subr.bf16.mxu0 0
        %634 = vmatpush1.bf16.msra.mxu0 %v537
        %635 = vmatprep.subr.bf16.mxu0 0
        %636 = vmatpush1.bf16.msra.mxu0 %v538
        %637 = vmatprep.subr.bf16.mxu0 0
        %638 = vmatpush1.bf16.msra.mxu0 %v539
        %639 = vmatprep.subr.bf16.mxu0 0
        %640 = vmatpush1.bf16.msra.mxu0 %v540
        %641 = vmatprep.subr.bf16.mxu0 0
        %642 = vmatpush1.bf16.msra.mxu0 %v541
        %643 = vmatprep.subr.bf16.mxu0 0
        %644 = vmatpush1.bf16.msra.mxu0 %v542
        %645 = vmatprep.subr.bf16.mxu0 0
        %646 = vmatpush1.bf16.msra.mxu0 %v543
        %647 = vmatprep.subr.bf16.mxu0 0
        %648 = vmatpush1.bf16.msra.mxu0 %v544
        %649 = vmatprep.mubr.bf16.mxu0 %v319
        %650 = vmatmul.mubr.bf16.gmra.mrb[0].mxu0 %v318
        %v651 = vpop.f32.mrb[0].mxu0
        %v652 = vadd.f32 %v612, %v651
        %v653 = vpop.f32.mrb[0].mxu0
        %v654 = vpop.f32.mrb[0].mxu0
        %v655 = vpop.f32.mrb[0].mxu0
        %656 = vdwg.mxu0
        %v657 = vadd.f32 %v320, %v652
        %vm658 = vcmask 404480
        %659 = vst.msk [vmem:[#allocation2] sm:$0xf] %vm658, %v657
        %p660 = scmp.eq.s32.totalorder %s30, 1
        // Predicated region
        $region57: #{_lambda_.2} parent=35 // pred_check
          %p661 = pneg %p660
        $region58: #{_lambda_.2} parent=35 // pred_check_branch
          %663 = sbr.rel (%p661) target = $region60
        $region59: #{_lambda_.2} parent=35 // pred_region
          %v664 = vld [vmem:[#allocation8] sm:$0xf]
          %v665 = vld [vmem:[#allocation8 + $0x4] sm:$0xf]
          %v666 = vld [vmem:[#allocation8 + $0x8] sm:$0xf]
          %v667 = vld [vmem:[#allocation8 + $0xc] sm:$0xf]
          %v668 = vunpack.c.l.bf16 %v664
          %v669 = vunpack.c.l.bf16 %v665
          %v670 = vunpack.c.l.bf16 %v666
          %v671 = vunpack.c.l.bf16 %v667
          %v672 = vld [vmem:[#allocation2] sm:$0xf]
          %v673 = vld [vmem:[#allocation9] sm:$0xff]
          %v674 = vld [vmem:[#allocation9 + $0x8] sm:$0xff]
          %v675 = vld [vmem:[#allocation9 + $0x10] sm:$0xff]
          %v676 = vld [vmem:[#allocation9 + $0x18] sm:$0xff]
          %678 = vset.pattern.permute.xlu0 0
          %679 = vperm.xlu0 %678, %v673
          %v680 = vpop.permute.xlu0 %679
          %683 = vset.pattern.permute.xlu0 0
          %684 = vperm.xlu0 %683, %v674
          %v685 = vpop.permute.xlu0 %684
          %688 = vset.pattern.permute.xlu0 0
          %689 = vperm.xlu0 %688, %v675
          %v690 = vpop.permute.xlu0 %689
          %693 = vset.pattern.permute.xlu0 0
          %694 = vperm.xlu0 %693, %v676
          %v695 = vpop.permute.xlu0 %694
          %vm697 = vcmask 31744
          %v699 = vsel %vm697, %v668, 0
          %v702 = vsel %vm697, %v669, 0
          %v705 = vsel %vm697, %v670, 0
          %v708 = vsel %vm697, %v671, 0
          %vm710 = vcmask 1043456
          %v712 = vsel %vm710, %v672, 0
          %714 = vmatprep.subr.mxu0 0.0
          %715 = vmatpush1.msra.mxu0 %v712
          %716 = vmatprep.subr.mxu0 0.0
          %717 = vmatpush1.msra.mxu0 0.0
          %718 = vmatprep.subr.mxu0 0.0
          %719 = vmatpush1.msra.mxu0 0.0
          %720 = vmatprep.subr.mxu0 0.0
          %721 = vmatpush1.msra.mxu0 0.0
          %722 = vmatprep.subr.mxu0 0.0
          %723 = vmatpush1.msra.mxu0 0.0
          %724 = vmatprep.subr.mxu0 0.0
          %725 = vmatpush1.msra.mxu0 0.0
          %726 = vmatprep.subr.mxu0 0.0
          %727 = vmatpush1.msra.mxu0 0.0
          %728 = vmatprep.subr.mxu0 0.0
          %729 = vmatpush1.msra.mxu0 0.0
          %730 = vmatprep.subr.mxu0 0.0
          %731 = vmatpush1.msra.mxu0 0.0
          %732 = vmatprep.subr.mxu0 0.0
          %733 = vmatpush1.msra.mxu0 0.0
          %734 = vmatprep.subr.mxu0 0.0
          %735 = vmatpush1.msra.mxu0 0.0
          %736 = vmatprep.subr.mxu0 0.0
          %737 = vmatpush1.msra.mxu0 0.0
          %738 = vmatprep.subr.mxu0 0.0
          %739 = vmatpush1.msra.mxu0 0.0
          %740 = vmatprep.subr.mxu0 0.0
          %741 = vmatpush1.msra.mxu0 0.0
          %742 = vmatprep.subr.mxu0 0.0
          %743 = vmatpush1.msra.mxu0 0.0
          %744 = vmatprep.subr.mxu0 0.0
          %745 = vmatpush1.msra.mxu0 0.0
          %746 = vmatprep.subr.mxu0 0.0
          %747 = vmatpush1.msra.mxu0 0.0
          %748 = vmatprep.subr.mxu0 0.0
          %749 = vmatpush1.msra.mxu0 0.0
          %750 = vmatprep.subr.mxu0 0.0
          %751 = vmatpush1.msra.mxu0 0.0
          %752 = vmatprep.subr.mxu0 0.0
          %753 = vmatpush1.msra.mxu0 0.0
          %754 = vmatprep.subr.mxu0 0.0
          %755 = vmatpush1.msra.mxu0 0.0
          %756 = vmatprep.subr.mxu0 0.0
          %757 = vmatpush1.msra.mxu0 0.0
          %758 = vmatprep.subr.mxu0 0.0
          %759 = vmatpush1.msra.mxu0 0.0
          %760 = vmatprep.subr.mxu0 0.0
          %761 = vmatpush1.msra.mxu0 0.0
          %762 = vmatprep.subr.mxu0 0.0
          %763 = vmatpush1.msra.mxu0 0.0
          %764 = vmatprep.subr.mxu0 0.0
          %765 = vmatpush1.msra.mxu0 0.0
          %766 = vmatprep.subr.mxu0 0.0
          %767 = vmatpush1.msra.mxu0 0.0
          %768 = vmatprep.subr.mxu0 0.0
          %769 = vmatpush1.msra.mxu0 0.0
          %770 = vmatprep.subr.mxu0 0.0
          %771 = vmatpush1.msra.mxu0 0.0
          %772 = vmatprep.subr.mxu0 0.0
          %773 = vmatpush1.msra.mxu0 0.0
          %774 = vmatprep.subr.mxu0 0.0
          %775 = vmatpush1.msra.mxu0 0.0
          %776 = vmatprep.subr.mxu0 0.0
          %777 = vmatpush1.msra.mxu0 0.0
          %778 = vmatprep.mubr.f32.mxu0 0.0
          %779 = vmatmul.mubr.f32.gmra.mrb[0].mxu0 %v699
          %v780 = vpop.f32.mrb[0].mxu0
          %v781 = vadd.f32 %v680, %v780
          %v782 = vpop.f32.mrb[0].mxu0
          %783 = vmatprep.mubr.f32.mxu0 0.0
          %784 = vmatmul.mubr.f32.gmra.mrb[0].mxu0 %v702
          %v785 = vpop.f32.mrb[0].mxu0
          %v786 = vadd.f32 %v685, %v785
          %v787 = vpop.f32.mrb[0].mxu0
          %788 = vmatprep.mubr.f32.mxu0 0.0
          %789 = vmatmul.mubr.f32.gmra.mrb[0].mxu0 %v705
          %v790 = vpop.f32.mrb[0].mxu0
          %v791 = vadd.f32 %v690, %v790
          %v792 = vpop.f32.mrb[0].mxu0
          %793 = vmatprep.mubr.f32.mxu0 0.0
          %794 = vmatmul.mubr.f32.gmra.mrb[0].mxu0 %v708
          %v795 = vpop.f32.mrb[0].mxu0
          %v796 = vadd.f32 %v695, %v795
          %v797 = vpop.f32.mrb[0].mxu0
          %798 = vdwg.mxu0
          %v799 = vmax.f32 %v781, 0.0
          %v800 = vmax.f32 %v786, 0.0
          %v801 = vmax.f32 %v791, 0.0
          %v802 = vmax.f32 %v796, 0.0
          %v803 = vlaneseq
          %v804 = vshrl.u32 %v803, 7
          %v805 = vadd.s32 %v804, 8
          %v806 = vadd.s32 %v804, 16
          %v807 = vadd.s32 %v804, 24
          %v808 = vlaneseq
          %v809 = vand.u32 %v808, 127
          %vm810 = vcmp.ge.s32.totalorder %v804, 8
          %vm811 = vcmp.ge.s32.totalorder %v805, 8
          %vm812 = vcmp.ge.s32.totalorder %v806, 8
          %vm813 = vcmp.ge.s32.totalorder %v807, 8
          %v814 = vsel %vm810, 1, 0
          %v815 = vsel %vm811, 1, 0
          %v816 = vsel %vm812, 1, 0
          %v817 = vsel %vm813, 1, 0
          %vm818 = vcmp.ge.s32.totalorder %v809, 1
          %v819 = vsel %vm818, 1, 0
          %vm820 = vcmp.ge.s32.totalorder %v804, 16
          %vm821 = vcmp.ge.s32.totalorder %v805, 16
          %vm822 = vcmp.ge.s32.totalorder %v806, 16
          %vm823 = vcmp.ge.s32.totalorder %v807, 16
          %v824 = vsel %vm820, 1, 0
          %v825 = vsel %vm821, 1, 0
          %v826 = vsel %vm822, 1, 0
          %v827 = vsel %vm823, 1, 0
          %v828 = vadd.s32 %v814, %v824
          %v829 = vadd.s32 %v815, %v825
          %v830 = vadd.s32 %v816, %v826
          %v831 = vadd.s32 %v817, %v827
          %vm832 = vcmp.ge.s32.totalorder %v809, 5
          %v833 = vsel %vm832, 1, 0
          %v834 = vadd.s32 %v819, %v833
          %vm835 = vcmp.ge.s32.totalorder %v804, 24
          %vm836 = vcmp.ge.s32.totalorder %v805, 24
          %vm837 = vcmp.ge.s32.totalorder %v806, 24
          %vm838 = vcmp.ge.s32.totalorder %v807, 24
          %v839 = vsel %vm835, 1, 0
          %v840 = vsel %vm836, 1, 0
          %v841 = vsel %vm837, 1, 0
          %v842 = vsel %vm838, 1, 0
          %v843 = vadd.s32 %v828, %v839
          %v844 = vadd.s32 %v829, %v840
          %v845 = vadd.s32 %v830, %v841
          %v846 = vadd.s32 %v831, %v842
          %vm847 = vcmp.ge.s32.totalorder %v809, 14
          %v848 = vsel %vm847, 1, 0
          %v849 = vadd.s32 %v834, %v848
          %vm850 = vcmp.eq.s32.totalorder %v843, %v849
          %vm851 = vcmp.eq.s32.totalorder %v844, %v849
          %vm852 = vcmp.eq.s32.totalorder %v845, %v849
          %vm853 = vcmp.eq.s32.totalorder %v846, %v849
          %v854 = vsel %vm850, %v799, 0.0
          %v855 = vsel %vm851, %v800, 0.0
          %v856 = vsel %vm852, %v801, 0.0
          %v857 = vsel %vm853, %v802, 0.0
          %v858 = vpack.c.bf16 %v855, %v854
          %v859 = vpack.c.bf16 %v857, %v856
          %v862 = vunpack.c.l.b16 %v858
          %v863 = vunpack.c.h.b16 %v858
          %v864 = vunpack.c.l.b16 %v859
          %v865 = vunpack.c.h.b16 %v859
          %v866 = vpack.c.b16 %v862, %v862
          %v867 = vpack.c.b16 %v863, %v863
          %v868 = vpack.c.b16 %v864, %v864
          %v869 = vpack.c.b16 %v865, %v865
          %874 = vst.msk [vmem:[%s298] sm:$0xf] %vm658, %v866
          %875 = vst.msk [vmem:[%s298 + $0x4] sm:$0xf] %vm658, %v867
          %876 = vst.msk [vmem:[%s298 + $0x8] sm:$0xf] %vm658, %v868
          %877 = vst.msk [vmem:[%s298 + $0xc] sm:$0xf] %vm658, %v869
        $region60: #{_lambda_.2} parent=35 // pred_fallthru
          _
        %s878 = sand.u32 %s141, 1
        %s879 = scalar_lea.sflag [#allocation5], %s878
        %s880 = sand.u32 %s141, 1
        %s881 = smul.addr %s880, 16
        %s882 = scalar_lea.vmem [#allocation11], %s881
        // Predicated region
        $region61: #{_lambda_.2} parent=35 // pred_check
          %p883 = pneg %p151
        $region62: #{_lambda_.2} parent=35 // pred_check_branch
          %885 = sbr.rel (%p883) target = $region64
        $region63: #{_lambda_.2} parent=35 // pred_region
          %s887 = ssub.s32 256, 256
          %888 = vsyncadd %s879, %s887
          %s889 = smul.addr %s29, 4
          %s890 = smul.addr %s889, 64
          %s891 = scalar_lea.hbm %s4, %s890
          %s892 = sshll.u32 %s882, 4
          %s893 = int_to_ptr.vmem [resolvable:$true] %s892
          %898 = dma.vmem_to_hbm [thread:$0]  %s893, 256, %s891, %s879, 64, 64, 4
        $region64: #{_lambda_.2} parent=35 // pred_fallthru
          _
      $region36: #{_lambda_.2} parent=5 // pred_fallthru
        _
      %p899 = scmp.le.s32.totalorder 2, %s20
      // Predicated region
      $region65: #{_lambda_.2} parent=5 // pred_check
        %p900 = pneg %p899
      $region66: #{_lambda_.2} parent=5 // pred_check_branch
        %902 = sbr.rel (%p900) target = $region68
      $region67: #{_lambda_.2} parent=5 // pred_region
        %s903 = ssub.s32 %s20, 2
        // Predicated region
        $region69: #{_lambda_.2} parent=67 // pred_check
          %p904 = pneg %p157
        $region70: #{_lambda_.2} parent=67 // pred_check_branch
          %906 = sbr.rel (%p904) target = $region72
        $region71: #{_lambda_.2} parent=67 // pred_region
          %s907 = sand.u32 %s142, 1
          %s908 = scalar_lea.sflag [#allocation5], %s907
          %s909 = sand.u32 %s142, 1
          %s910 = smul.addr %s909, 16
          %s911 = scalar_lea.vmem [#allocation11], %s910
          %912 = dma.done %s908, 256
        $region72: #{_lambda_.2} parent=67 // pred_fallthru
          _
      $region68: #{_lambda_.2} parent=5 // pred_fallthru
        _
    $region6: #{_lambda_.2} parent=1 // loop_footer
      %s24 = sadd.s32 1, %s20
    $region7: #{_lambda_.2} parent=1 // loop_footer_branch
      %19 = sbr.rel target = $region3
    $region8: #{_lambda_.2} parent=1 // loop_exit
      _
    %913 = vsyncpa [#allocation4], 1
    %s914 = scalar_lea.sflag [#allocation4], 1
    %915 = vsyncpa %s914, 1
    %916 = vsyncpa [#allocation7], 1
    %s917 = scalar_lea.sflag [#allocation7], 1
    %918 = vsyncpa %s917, 1
    %919 = vsyncpa [#allocation10], 1
    %920 = vsyncpa [#allocation5], 1
    %s921 = scalar_lea.sflag [#allocation5], 1
    %922 = vsyncpa %s921, 1

// kernel: _lambda_.3
$region0: #{_lambda_.3}
  #allocation0 [shape = 'u32[]', space=smem, size = 0x4, offset = 0x4, fixed_abs, tag = 'smem constant byte address 0x4 - core index']
  #allocation1 [shape = 'u32[144,128]{1,0:T(1,128)}', space=vmem, size = 0x12000, scoped, tag = 'internal scratch']
  %s0 = inlined_call_operand.hbm [shape: bf16[2,32,50], index: 0, kind: input, shape index: {}]
  %s1 = inlined_call_operand.hbm [shape: bf16[50,1024], index: 1, kind: input, shape index: {}]
  %s2 = inlined_call_operand.hbm [shape: bf16[2,32,1024], index: 2, kind: output, shape index: {}]
  %s3 = sld [smem:[#allocation0]]
  $region49: #{_lambda_.3} parent=0
    _
  %s5 = ssub.s32 1, %s3
  %s6 = scalar_select 0, %s5, %s3
  $region1: #{_lambda_.3} parent=0
    #allocation2 [shape = 'u8[16384]{0}', space=vmem, size = 0x4000, scoped, tag = 'input window, operand 0']
    #allocation3 [shape = 's32[2]{0}', space=sflag, size = 0x8, scoped, tag = 'scoped memory for _lambda_.3']
    #allocation4 [shape = 's32[2]{0}', space=sflag, size = 0x8, scoped, tag = 'scoped memory for _lambda_.3']
    #allocation5 [shape = 'u8[114688]{0}', space=vmem, size = 0x1c000, scoped, tag = 'input window, operand 1']
    #allocation6 [shape = 's32[2]{0}', space=sflag, size = 0x8, scoped, tag = 'scoped memory for _lambda_.3']
    #allocation7 [shape = 'u8[65536]{0}', space=vmem, size = 0x10000, scoped, tag = 'output window, operand 0']
    %7 = vsyncpa [#allocation3], 0
    %s8 = scalar_lea.sflag [#allocation3], 1
    %9 = vsyncpa %s8, 0
    %10 = vsyncpa [#allocation6], 0
    %s11 = scalar_lea.sflag [#allocation6], 1
    %12 = vsyncpa %s11, 0
    %13 = vsyncpa [#allocation4], 0
    %s14 = scalar_lea.sflag [#allocation4], 1
    %15 = vsyncpa %s14, 0
    loop: start=0, step=1, limit=6
    $region2: #{_lambda_.3} parent=1 // loop_pre_header
      _
    $region3: #{_lambda_.3} parent=1 // loop_header
      %s17 = sphi 0, %s21
      %p18 = scmp.ge.s32.totalorder %s17, 6
      %s24 = sphi 0, %s36
      %s25 = sphi 0, %s32
      %s26 = sphi 0, %s24
      %s27 = sphi 0, %s25
      %s28 = sphi 0, %s26
      %s29 = sphi 0, %s27
      %s39 = sphi 0, %s41
      %s42 = sphi 0, %s39
      %s43 = sphi 0, %s42
      %s59 = sphi 0, %s43
      %s65 = sphi 0, %s67
      %s68 = sphi 0, %s65
      %s69 = sphi 0, %s68
      %s85 = sphi 0, %s69
      %s93 = sphi 0, %s95
      %s96 = sphi 0, %s93
      %s97 = sphi 0, %s96
      %s113 = sphi 0, %s97
    $region4: #{_lambda_.3} parent=1 // loop_header_branch
      %20 = sbr.rel (%p18) target = $region8
    $region5: #{_lambda_.3} parent=1 // loop_body
      %s22 = ssub.s32 %s17, 1
      %s23 = ssub.s32 %s17, 2
      %s30 = sadd.s32 1, %s25
      %p31 = scmp.ge.s32.totalorder %s30, 2
      %s32 = scalar_select %p31, 0, %s30
      %s33 = sadd.s32 1, %s24
      %s34 = scalar_select %p31, %s33, %s24
      %p35 = scmp.ge.s32.totalorder %s34, 2
      %s36 = scalar_select %p35, 0, %s34
      %s37 = ssub.s32 %s24, %s36
      %p38 = scmp.eq.s32.totalorder %s37, 0
      %s40 = sadd.s32 %s39, 1
      %s41 = scalar_select %p38, %s39, %s40
      %p44 = pneg %p38
      %p45 = scmp.eq.s32.totalorder %s17, 3
      %p46 = por %p44, %p45
      %p47 = scmp.ne.s32.totalorder %s39, %s42
      %p48 = scmp.eq.s32.totalorder %s17, 0
      %p49 = por %p47, %p48
      %p50 = scmp.ne.s32.totalorder %s39, %s42
      %p51 = scmp.eq.s32.totalorder %s22, 3
      %p52 = por %p50, %p51
      %p53 = scmp.ne.s32.totalorder %s42, %s43
      %p54 = scmp.eq.s32.totalorder %s22, 0
      %p55 = por %p53, %p54
      %p56 = scmp.ne.s32.totalorder %s42, %s43
      %p57 = scmp.eq.s32.totalorder %s23, 3
      %p58 = por %p56, %p57
      %p60 = scmp.ne.s32.totalorder %s43, %s59
      %p61 = scmp.eq.s32.totalorder %s23, 0
      %p62 = por %p60, %p61
      %s63 = ssub.s32 %s25, %s32
      %p64 = scmp.eq.s32.totalorder %s63, 0
      %s66 = sadd.s32 %s65, 1
      %s67 = scalar_select %p64, %s65, %s66
      %p70 = pneg %p64
      %p71 = scmp.eq.s32.totalorder %s17, 3
      %p72 = por %p70, %p71
      %p73 = scmp.ne.s32.totalorder %s65, %s68
      %p74 = scmp.eq.s32.totalorder %s17, 0
      %p75 = por %p73, %p74
      %p76 = scmp.ne.s32.totalorder %s65, %s68
      %p77 = scmp.eq.s32.totalorder %s22, 3
      %p78 = por %p76, %p77
      %p79 = scmp.ne.s32.totalorder %s68, %s69
      %p80 = scmp.eq.s32.totalorder %s22, 0
      %p81 = por %p79, %p80
      %p82 = scmp.ne.s32.totalorder %s68, %s69
      %p83 = scmp.eq.s32.totalorder %s23, 3
      %p84 = por %p82, %p83
      %p86 = scmp.ne.s32.totalorder %s69, %s85
      %p87 = scmp.eq.s32.totalorder %s23, 0
      %p88 = por %p86, %p87
      %s89 = ssub.s32 %s24, %s36
      %s90 = ssub.s32 %s25, %s32
      %s91 = sor.u32 %s89, %s90
      %p92 = scmp.eq.s32.totalorder %s91, 0
      %s94 = sadd.s32 %s93, 1
      %s95 = scalar_select %p92, %s93, %s94
      %p98 = pneg %p92
      %p99 = scmp.eq.s32.totalorder %s17, 3
      %p100 = por %p98, %p99
      %p101 = scmp.ne.s32.totalorder %s93, %s96
      %p102 = scmp.eq.s32.totalorder %s17, 0
      %p103 = por %p101, %p102
      %p104 = scmp.ne.s32.totalorder %s93, %s96
      %p105 = scmp.eq.s32.totalorder %s22, 3
      %p106 = por %p104, %p105
      %p107 = scmp.ne.s32.totalorder %s96, %s97
      %p108 = scmp.eq.s32.totalorder %s22, 0
      %p109 = por %p107, %p108
      %p110 = scmp.ne.s32.totalorder %s96, %s97
      %p111 = scmp.eq.s32.totalorder %s23, 3
      %p112 = por %p110, %p111
      %p114 = scmp.ne.s32.totalorder %s97, %s113
      %p115 = scmp.eq.s32.totalorder %s23, 0
      %p116 = por %p114, %p115
      %p117 = scmp.le.s32.totalorder 1, %s17
      %p118 = scmp.lt.s32.totalorder %s17, 5
      %p119 = pnand %p117, %p118
      %p120 = pneg %p119
      // Predicated region
      $region9: #{_lambda_.3} parent=5 // pred_check
        _
      $region10: #{_lambda_.3} parent=5 // pred_check_branch
        %122 = sbr.rel (%p119) target = $region12
      $region11: #{_lambda_.3} parent=5 // pred_region
        %s123 = ssub.s32 %s17, 1
      $region12: #{_lambda_.3} parent=5 // pred_fallthru
        _
      %p124 = scmp.lt.s32.totalorder %s17, 4
      // Predicated region
      $region13: #{_lambda_.3} parent=5 // pred_check
        %p125 = pneg %p124
      $region14: #{_lambda_.3} parent=5 // pred_check_branch
        %127 = sbr.rel (%p125) target = $region16
      $region15: #{_lambda_.3} parent=5 // pred_region
        // Predicated region
        $region17: #{_lambda_.3} parent=15 // pred_check
          %p128 = pneg %p49
        $region18: #{_lambda_.3} parent=15 // pred_check_branch
          %130 = sbr.rel (%p128) target = $region20
        $region19: #{_lambda_.3} parent=15 // pred_region
          %s131 = sand.u32 %s39, 1
          %s132 = scalar_lea.sflag [#allocation3], %s131
          %s133 = sand.u32 %s39, 1
          %s134 = smul.addr %s133, 16
          %s135 = scalar_lea.vmem [#allocation2], %s134
          %s137 = ssub.s32 256, 256
          %138 = vsyncadd %s132, %s137
          %s139 = smul.addr %s24, 4
          %s140 = smul.addr %s139, 64
          %s141 = scalar_lea.hbm %s0, %s140
          %s142 = sshll.u32 %s135, 4
          %s143 = int_to_ptr.vmem [resolvable:$true] %s142
          %148 = dma.hbm_to_vmem [thread:$0]  %s141, 256, %s143, %s132, 64, 64, 4
        $region20: #{_lambda_.3} parent=15 // pred_fallthru
          _
        // Predicated region
        $region21: #{_lambda_.3} parent=15 // pred_check
          %p149 = pneg %p75
        $region22: #{_lambda_.3} parent=15 // pred_check_branch
          %151 = sbr.rel (%p149) target = $region24
        $region23: #{_lambda_.3} parent=15 // pred_region
          %s152 = sand.u32 %s65, 1
          %s153 = scalar_lea.sflag [#allocation6], %s152
          %s154 = sand.u32 %s65, 1
          %s155 = smul.addr %s154, 112
          %s156 = scalar_lea.vmem [#allocation5], %s155
          %s157 = smul.u32 4, %s25
          %s159 = ssub.s32 1792, 1792
          %160 = vsyncadd %s153, %s159
          %s161 = smul.addr %s157, 64
          %s162 = scalar_lea.hbm %s1, %s161
          %s163 = sshll.u32 %s156, 4
          %s164 = int_to_ptr.vmem [resolvable:$true] %s163
          %169 = dma.hbm_to_vmem [thread:$0]  %s162, 1792, %s164, %s153, 512, 256, 16
        $region24: #{_lambda_.3} parent=15 // pred_fallthru
          _
      $region16: #{_lambda_.3} parent=5 // pred_fallthru
        _
      %p170 = scmp.le.s32.totalorder 1, %s17
      %p171 = scmp.lt.s32.totalorder %s17, 5
      %p172 = pnand %p170, %p171
      %p173 = pneg %p172
      // Predicated region
      $region25: #{_lambda_.3} parent=5 // pred_check
        _
      $region26: #{_lambda_.3} parent=5 // pred_check_branch
        %175 = sbr.rel (%p172) target = $region28
      $region27: #{_lambda_.3} parent=5 // pred_region
        %s176 = ssub.s32 %s17, 1
        %s177 = sand.u32 %s42, 1
        %s178 = scalar_lea.sflag [#allocation3], %s177
        %s179 = sand.u32 %s42, 1
        %s180 = smul.addr %s179, 16
        %s181 = scalar_lea.vmem [#allocation2], %s180
        // Predicated region
        $region29: #{_lambda_.3} parent=27 // pred_check
          %p182 = pneg %p55
        $region30: #{_lambda_.3} parent=27 // pred_check_branch
          %184 = sbr.rel (%p182) target = $region32
        $region31: #{_lambda_.3} parent=27 // pred_region
          %185 = dma.done %s178, 256
        $region32: #{_lambda_.3} parent=27 // pred_fallthru
          _
        %s186 = sand.u32 %s68, 1
        %s187 = scalar_lea.sflag [#allocation6], %s186
        %s188 = sand.u32 %s68, 1
        %s189 = smul.addr %s188, 112
        %s190 = scalar_lea.vmem [#allocation5], %s189
        // Predicated region
        $region33: #{_lambda_.3} parent=27 // pred_check
          %p191 = pneg %p81
        $region34: #{_lambda_.3} parent=27 // pred_check_branch
          %193 = sbr.rel (%p191) target = $region36
        $region35: #{_lambda_.3} parent=27 // pred_region
          %194 = dma.done %s187, 1792
        $region36: #{_lambda_.3} parent=27 // pred_fallthru
          _
        %s195 = sand.u32 %s42, 1
        %s196 = scalar_lea.sflag [#allocation3], %s195
        %s197 = sand.u32 %s42, 1
        %s198 = smul.addr %s197, 16
        %s199 = scalar_lea.vmem [#allocation2], %s198
        %p200 = pneg %p55
        %p201 = pneg %p52
        %s202 = sand.u32 %s68, 1
        %s203 = scalar_lea.sflag [#allocation6], %s202
        %s204 = sand.u32 %s68, 1
        %s205 = smul.addr %s204, 112
        %s206 = scalar_lea.vmem [#allocation5], %s205
        %p207 = pneg %p81
        %p208 = pneg %p78
        %p209 = pneg %p109
        %p210 = pneg %p106
        %s211 = sand.u32 %s96, 1
        %s212 = scalar_lea.sflag [#allocation4], %s211
        %s213 = sand.u32 %s96, 1
        %s214 = smul.addr %s213, 64
        %s215 = scalar_lea.vmem [#allocation7], %s214
        %s216 = smul.u32 4, %s27
        %s217 = smul.u32 4, %s27
        %v219 = vld [vmem:[%s181] sm:$0xf]
        %v220 = vld [vmem:[%s181 + $0x4] sm:$0xf]
        %v221 = vld [vmem:[%s181 + $0x8] sm:$0xf]
        %v222 = vld [vmem:[%s181 + $0xc] sm:$0xf]
        %v223 = vld [vmem:[%s190] sm:$0xff]
        %v224 = vld [vmem:[%s190 + $0x8] sm:$0xff]
        %v225 = vld [vmem:[%s190 + $0x10] sm:$0xff]
        %v226 = vld [vmem:[%s190 + $0x18] sm:$0xff]
        %v227 = vld [vmem:[%s190 + $0x20] sm:$0xff]
        %v228 = vld [vmem:[%s190 + $0x28] sm:$0xff]
        %v229 = vld [vmem:[%s190 + $0x30] sm:$0xff]
        %v230 = vld [vmem:[%s190 + $0x38] sm:$0xff]
        %v231 = vld [vmem:[%s190 + $0x40] sm:$0xff]
        %v232 = vld [vmem:[%s190 + $0x48] sm:$0xff]
        %v233 = vld [vmem:[%s190 + $0x50] sm:$0xff]
        %v234 = vld [vmem:[%s190 + $0x58] sm:$0xff]
        %v235 = vld [vmem:[%s190 + $0x60] sm:$0x11]
        %v236 = vld [vmem:[%s190 + $0x68] sm:$0x11]
        %v241 = vunpack.c.l.b16 %v219
        %v242 = vunpack.c.l.b16 %v220
        %v243 = vunpack.c.l.b16 %v221
        %v244 = vunpack.c.l.b16 %v222
        %v245 = vpack.c.b16 %v242, %v241
        %v246 = vpack.c.b16 %v244, %v243
        %v261 = vunpack.c.l.b16 %v223
        %v262 = vunpack.c.h.b16 %v223
        %v263 = vunpack.c.l.b16 %v224
        %v264 = vunpack.c.h.b16 %v224
        %v265 = vunpack.c.l.b16 %v225
        %v266 = vunpack.c.h.b16 %v225
        %v267 = vunpack.c.l.b16 %v226
        %v268 = vunpack.c.h.b16 %v226
        %v269 = vunpack.c.l.b16 %v227
        %v270 = vunpack.c.h.b16 %v227
        %v271 = vunpack.c.l.b16 %v228
        %v272 = vunpack.c.h.b16 %v228
        %v273 = vunpack.c.l.b16 %v229
        %v274 = vunpack.c.h.b16 %v229
        %v275 = vunpack.c.l.b16 %v230
        %v276 = vunpack.c.h.b16 %v230
        %v277 = vunpack.c.l.b16 %v231
        %v278 = vunpack.c.h.b16 %v231
        %v279 = vunpack.c.l.b16 %v232
        %v280 = vunpack.c.h.b16 %v232
        %v281 = vunpack.c.l.b16 %v233
        %v282 = vunpack.c.h.b16 %v233
        %v283 = vunpack.c.l.b16 %v234
        %v284 = vunpack.c.h.b16 %v234
        %v285 = vunpack.c.l.b16 %v235
        %v286 = vunpack.c.h.b16 %v235
        %v287 = vunpack.c.l.b16 %v236
        %v288 = vunpack.c.h.b16 %v236
        %v289 = vpack.c.b16 %v265, %v261
        %v290 = vpack.c.b16 %v266, %v262
        %v291 = vpack.c.b16 %v267, %v263
        %v292 = vpack.c.b16 %v268, %v264
        %v293 = vpack.c.b16 %v273, %v269
        %v294 = vpack.c.b16 %v274, %v270
        %v295 = vpack.c.b16 %v275, %v271
        %v296 = vpack.c.b16 %v276, %v272
        %v297 = vpack.c.b16 %v281, %v277
        %v298 = vpack.c.b16 %v282, %v278
        %v299 = vpack.c.b16 %v283, %v279
        %v300 = vpack.c.b16 %v284, %v280
        %v301 = vpack.c.b16 %v285, %v285
        %v302 = vpack.c.b16 %v286, %v286
        %v303 = vpack.c.b16 %v287, %v287
        %v304 = vpack.c.b16 %v288, %v288
        %vm317 = vcmask 408576
        %v319 = vsel %vm317, %v245, 0
        %v322 = vsel %vm317, %v246, 0
        %vm324 = vcmask 1040384
        %v326 = vsel %vm324, %v301, 0
        %v329 = vsel %vm324, %v302, 0
        %v332 = vsel %vm324, %v303, 0
        %v335 = vsel %vm324, %v304, 0
        %337 = vmatprep.subr.bf16.mxu0 %v290
        %338 = vmatpush1.bf16.msra.mxu0 %v289
        %339 = vmatprep.subr.bf16.mxu0 %v294
        %340 = vmatpush1.bf16.msra.mxu0 %v293
        %341 = vmatprep.subr.bf16.mxu0 %v298
        %342 = vmatpush1.bf16.msra.mxu0 %v297
        %343 = vmatprep.subr.bf16.mxu0 %v329
        %344 = vmatpush1.bf16.msra.mxu0 %v326
        %345 = vmatprep.subr.bf16.mxu0 0
        %346 = vmatpush1.bf16.msra.mxu0 0
        %347 = vmatprep.subr.bf16.mxu0 0
        %348 = vmatpush1.bf16.msra.mxu0 0
        %349 = vmatprep.subr.bf16.mxu0 0
        %350 = vmatpush1.bf16.msra.mxu0 0
        %351 = vmatprep.subr.bf16.mxu0 0
        %352 = vmatpush1.bf16.msra.mxu0 0
        %353 = vmatprep.subr.bf16.mxu0 0
        %354 = vmatpush1.bf16.msra.mxu0 0
        %355 = vmatprep.subr.bf16.mxu0 0
        %356 = vmatpush1.bf16.msra.mxu0 0
        %357 = vmatprep.subr.bf16.mxu0 0
        %358 = vmatpush1.bf16.msra.mxu0 0
        %359 = vmatprep.subr.bf16.mxu0 0
        %360 = vmatpush1.bf16.msra.mxu0 0
        %361 = vmatprep.subr.bf16.mxu0 0
        %362 = vmatpush1.bf16.msra.mxu0 0
        %363 = vmatprep.subr.bf16.mxu0 0
        %364 = vmatpush1.bf16.msra.mxu0 0
        %365 = vmatprep.subr.bf16.mxu0 0
        %366 = vmatpush1.bf16.msra.mxu0 0
        %367 = vmatprep.subr.bf16.mxu0 0
        %368 = vmatpush1.bf16.msra.mxu0 0
        %369 = vmatprep.mubr.bf16.mxu0 0
        %370 = vmatmul.mubr.bf16.gmra.mrb[0].mxu0 %v319
        %v371 = vpop.f32.mrb[0].mxu0
        %v372 = vadd.f32 0.0, %v371
        %v373 = vpop.f32.mrb[0].mxu0
        %v374 = vadd.f32 0.0, %v373
        %v375 = vpop.f32.mrb[0].mxu0
        %v376 = vadd.f32 0.0, %v375
        %v377 = vpop.f32.mrb[0].mxu0
        %v378 = vadd.f32 0.0, %v377
        %379 = vmatprep.mubr.bf16.mxu0 0
        %380 = vmatmul.mubr.bf16.gmra.mrb[0].mxu0 %v322
        %v381 = vpop.f32.mrb[0].mxu0
        %v382 = vadd.f32 0.0, %v381
        %v383 = vpop.f32.mrb[0].mxu0
        %v384 = vadd.f32 0.0, %v383
        %v385 = vpop.f32.mrb[0].mxu0
        %v386 = vadd.f32 0.0, %v385
        %v387 = vpop.f32.mrb[0].mxu0
        %v388 = vadd.f32 0.0, %v387
        %389 = vdwg.mxu0
        %390 = vmatprep.subr.bf16.mxu0 %v292
        %391 = vmatpush1.bf16.msra.mxu0 %v291
        %392 = vmatprep.subr.bf16.mxu0 %v296
        %393 = vmatpush1.bf16.msra.mxu0 %v295
        %394 = vmatprep.subr.bf16.mxu0 %v300
        %395 = vmatpush1.bf16.msra.mxu0 %v299
        %396 = vmatprep.subr.bf16.mxu0 %v335
        %397 = vmatpush1.bf16.msra.mxu0 %v332
        %398 = vmatprep.subr.bf16.mxu0 0
        %399 = vmatpush1.bf16.msra.mxu0 0
        %400 = vmatprep.subr.bf16.mxu0 0
        %401 = vmatpush1.bf16.msra.mxu0 0
        %402 = vmatprep.subr.bf16.mxu0 0
        %403 = vmatpush1.bf16.msra.mxu0 0
        %404 = vmatprep.subr.bf16.mxu0 0
        %405 = vmatpush1.bf16.msra.mxu0 0
        %406 = vmatprep.subr.bf16.mxu0 0
        %407 = vmatpush1.bf16.msra.mxu0 0
        %408 = vmatprep.subr.bf16.mxu0 0
        %409 = vmatpush1.bf16.msra.mxu0 0
        %410 = vmatprep.subr.bf16.mxu0 0
        %411 = vmatpush1.bf16.msra.mxu0 0
        %412 = vmatprep.subr.bf16.mxu0 0
        %413 = vmatpush1.bf16.msra.mxu0 0
        %414 = vmatprep.subr.bf16.mxu0 0
        %415 = vmatpush1.bf16.msra.mxu0 0
        %416 = vmatprep.subr.bf16.mxu0 0
        %417 = vmatpush1.bf16.msra.mxu0 0
        %418 = vmatprep.subr.bf16.mxu0 0
        %419 = vmatpush1.bf16.msra.mxu0 0
        %420 = vmatprep.subr.bf16.mxu0 0
        %421 = vmatpush1.bf16.msra.mxu0 0
        %422 = vmatprep.mubr.bf16.mxu0 0
        %423 = vmatmul.mubr.bf16.gmra.mrb[0].mxu0 %v319
        %v424 = vpop.f32.mrb[0].mxu0
        %v425 = vadd.f32 0.0, %v424
        %v426 = vpop.f32.mrb[0].mxu0
        %v427 = vadd.f32 0.0, %v426
        %v428 = vpop.f32.mrb[0].mxu0
        %v429 = vadd.f32 0.0, %v428
        %v430 = vpop.f32.mrb[0].mxu0
        %v431 = vadd.f32 0.0, %v430
        %432 = vmatprep.mubr.bf16.mxu0 0
        %433 = vmatmul.mubr.bf16.gmra.mrb[0].mxu0 %v322
        %v434 = vpop.f32.mrb[0].mxu0
        %v435 = vadd.f32 0.0, %v434
        %v436 = vpop.f32.mrb[0].mxu0
        %v437 = vadd.f32 0.0, %v436
        %v438 = vpop.f32.mrb[0].mxu0
        %v439 = vadd.f32 0.0, %v438
        %v440 = vpop.f32.mrb[0].mxu0
        %v441 = vadd.f32 0.0, %v440
        %442 = vdwg.mxu0
        %v443 = vpack.c.bf16 %v376, %v372
        %v444 = vpack.c.bf16 %v378, %v374
        %v445 = vpack.c.bf16 %v429, %v425
        %v446 = vpack.c.bf16 %v431, %v427
        %v447 = vpack.c.bf16 %v386, %v382
        %v448 = vpack.c.bf16 %v388, %v384
        %v449 = vpack.c.bf16 %v439, %v435
        %v450 = vpack.c.bf16 %v441, %v437
        %v459 = vunpack.c.l.b16 %v443
        %v460 = vunpack.c.l.b16 %v444
        %v461 = vunpack.c.l.b16 %v445
        %v462 = vunpack.c.l.b16 %v446
        %v463 = vunpack.c.h.b16 %v443
        %v464 = vunpack.c.h.b16 %v444
        %v465 = vunpack.c.h.b16 %v445
        %v466 = vunpack.c.h.b16 %v446
        %v467 = vunpack.c.l.b16 %v447
        %v468 = vunpack.c.l.b16 %v448
        %v469 = vunpack.c.l.b16 %v449
        %v470 = vunpack.c.l.b16 %v450
        %v471 = vunpack.c.h.b16 %v447
        %v472 = vunpack.c.h.b16 %v448
        %v473 = vunpack.c.h.b16 %v449
        %v474 = vunpack.c.h.b16 %v450
        %v475 = vpack.c.b16 %v460, %v459
        %v476 = vpack.c.b16 %v462, %v461
        %v477 = vpack.c.b16 %v464, %v463
        %v478 = vpack.c.b16 %v466, %v465
        %v479 = vpack.c.b16 %v468, %v467
        %v480 = vpack.c.b16 %v470, %v469
        %v481 = vpack.c.b16 %v472, %v471
        %v482 = vpack.c.b16 %v474, %v473
        %491 = vst [vmem:[%s215] sm:$0xff] %v475
        %492 = vst [vmem:[%s215 + $0x8] sm:$0xff] %v476
        %493 = vst [vmem:[%s215 + $0x10] sm:$0xff] %v477
        %494 = vst [vmem:[%s215 + $0x18] sm:$0xff] %v478
        %495 = vst [vmem:[%s215 + $0x20] sm:$0xff] %v479
        %496 = vst [vmem:[%s215 + $0x28] sm:$0xff] %v480
        %497 = vst [vmem:[%s215 + $0x30] sm:$0xff] %v481
        %498 = vst [vmem:[%s215 + $0x38] sm:$0xff] %v482
        %s499 = sand.u32 %s96, 1
        %s500 = scalar_lea.sflag [#allocation4], %s499
        %s501 = sand.u32 %s96, 1
        %s502 = smul.addr %s501, 64
        %s503 = scalar_lea.vmem [#allocation7], %s502
        // Predicated region
        $region37: #{_lambda_.3} parent=27 // pred_check
          %p504 = pneg %p106
        $region38: #{_lambda_.3} parent=27 // pred_check_branch
          %506 = sbr.rel (%p504) target = $region40
        $region39: #{_lambda_.3} parent=27 // pred_region
          %s507 = smul.u32 4, %s27
          %s509 = ssub.s32 1024, 1024
          %510 = vsyncadd %s500, %s509
          %s511 = smul.addr %s26, 32
          %s512 = sadd.s32 %s507, %s511
          %s513 = smul.addr %s512, 64
          %s514 = scalar_lea.hbm %s2, %s513
          %s515 = sshll.u32 %s503, 4
          %s516 = int_to_ptr.vmem [resolvable:$true] %s515
          %521 = dma.vmem_to_hbm [thread:$0]  %s516, 1024, %s514, %s500, 256, 512, 16
        $region40: #{_lambda_.3} parent=27 // pred_fallthru
          _
      $region28: #{_lambda_.3} parent=5 // pred_fallthru
        _
      %p522 = scmp.le.s32.totalorder 2, %s17
      // Predicated region
      $region41: #{_lambda_.3} parent=5 // pred_check
        %p523 = pneg %p522
      $region42: #{_lambda_.3} parent=5 // pred_check_branch
        %525 = sbr.rel (%p523) target = $region44
      $region43: #{_lambda_.3} parent=5 // pred_region
        %s526 = ssub.s32 %s17, 2
        // Predicated region
        $region45: #{_lambda_.3} parent=43 // pred_check
          %p527 = pneg %p112
        $region46: #{_lambda_.3} parent=43 // pred_check_branch
          %529 = sbr.rel (%p527) target = $region48
        $region47: #{_lambda_.3} parent=43 // pred_region
          %s530 = sand.u32 %s97, 1
          %s531 = scalar_lea.sflag [#allocation4], %s530
          %s532 = sand.u32 %s97, 1
          %s533 = smul.addr %s532, 64
          %s534 = scalar_lea.vmem [#allocation7], %s533
          %535 = dma.done %s531, 1024
        $region48: #{_lambda_.3} parent=43 // pred_fallthru
          _
      $region44: #{_lambda_.3} parent=5 // pred_fallthru
        _
    $region6: #{_lambda_.3} parent=1 // loop_footer
      %s21 = sadd.s32 1, %s17
    $region7: #{_lambda_.3} parent=1 // loop_footer_branch
      %16 = sbr.rel target = $region3
    $region8: #{_lambda_.3} parent=1 // loop_exit
      _
    %536 = vsyncpa [#allocation3], 1
    %s537 = scalar_lea.sflag [#allocation3], 1
    %538 = vsyncpa %s537, 1
    %539 = vsyncpa [#allocation6], 1
    %s540 = scalar_lea.sflag [#allocation6], 1
    %541 = vsyncpa %s540, 1
    %542 = vsyncpa [#allocation4], 1
    %s543 = scalar_lea.sflag [#allocation4], 1
    %544 = vsyncpa %s543, 1

// kernel: _lambda_.2
$region0: #{_lambda_.2}
  #allocation0 [shape = 'u32[]', space=smem, size = 0x4, offset = 0x4, fixed_abs, tag = 'smem constant byte address 0x4 - core index']
  #allocation1 [shape = 'u32[144,128]{1,0:T(1,128)}', space=vmem, size = 0x12000, scoped, tag = 'internal scratch']
  #allocation2 [shape = 'f32[4,50]{1,0:T(4,128)}', space=vmem, size = 0x800, scoped, tag = 'scratch operand']
  %s0 = inlined_call_operand.hbm [shape: f32[2,4,1024], index: 0, kind: input, shape index: {}]
  %s1 = inlined_call_operand.hbm [shape: bf16[1024,50], index: 1, kind: input, shape index: {}]
  %s2 = inlined_call_operand.hbm [shape: bf16[32,4], index: 2, kind: input, shape index: {}]
  %s3 = inlined_call_operand.hbm [shape: f32[32,1], index: 3, kind: input, shape index: {}]
  %s4 = inlined_call_operand.hbm [shape: bf16[2,32,50], index: 4, kind: output, shape index: {}]
  %s5 = sld [smem:[#allocation0]]
  $region73: #{_lambda_.2} parent=0
    _
  %s7 = ssub.s32 1, %s5
  %s8 = scalar_select 0, %s7, %s5
  $region1: #{_lambda_.2} parent=0
    #allocation3 [shape = 'u8[16384]{0}', space=vmem, size = 0x4000, scoped, tag = 'input window, operand 0']
    #allocation4 [shape = 's32[2]{0}', space=sflag, size = 0x8, scoped, tag = 'scoped memory for _lambda_.2']
    #allocation5 [shape = 's32[2]{0}', space=sflag, size = 0x8, scoped, tag = 'scoped memory for _lambda_.2']
    #allocation6 [shape = 'u8[262144]{0}', space=vmem, size = 0x40000, scoped, tag = 'input window, operand 1']
    #allocation7 [shape = 's32[2]{0}', space=sflag, size = 0x8, scoped, tag = 'scoped memory for _lambda_.2']
    #allocation8 [shape = 'u8[8192]{0}', space=vmem, size = 0x2000, scoped, tag = 'input window, operand 2, single buffered']
    #allocation9 [shape = 'u8[16384]{0}', space=vmem, size = 0x4000, scoped, tag = 'input window, operand 3, single buffered']
    #allocation10 [shape = 's32[1]{0}', space=sflag, size = 0x4, scoped, tag = 'scoped memory for _lambda_.2']
    #allocation11 [shape = 'u8[16384]{0}', space=vmem, size = 0x4000, scoped, tag = 'output window, operand 0']
    %9 = vsyncpa [#allocation4], 0
    %s10 = scalar_lea.sflag [#allocation4], 1
    %11 = vsyncpa %s10, 0
    %12 = vsyncpa [#allocation7], 0
    %s13 = scalar_lea.sflag [#allocation7], 1
    %14 = vsyncpa %s13, 0
    %15 = vsyncpa [#allocation10], 0
    %16 = vsyncpa [#allocation5], 0
    %s17 = scalar_lea.sflag [#allocation5], 1
    %18 = vsyncpa %s17, 0
    loop: start=0, step=1, limit=6
    $region2: #{_lambda_.2} parent=1 // loop_pre_header
      _
    $region3: #{_lambda_.2} parent=1 // loop_header
      %s20 = sphi 0, %s24
      %p21 = scmp.ge.s32.totalorder %s20, 6
      %s27 = sphi 0, %s39
      %s28 = sphi 0, %s35
      %s29 = sphi 0, %s27
      %s30 = sphi 0, %s28
      %s31 = sphi 0, %s29
      %s32 = sphi 0, %s30
      %s44 = sphi 0, %s46
      %s47 = sphi 0, %s44
      %s48 = sphi 0, %s47
      %s64 = sphi 0, %s48
      %s70 = sphi 0, %s72
      %s73 = sphi 0, %s70
      %s74 = sphi 0, %s73
      %s90 = sphi 0, %s74
      %s94 = sphi 0, %s94
      %s96 = sphi 0, %s94
      %s97 = sphi 0, %s96
      %s111 = sphi 0, %s97
      %s115 = sphi 0, %s115
      %s117 = sphi 0, %s115
      %s118 = sphi 0, %s117
      %s132 = sphi 0, %s118
      %s138 = sphi 0, %s140
      %s141 = sphi 0, %s138
      %s142 = sphi 0, %s141
      %s158 = sphi 0, %s142
    $region4: #{_lambda_.2} parent=1 // loop_header_branch
      %23 = sbr.rel (%p21) target = $region8
    $region5: #{_lambda_.2} parent=1 // loop_body
      %s25 = ssub.s32 %s20, 1
      %s26 = ssub.s32 %s20, 2
      %s33 = sadd.s32 1, %s28
      %p34 = scmp.ge.s32.totalorder %s33, 2
      %s35 = scalar_select %p34, 0, %s33
      %s36 = sadd.s32 1, %s27
      %s37 = scalar_select %p34, %s36, %s27
      %p38 = scmp.ge.s32.totalorder %s37, 2
      %s39 = scalar_select %p38, 0, %s37
      %s40 = ssub.s32 %s27, %s39
      %s41 = ssub.s32 %s28, %s35
      %s42 = sor.u32 %s40, %s41
      %p43 = scmp.eq.s32.totalorder %s42, 0
      %s45 = sadd.s32 %s44, 1
      %s46 = scalar_select %p43, %s44, %s45
      %p49 = pneg %p43
      %p50 = scmp.eq.s32.totalorder %s20, 3
      %p51 = por %p49, %p50
      %p52 = scmp.ne.s32.totalorder %s44, %s47
      %p53 = scmp.eq.s32.totalorder %s20, 0
      %p54 = por %p52, %p53
      %p55 = scmp.ne.s32.totalorder %s44, %s47
      %p56 = scmp.eq.s32.totalorder %s25, 3
      %p57 = por %p55, %p56
      %p58 = scmp.ne.s32.totalorder %s47, %s48
      %p59 = scmp.eq.s32.totalorder %s25, 0
      %p60 = por %p58, %p59
      %p61 = scmp.ne.s32.totalorder %s47, %s48
      %p62 = scmp.eq.s32.totalorder %s26, 3
      %p63 = por %p61, %p62
      %p65 = scmp.ne.s32.totalorder %s48, %s64
      %p66 = scmp.eq.s32.totalorder %s26, 0
      %p67 = por %p65, %p66
      %s68 = ssub.s32 %s28, %s35
      %p69 = scmp.eq.s32.totalorder %s68, 0
      %s71 = sadd.s32 %s70, 1
      %s72 = scalar_select %p69, %s70, %s71
      %p75 = pneg %p69
      %p76 = scmp.eq.s32.totalorder %s20, 3
      %p77 = por %p75, %p76
      %p78 = scmp.ne.s32.totalorder %s70, %s73
      %p79 = scmp.eq.s32.totalorder %s20, 0
      %p80 = por %p78, %p79
      %p81 = scmp.ne.s32.totalorder %s70, %s73
      %p82 = scmp.eq.s32.totalorder %s25, 3
      %p83 = por %p81, %p82
      %p84 = scmp.ne.s32.totalorder %s73, %s74
      %p85 = scmp.eq.s32.totalorder %s25, 0
      %p86 = por %p84, %p85
      %p87 = scmp.ne.s32.totalorder %s73, %s74
      %p88 = scmp.eq.s32.totalorder %s26, 3
      %p89 = por %p87, %p88
      %p91 = scmp.ne.s32.totalorder %s74, %s90
      %p92 = scmp.eq.s32.totalorder %s26, 0
      %p93 = por %p91, %p92
      %s95 = sadd.s32 %s94, 1
      %p98 = scmp.eq.s32.totalorder %s20, 3
      %p99 = scmp.ne.s32.totalorder %s94, %s96
      %p100 = scmp.eq.s32.totalorder %s20, 0
      %p101 = por %p99, %p100
      %p102 = scmp.ne.s32.totalorder %s94, %s96
      %p103 = scmp.eq.s32.totalorder %s25, 3
      %p104 = por %p102, %p103
      %p105 = scmp.ne.s32.totalorder %s96, %s97
      %p106 = scmp.eq.s32.totalorder %s25, 0
      %p107 = por %p105, %p106
      %p108 = scmp.ne.s32.totalorder %s96, %s97
      %p109 = scmp.eq.s32.totalorder %s26, 3
      %p110 = por %p108, %p109
      %p112 = scmp.ne.s32.totalorder %s97, %s111
      %p113 = scmp.eq.s32.totalorder %s26, 0
      %p114 = por %p112, %p113
      %s116 = sadd.s32 %s115, 1
      %p119 = scmp.eq.s32.totalorder %s20, 3
      %p120 = scmp.ne.s32.totalorder %s115, %s117
      %p121 = scmp.eq.s32.totalorder %s20, 0
      %p122 = por %p120, %p121
      %p123 = scmp.ne.s32.totalorder %s115, %s117
      %p124 = scmp.eq.s32.totalorder %s25, 3
      %p125 = por %p123, %p124
      %p126 = scmp.ne.s32.totalorder %s117, %s118
      %p127 = scmp.eq.s32.totalorder %s25, 0
      %p128 = por %p126, %p127
      %p129 = scmp.ne.s32.totalorder %s117, %s118
      %p130 = scmp.eq.s32.totalorder %s26, 3
      %p131 = por %p129, %p130
      %p133 = scmp.ne.s32.totalorder %s118, %s132
      %p134 = scmp.eq.s32.totalorder %s26, 0
      %p135 = por %p133, %p134
      %s136 = ssub.s32 %s27, %s39
      %p137 = scmp.eq.s32.totalorder %s136, 0
      %s139 = sadd.s32 %s138, 1
      %s140 = scalar_select %p137, %s138, %s139
      %p143 = pneg %p137
      %p144 = scmp.eq.s32.totalorder %s20, 3
      %p145 = por %p143, %p144
      %p146 = scmp.ne.s32.totalorder %s138, %s141
      %p147 = scmp.eq.s32.totalorder %s20, 0
      %p148 = por %p146, %p147
      %p149 = scmp.ne.s32.totalorder %s138, %s141
      %p150 = scmp.eq.s32.totalorder %s25, 3
      %p151 = por %p149, %p150
      %p152 = scmp.ne.s32.totalorder %s141, %s142
      %p153 = scmp.eq.s32.totalorder %s25, 0
      %p154 = por %p152, %p153
      %p155 = scmp.ne.s32.totalorder %s141, %s142
      %p156 = scmp.eq.s32.totalorder %s26, 3
      %p157 = por %p155, %p156
      %p159 = scmp.ne.s32.totalorder %s142, %s158
      %p160 = scmp.eq.s32.totalorder %s26, 0
      %p161 = por %p159, %p160
      %p162 = scmp.le.s32.totalorder 1, %s20
      %p163 = scmp.lt.s32.totalorder %s20, 5
      %p164 = pnand %p162, %p163
      %p165 = pneg %p164
      // Predicated region
      $region9: #{_lambda_.2} parent=5 // pred_check
        _
      $region10: #{_lambda_.2} parent=5 // pred_check_branch
        %167 = sbr.rel (%p164) target = $region12
      $region11: #{_lambda_.2} parent=5 // pred_region
        %s168 = ssub.s32 %s20, 1
        // Predicated region
        $region13: #{_lambda_.2} parent=11 // pred_check
          %p169 = pneg %p107
        $region14: #{_lambda_.2} parent=11 // pred_check_branch
          %171 = sbr.rel (%p169) target = $region16
        $region15: #{_lambda_.2} parent=11 // pred_region
          %s173 = ssub.s32 256, 256
          %174 = vsyncadd [#allocation7], %s173
          %s175 = sshll.u32 [#allocation8], 4
          %s176 = int_to_ptr.vmem [resolvable:$true] %s175
          %181 = dma.hbm_to_vmem [thread:$0]  %s2, 256, %s176, [#allocation7], 64, 64, 4
        $region16: #{_lambda_.2} parent=11 // pred_fallthru
          _
        // Predicated region
        $region17: #{_lambda_.2} parent=11 // pred_check
          %p182 = pneg %p128
        $region18: #{_lambda_.2} parent=11 // pred_check_branch
          %184 = sbr.rel (%p182) target = $region20
        $region19: #{_lambda_.2} parent=11 // pred_region
          %s186 = ssub.s32 512, 512
          %187 = vsyncadd [#allocation10], %s186
          %s188 = sshll.u32 [#allocation9], 4
          %s189 = int_to_ptr.vmem [resolvable:$true] %s188
          %194 = dma.hbm_to_vmem [thread:$0]  %s3, 512, %s189, [#allocation10], 128, 128, 8
        $region20: #{_lambda_.2} parent=11 // pred_fallthru
          _
      $region12: #{_lambda_.2} parent=5 // pred_fallthru
        _
      %p195 = scmp.lt.s32.totalorder %s20, 4
      // Predicated region
      $region21: #{_lambda_.2} parent=5 // pred_check
        %p196 = pneg %p195
      $region22: #{_lambda_.2} parent=5 // pred_check_branch
        %198 = sbr.rel (%p196) target = $region24
      $region23: #{_lambda_.2} parent=5 // pred_region
        // Predicated region
        $region25: #{_lambda_.2} parent=23 // pred_check
          %p199 = pneg %p54
        $region26: #{_lambda_.2} parent=23 // pred_check_branch
          %201 = sbr.rel (%p199) target = $region28
        $region27: #{_lambda_.2} parent=23 // pred_region
          %s202 = sand.u32 %s44, 1
          %s203 = scalar_lea.sflag [#allocation4], %s202
          %s204 = sand.u32 %s44, 1
          %s205 = smul.addr %s204, 16
          %s206 = scalar_lea.vmem [#allocation3], %s205
          %s207 = smul.u32 4, %s28
          %s209 = ssub.s32 256, 256
          %210 = vsyncadd %s203, %s209
          %s211 = smul.addr %s27, 8
          %s212 = sadd.s32 %s207, %s211
          %s213 = smul.addr %s212, 64
          %s214 = scalar_lea.hbm %s0, %s213
          %s216 = sshll.u32 %s206, 4
          %s217 = int_to_ptr.vmem [resolvable:$true] %s216
          %219 = dma.hbm_to_vmem [thread:$0]  %s214, 256, %s217, %s203
        $region28: #{_lambda_.2} parent=23 // pred_fallthru
          _
        // Predicated region
        $region29: #{_lambda_.2} parent=23 // pred_check
          %p220 = pneg %p80
        $region30: #{_lambda_.2} parent=23 // pred_check_branch
          %222 = sbr.rel (%p220) target = $region32
        $region31: #{_lambda_.2} parent=23 // pred_region
          %s223 = sand.u32 %s20, 1
          %s224 = scalar_lea.sflag [#allocation7], %s223
          %s225 = sand.u32 %s70, 1
          %s226 = smul.addr %s225, 256
          %s227 = scalar_lea.vmem [#allocation6], %s226
          %s228 = smul.u32 64, %s28
          %s230 = ssub.s32 4096, 4096
          %231 = vsyncadd %s224, %s230
          %s232 = smul.addr %s228, 64
          %s233 = scalar_lea.hbm %s1, %s232
          %s234 = sshll.u32 %s227, 4
          %s235 = int_to_ptr.vmem [resolvable:$true] %s234
          %240 = dma.hbm_to_vmem [thread:$0]  %s233, 4096, %s235, %s224, 64, 64, 4
        $region32: #{_lambda_.2} parent=23 // pred_fallthru
          _
      $region24: #{_lambda_.2} parent=5 // pred_fallthru
        _
      %p241 = scmp.le.s32.totalorder 1, %s20
      %p242 = scmp.lt.s32.totalorder %s20, 5
      %p243 = pnand %p241, %p242
      %p244 = pneg %p243
      // Predicated region
      $region33: #{_lambda_.2} parent=5 // pred_check
        _
      $region34: #{_lambda_.2} parent=5 // pred_check_branch
        %246 = sbr.rel (%p243) target = $region36
      $region35: #{_lambda_.2} parent=5 // pred_region
        %s247 = ssub.s32 %s20, 1
        %s248 = sand.u32 %s47, 1
        %s249 = scalar_lea.sflag [#allocation4], %s248
        %s250 = sand.u32 %s47, 1
        %s251 = smul.addr %s250, 16
        %s252 = scalar_lea.vmem [#allocation3], %s251
        // Predicated region
        $region37: #{_lambda_.2} parent=35 // pred_check
          %p253 = pneg %p60
        $region38: #{_lambda_.2} parent=35 // pred_check_branch
          %255 = sbr.rel (%p253) target = $region40
        $region39: #{_lambda_.2} parent=35 // pred_region
          %256 = dma.done %s249, 256
        $region40: #{_lambda_.2} parent=35 // pred_fallthru
          _
        %s257 = sand.u32 %s25, 1
        %s258 = scalar_lea.sflag [#allocation7], %s257
        %s259 = sand.u32 %s73, 1
        %s260 = smul.addr %s259, 256
        %s261 = scalar_lea.vmem [#allocation6], %s260
        // Predicated region
        $region41: #{_lambda_.2} parent=35 // pred_check
          %p262 = pneg %p86
        $region42: #{_lambda_.2} parent=35 // pred_check_branch
          %264 = sbr.rel (%p262) target = $region44
        $region43: #{_lambda_.2} parent=35 // pred_region
          %265 = dma.done %s258, 4096
        $region44: #{_lambda_.2} parent=35 // pred_fallthru
          _
        // Predicated region
        $region45: #{_lambda_.2} parent=35 // pred_check
          %p266 = pneg %p107
        $region46: #{_lambda_.2} parent=35 // pred_check_branch
          %268 = sbr.rel (%p266) target = $region48
        $region47: #{_lambda_.2} parent=35 // pred_region
          %269 = dma.done [#allocation7], 256
        $region48: #{_lambda_.2} parent=35 // pred_fallthru
          _
        // Predicated region
        $region49: #{_lambda_.2} parent=35 // pred_check
          %p270 = pneg %p128
        $region50: #{_lambda_.2} parent=35 // pred_check_branch
          %272 = sbr.rel (%p270) target = $region52
        $region51: #{_lambda_.2} parent=35 // pred_region
          %273 = dma.done [#allocation10], 512
        $region52: #{_lambda_.2} parent=35 // pred_fallthru
          _
        %s274 = sand.u32 %s47, 1
        %s275 = scalar_lea.sflag [#allocation4], %s274
        %s276 = sand.u32 %s47, 1
        %s277 = smul.addr %s276, 16
        %s278 = scalar_lea.vmem [#allocation3], %s277
        %p279 = pneg %p60
        %p280 = pneg %p57
        %s281 = sand.u32 %s25, 1
        %s282 = scalar_lea.sflag [#allocation7], %s281
        %s283 = sand.u32 %s73, 1
        %s284 = smul.addr %s283, 256
        %s285 = scalar_lea.vmem [#allocation6], %s284
        %p286 = pneg %p86
        %p287 = pneg %p83
        %p288 = pneg %p107
        %p289 = pneg %p104
        %p290 = pneg %p128
        %p291 = pneg %p125
        %p292 = pneg %p154
        %p293 = pneg %p151
        %s294 = sand.u32 %s141, 1
        %s295 = scalar_lea.sflag [#allocation5], %s294
        %s296 = sand.u32 %s141, 1
        %s297 = smul.addr %s296, 16
        %s298 = scalar_lea.vmem [#allocation11], %s297
        %s299 = smul.u32 4, %s30
        %s300 = smul.u32 64, %s30
        %p302 = scmp.eq.s32.totalorder %s30, 0
        // Predicated region
        $region53: #{_lambda_.2} parent=35 // pred_check
          %p303 = pneg %p302
        $region54: #{_lambda_.2} parent=35 // pred_check_branch
          %305 = sbr.rel (%p303) target = $region56
        $region55: #{_lambda_.2} parent=35 // pred_region
          %vm306 = vcmask 404480
          %307 = vst.msk [vmem:[#allocation2] sm:$0xf] %vm306, 0.0
        $region56: #{_lambda_.2} parent=35 // pred_fallthru
          _
        %v308 = vld [vmem:[%s252] sm:$0xff]
        %v309 = vld [vmem:[%s252 + $0x8] sm:$0xff]
        %v312 = vcombine.high %v308, %v308
        %v313 = vcombine.high %v309, %v309
        %v316 = vpack.c.bf16 %v308, %v308
        %v317 = vpack.c.bf16 %v312, %v312
        %v318 = vpack.c.bf16 %v309, %v309
        %v319 = vpack.c.bf16 %v313, %v313
        %v320 = vld [vmem:[#allocation2] sm:$0xf]
        %v321 = vld [vmem:[%s261] sm:$0xf]
        %v322 = vld [vmem:[%s261 + $0x4] sm:$0xf]
        %v323 = vld [vmem:[%s261 + $0x8] sm:$0xf]
        %v324 = vld [vmem:[%s261 + $0xc] sm:$0xf]
        %v325 = vld [vmem:[%s261 + $0x10] sm:$0xf]
        %v326 = vld [vmem:[%s261 + $0x14] sm:$0xf]
        %v327 = vld [vmem:[%s261 + $0x18] sm:$0xf]
        %v328 = vld [vmem:[%s261 + $0x1c] sm:$0xf]
        %v329 = vld [vmem:[%s261 + $0x20] sm:$0xf]
        %v330 = vld [vmem:[%s261 + $0x24] sm:$0xf]
        %v331 = vld [vmem:[%s261 + $0x28] sm:$0xf]
        %v332 = vld [vmem:[%s261 + $0x2c] sm:$0xf]
        %v333 = vld [vmem:[%s261 + $0x30] sm:$0xf]
        %v334 = vld [vmem:[%s261 + $0x34] sm:$0xf]
        %v335 = vld [vmem:[%s261 + $0x38] sm:$0xf]
        %v336 = vld [vmem:[%s261 + $0x3c] sm:$0xf]
        %v337 = vld [vmem:[%s261 + $0x40] sm:$0xf]
        %v338 = vld [vmem:[%s261 + $0x44] sm:$0xf]
        %v339 = vld [vmem:[%s261 + $0x48] sm:$0xf]
        %v340 = vld [vmem:[%s261 + $0x4c] sm:$0xf]
        %v341 = vld [vmem:[%s261 + $0x50] sm:$0xf]
        %v342 = vld [vmem:[%s261 + $0x54] sm:$0xf]
        %v343 = vld [vmem:[%s261 + $0x58] sm:$0xf]
        %v344 = vld [vmem:[%s261 + $0x5c] sm:$0xf]
        %v345 = vld [vmem:[%s261 + $0x60] sm:$0xf]
        %v346 = vld [vmem:[%s261 + $0x64] sm:$0xf]
        %v347 = vld [vmem:[%s261 + $0x68] sm:$0xf]
        %v348 = vld [vmem:[%s261 + $0x6c] sm:$0xf]
        %v349 = vld [vmem:[%s261 + $0x70] sm:$0xf]
        %v350 = vld [vmem:[%s261 + $0x74] sm:$0xf]
        %v351 = vld [vmem:[%s261 + $0x78] sm:$0xf]
        %v352 = vld [vmem:[%s261 + $0x7c] sm:$0xf]
        %v353 = vld [vmem:[%s261 + $0x80] sm:$0xf]
        %v354 = vld [vmem:[%s261 + $0x84] sm:$0xf]
        %v355 = vld [vmem:[%s261 + $0x88] sm:$0xf]
        %v356 = vld [vmem:[%s261 + $0x8c] sm:$0xf]
        %v357 = vld [vmem:[%s261 + $0x90] sm:$0xf]
        %v358 = vld [vmem:[%s261 + $0x94] sm:$0xf]
        %v359 = vld [vmem:[%s261 + $0x98] sm:$0xf]
        %v360 = vld [vmem:[%s261 + $0x9c] sm:$0xf]
        %v361 = vld [vmem:[%s261 + $0xa0] sm:$0xf]
        %v362 = vld [vmem:[%s261 + $0xa4] sm:$0xf]
        %v363 = vld [vmem:[%s261 + $0xa8] sm:$0xf]
        %v364 = vld [vmem:[%s261 + $0xac] sm:$0xf]
        %v365 = vld [vmem:[%s261 + $0xb0] sm:$0xf]
        %v366 = vld [vmem:[%s261 + $0xb4] sm:$0xf]
        %v367 = vld [vmem:[%s261 + $0xb8] sm:$0xf]
        %v368 = vld [vmem:[%s261 + $0xbc] sm:$0xf]
        %v369 = vld [vmem:[%s261 + $0xc0] sm:$0xf]
        %v370 = vld [vmem:[%s261 + $0xc4] sm:$0xf]
        %v371 = vld [vmem:[%s261 + $0xc8] sm:$0xf]
        %v372 = vld [vmem:[%s261 + $0xcc] sm:$0xf]
        %v373 = vld [vmem:[%s261 + $0xd0] sm:$0xf]
        %v374 = vld [vmem:[%s261 + $0xd4] sm:$0xf]
        %v375 = vld [vmem:[%s261 + $0xd8] sm:$0xf]
        %v376 = vld [vmem:[%s261 + $0xdc] sm:$0xf]
        %v377 = vld [vmem:[%s261 + $0xe0] sm:$0xf]
        %v378 = vld [vmem:[%s261 + $0xe4] sm:$0xf]
        %v379 = vld [vmem:[%s261 + $0xe8] sm:$0xf]
        %v380 = vld [vmem:[%s261 + $0xec] sm:$0xf]
        %v381 = vld [vmem:[%s261 + $0xf0] sm:$0xf]
        %v382 = vld [vmem:[%s261 + $0xf4] sm:$0xf]
        %v383 = vld [vmem:[%s261 + $0xf8] sm:$0xf]
        %v384 = vld [vmem:[%s261 + $0xfc] sm:$0xf]
        %v449 = vunpack.c.l.b16 %v321
        %v450 = vunpack.c.l.b16 %v322
        %v451 = vunpack.c.l.b16 %v323
        %v452 = vunpack.c.l.b16 %v324
        %v453 = vunpack.c.l.b16 %v325
        %v454 = vunpack.c.l.b16 %v326
        %v455 = vunpack.c.l.b16 %v327
        %v456 = vunpack.c.l.b16 %v328
        %v457 = vunpack.c.l.b16 %v329
        %v458 = vunpack.c.l.b16 %v330
        %v459 = vunpack.c.l.b16 %v331
        %v460 = vunpack.c.l.b16 %v332
        %v461 = vunpack.c.l.b16 %v333
        %v462 = vunpack.c.l.b16 %v334
        %v463 = vunpack.c.l.b16 %v335
        %v464 = vunpack.c.l.b16 %v336
        %v465 = vunpack.c.l.b16 %v337
        %v466 = vunpack.c.l.b16 %v338
        %v467 = vunpack.c.l.b16 %v339
        %v468 = vunpack.c.l.b16 %v340
        %v469 = vunpack.c.l.b16 %v341
        %v470 = vunpack.c.l.b16 %v342
        %v471 = vunpack.c.l.b16 %v343
        %v472 = vunpack.c.l.b16 %v344
        %v473 = vunpack.c.l.b16 %v345
        %v474 = vunpack.c.l.b16 %v346
        %v475 = vunpack.c.l.b16 %v347
        %v476 = vunpack.c.l.b16 %v348
        %v477 = vunpack.c.l.b16 %v349
        %v478 = vunpack.c.l.b16 %v350
        %v479 = vunpack.c.l.b16 %v351
        %v480 = vunpack.c.l.b16 %v352
        %v481 = vunpack.c.l.b16 %v353
        %v482 = vunpack.c.l.b16 %v354
        %v483 = vunpack.c.l.b16 %v355
        %v484 = vunpack.c.l.b16 %v356
        %v485 = vunpack.c.l.b16 %v357
        %v486 = vunpack.c.l.b16 %v358
        %v487 = vunpack.c.l.b16 %v359
        %v488 = vunpack.c.l.b16 %v360
        %v489 = vunpack.c.l.b16 %v361
        %v490 = vunpack.c.l.b16 %v362
        %v491 = vunpack.c.l.b16 %v363
        %v492 = vunpack.c.l.b16 %v364
        %v493 = vunpack.c.l.b16 %v365
        %v494 = vunpack.c.l.b16 %v366
        %v495 = vunpack.c.l.b16 %v367
        %v496 = vunpack.c.l.b16 %v368
        %v497 = vunpack.c.l.b16 %v369
        %v498 = vunpack.c.l.b16 %v370
        %v499 = vunpack.c.l.b16 %v371
        %v500 = vunpack.c.l.b16 %v372
        %v501 = vunpack.c.l.b16 %v373
        %v502 = vunpack.c.l.b16 %v374
        %v503 = vunpack.c.l.b16 %v375
        %v504 = vunpack.c.l.b16 %v376
        %v505 = vunpack.c.l.b16 %v377
        %v506 = vunpack.c.l.b16 %v378
        %v507 = vunpack.c.l.b16 %v379
        %v508 = vunpack.c.l.b16 %v380
        %v509 = vunpack.c.l.b16 %v381
        %v510 = vunpack.c.l.b16 %v382
        %v511 = vunpack.c.l.b16 %v383
        %v512 = vunpack.c.l.b16 %v384
        %v513 = vpack.c.b16 %v450, %v449
        %v514 = vpack.c.b16 %v452, %v451
        %v515 = vpack.c.b16 %v454, %v453
        %v516 = vpack.c.b16 %v456, %v455
        %v517 = vpack.c.b16 %v458, %v457
        %v518 = vpack.c.b16 %v460, %v459
        %v519 = vpack.c.b16 %v462, %v461
        %v520 = vpack.c.b16 %v464, %v463
        %v521 = vpack.c.b16 %v466, %v465
        %v522 = vpack.c.b16 %v468, %v467
        %v523 = vpack.c.b16 %v470, %v469
        %v524 = vpack.c.b16 %v472, %v471
        %v525 = vpack.c.b16 %v474, %v473
        %v526 = vpack.c.b16 %v476, %v475
        %v527 = vpack.c.b16 %v478, %v477
        %v528 = vpack.c.b16 %v480, %v479
        %v529 = vpack.c.b16 %v482, %v481
        %v530 = vpack.c.b16 %v484, %v483
        %v531 = vpack.c.b16 %v486, %v485
        %v532 = vpack.c.b16 %v488, %v487
        %v533 = vpack.c.b16 %v490, %v489
        %v534 = vpack.c.b16 %v492, %v491
        %v535 = vpack.c.b16 %v494, %v493
        %v536 = vpack.c.b16 %v496, %v495
        %v537 = vpack.c.b16 %v498, %v497
        %v538 = vpack.c.b16 %v500, %v499
        %v539 = vpack.c.b16 %v502, %v501
        %v540 = vpack.c.b16 %v504, %v503
        %v541 = vpack.c.b16 %v506, %v505
        %v542 = vpack.c.b16 %v508, %v507
        %v543 = vpack.c.b16 %v510, %v509
        %v544 = vpack.c.b16 %v512, %v511
        %577 = vmatprep.subr.bf16.mxu0 0
        %578 = vmatpush1.bf16.msra.mxu0 %v513
        %579 = vmatprep.subr.bf16.mxu0 0
        %580 = vmatpush1.bf16.msra.mxu0 %v514
        %581 = vmatprep.subr.bf16.mxu0 0
        %582 = vmatpush1.bf16.msra.mxu0 %v515
        %583 = vmatprep.subr.bf16.mxu0 0
        %584 = vmatpush1.bf16.msra.mxu0 %v516
        %585 = vmatprep.subr.bf16.mxu0 0
        %586 = vmatpush1.bf16.msra.mxu0 %v517
        %587 = vmatprep.subr.bf16.mxu0 0
        %588 = vmatpush1.bf16.msra.mxu0 %v518
        %589 = vmatprep.subr.bf16.mxu0 0
        %590 = vmatpush1.bf16.msra.mxu0 %v519
        %591 = vmatprep.subr.bf16.mxu0 0
        %592 = vmatpush1.bf16.msra.mxu0 %v520
        %593 = vmatprep.subr.bf16.mxu0 0
        %594 = vmatpush1.bf16.msra.mxu0 %v521
        %595 = vmatprep.subr.bf16.mxu0 0
        %596 = vmatpush1.bf16.msra.mxu0 %v522
        %597 = vmatprep.subr.bf16.mxu0 0
        %598 = vmatpush1.bf16.msra.mxu0 %v523
        %599 = vmatprep.subr.bf16.mxu0 0
        %600 = vmatpush1.bf16.msra.mxu0 %v524
        %601 = vmatprep.subr.bf16.mxu0 0
        %602 = vmatpush1.bf16.msra.mxu0 %v525
        %603 = vmatprep.subr.bf16.mxu0 0
        %604 = vmatpush1.bf16.msra.mxu0 %v526
        %605 = vmatprep.subr.bf16.mxu0 0
        %606 = vmatpush1.bf16.msra.mxu0 %v527
        %607 = vmatprep.subr.bf16.mxu0 0
        %608 = vmatpush1.bf16.msra.mxu0 %v528
        %609 = vmatprep.mubr.bf16.mxu0 %v317
        %610 = vmatmul.mubr.bf16.gmra.mrb[0].mxu0 %v316
        %v611 = vpop.f32.mrb[0].mxu0
        %v612 = vadd.f32 0.0, %v611
        %v613 = vpop.f32.mrb[0].mxu0
        %v614 = vpop.f32.mrb[0].mxu0
        %v615 = vpop.f32.mrb[0].mxu0
        %616 = vdwg.mxu0
        %617 = vmatprep.subr.bf16.mxu0 0
        %618 = vmatpush1.bf16.msra.mxu0 %v529
        %619 = vmatprep.subr.bf16.mxu0 0
        %620 = vmatpush1.bf16.msra.mxu0 %v530
        %621 = vmatprep.subr.bf16.mxu0 0
        %622 = vmatpush1.bf16.msra.mxu0 %v531
        %623 = vmatprep.subr.bf16.mxu0 0
        %624 = vmatpush1.bf16.msra.mxu0 %v532
        %625 = vmatprep.subr.bf16.mxu0 0
        %626 = vmatpush1.bf16.msra.mxu0 %v533
        %627 = vmatprep.subr.bf16.mxu0 0
        %628 = vmatpush1.bf16.msra.mxu0 %v534
        %629 = vmatprep.subr.bf16.mxu0 0
        %630 = vmatpush1.bf16.msra.mxu0 %v535
        %631 = vmatprep.subr.bf16.mxu0 0
        %632 = vmatpush1.bf16.msra.mxu0 %v536
        %633 = vmatprep.subr.bf16.mxu0 0
        %634 = vmatpush1.bf16.msra.mxu0 %v537
        %635 = vmatprep.subr.bf16.mxu0 0
        %636 = vmatpush1.bf16.msra.mxu0 %v538
        %637 = vmatprep.subr.bf16.mxu0 0
        %638 = vmatpush1.bf16.msra.mxu0 %v539
        %639 = vmatprep.subr.bf16.mxu0 0
        %640 = vmatpush1.bf16.msra.mxu0 %v540
        %641 = vmatprep.subr.bf16.mxu0 0
        %642 = vmatpush1.bf16.msra.mxu0 %v541
        %643 = vmatprep.subr.bf16.mxu0 0
        %644 = vmatpush1.bf16.msra.mxu0 %v542
        %645 = vmatprep.subr.bf16.mxu0 0
        %646 = vmatpush1.bf16.msra.mxu0 %v543
        %647 = vmatprep.subr.bf16.mxu0 0
        %648 = vmatpush1.bf16.msra.mxu0 %v544
        %649 = vmatprep.mubr.bf16.mxu0 %v319
        %650 = vmatmul.mubr.bf16.gmra.mrb[0].mxu0 %v318
        %v651 = vpop.f32.mrb[0].mxu0
        %v652 = vadd.f32 %v612, %v651
        %v653 = vpop.f32.mrb[0].mxu0
        %v654 = vpop.f32.mrb[0].mxu0
        %v655 = vpop.f32.mrb[0].mxu0
        %656 = vdwg.mxu0
        %v657 = vadd.f32 %v320, %v652
        %vm658 = vcmask 404480
        %659 = vst.msk [vmem:[#allocation2] sm:$0xf] %vm658, %v657
        %p660 = scmp.eq.s32.totalorder %s30, 1
        // Predicated region
        $region57: #{_lambda_.2} parent=35 // pred_check
          %p661 = pneg %p660
        $region58: #{_lambda_.2} parent=35 // pred_check_branch
          %663 = sbr.rel (%p661) target = $region60
        $region59: #{_lambda_.2} parent=35 // pred_region
          %v664 = vld [vmem:[#allocation8] sm:$0xf]
          %v665 = vld [vmem:[#allocation8 + $0x4] sm:$0xf]
          %v666 = vld [vmem:[#allocation8 + $0x8] sm:$0xf]
          %v667 = vld [vmem:[#allocation8 + $0xc] sm:$0xf]
          %v668 = vunpack.c.l.bf16 %v664
          %v669 = vunpack.c.l.bf16 %v665
          %v670 = vunpack.c.l.bf16 %v666
          %v671 = vunpack.c.l.bf16 %v667
          %v672 = vld [vmem:[#allocation2] sm:$0xf]
          %v673 = vld [vmem:[#allocation9] sm:$0xff]
          %v674 = vld [vmem:[#allocation9 + $0x8] sm:$0xff]
          %v675 = vld [vmem:[#allocation9 + $0x10] sm:$0xff]
          %v676 = vld [vmem:[#allocation9 + $0x18] sm:$0xff]
          %678 = vset.pattern.permute.xlu0 0
          %679 = vperm.xlu0 %678, %v673
          %v680 = vpop.permute.xlu0 %679
          %683 = vset.pattern.permute.xlu0 0
          %684 = vperm.xlu0 %683, %v674
          %v685 = vpop.permute.xlu0 %684
          %688 = vset.pattern.permute.xlu0 0
          %689 = vperm.xlu0 %688, %v675
          %v690 = vpop.permute.xlu0 %689
          %693 = vset.pattern.permute.xlu0 0
          %694 = vperm.xlu0 %693, %v676
          %v695 = vpop.permute.xlu0 %694
          %vm697 = vcmask 31744
          %v699 = vsel %vm697, %v668, 0
          %v702 = vsel %vm697, %v669, 0
          %v705 = vsel %vm697, %v670, 0
          %v708 = vsel %vm697, %v671, 0
          %vm710 = vcmask 1043456
          %v712 = vsel %vm710, %v672, 0
          %714 = vmatprep.subr.mxu0 0.0
          %715 = vmatpush1.msra.mxu0 %v712
          %716 = vmatprep.subr.mxu0 0.0
          %717 = vmatpush1.msra.mxu0 0.0
          %718 = vmatprep.subr.mxu0 0.0
          %719 = vmatpush1.msra.mxu0 0.0
          %720 = vmatprep.subr.mxu0 0.0
          %721 = vmatpush1.msra.mxu0 0.0
          %722 = vmatprep.subr.mxu0 0.0
          %723 = vmatpush1.msra.mxu0 0.0
          %724 = vmatprep.subr.mxu0 0.0
          %725 = vmatpush1.msra.mxu0 0.0
          %726 = vmatprep.subr.mxu0 0.0
          %727 = vmatpush1.msra.mxu0 0.0
          %728 = vmatprep.subr.mxu0 0.0
          %729 = vmatpush1.msra.mxu0 0.0
          %730 = vmatprep.subr.mxu0 0.0
          %731 = vmatpush1.msra.mxu0 0.0
          %732 = vmatprep.subr.mxu0 0.0
          %733 = vmatpush1.msra.mxu0 0.0
          %734 = vmatprep.subr.mxu0 0.0
          %735 = vmatpush1.msra.mxu0 0.0
          %736 = vmatprep.subr.mxu0 0.0
          %737 = vmatpush1.msra.mxu0 0.0
          %738 = vmatprep.subr.mxu0 0.0
          %739 = vmatpush1.msra.mxu0 0.0
          %740 = vmatprep.subr.mxu0 0.0
          %741 = vmatpush1.msra.mxu0 0.0
          %742 = vmatprep.subr.mxu0 0.0
          %743 = vmatpush1.msra.mxu0 0.0
          %744 = vmatprep.subr.mxu0 0.0
          %745 = vmatpush1.msra.mxu0 0.0
          %746 = vmatprep.subr.mxu0 0.0
          %747 = vmatpush1.msra.mxu0 0.0
          %748 = vmatprep.subr.mxu0 0.0
          %749 = vmatpush1.msra.mxu0 0.0
          %750 = vmatprep.subr.mxu0 0.0
          %751 = vmatpush1.msra.mxu0 0.0
          %752 = vmatprep.subr.mxu0 0.0
          %753 = vmatpush1.msra.mxu0 0.0
          %754 = vmatprep.subr.mxu0 0.0
          %755 = vmatpush1.msra.mxu0 0.0
          %756 = vmatprep.subr.mxu0 0.0
          %757 = vmatpush1.msra.mxu0 0.0
          %758 = vmatprep.subr.mxu0 0.0
          %759 = vmatpush1.msra.mxu0 0.0
          %760 = vmatprep.subr.mxu0 0.0
          %761 = vmatpush1.msra.mxu0 0.0
          %762 = vmatprep.subr.mxu0 0.0
          %763 = vmatpush1.msra.mxu0 0.0
          %764 = vmatprep.subr.mxu0 0.0
          %765 = vmatpush1.msra.mxu0 0.0
          %766 = vmatprep.subr.mxu0 0.0
          %767 = vmatpush1.msra.mxu0 0.0
          %768 = vmatprep.subr.mxu0 0.0
          %769 = vmatpush1.msra.mxu0 0.0
          %770 = vmatprep.subr.mxu0 0.0
          %771 = vmatpush1.msra.mxu0 0.0
          %772 = vmatprep.subr.mxu0 0.0
          %773 = vmatpush1.msra.mxu0 0.0
          %774 = vmatprep.subr.mxu0 0.0
          %775 = vmatpush1.msra.mxu0 0.0
          %776 = vmatprep.subr.mxu0 0.0
          %777 = vmatpush1.msra.mxu0 0.0
          %778 = vmatprep.mubr.f32.mxu0 0.0
          %779 = vmatmul.mubr.f32.gmra.mrb[0].mxu0 %v699
          %v780 = vpop.f32.mrb[0].mxu0
          %v781 = vadd.f32 %v680, %v780
          %v782 = vpop.f32.mrb[0].mxu0
          %783 = vmatprep.mubr.f32.mxu0 0.0
          %784 = vmatmul.mubr.f32.gmra.mrb[0].mxu0 %v702
          %v785 = vpop.f32.mrb[0].mxu0
          %v786 = vadd.f32 %v685, %v785
          %v787 = vpop.f32.mrb[0].mxu0
          %788 = vmatprep.mubr.f32.mxu0 0.0
          %789 = vmatmul.mubr.f32.gmra.mrb[0].mxu0 %v705
          %v790 = vpop.f32.mrb[0].mxu0
          %v791 = vadd.f32 %v690, %v790
          %v792 = vpop.f32.mrb[0].mxu0
          %793 = vmatprep.mubr.f32.mxu0 0.0
          %794 = vmatmul.mubr.f32.gmra.mrb[0].mxu0 %v708
          %v795 = vpop.f32.mrb[0].mxu0
          %v796 = vadd.f32 %v695, %v795
          %v797 = vpop.f32.mrb[0].mxu0
          %798 = vdwg.mxu0
          %v799 = vmax.f32 %v781, 0.0
          %v800 = vmax.f32 %v786, 0.0
          %v801 = vmax.f32 %v791, 0.0
          %v802 = vmax.f32 %v796, 0.0
          %v803 = vlaneseq
          %v804 = vshrl.u32 %v803, 7
          %v805 = vadd.s32 %v804, 8
          %v806 = vadd.s32 %v804, 16
          %v807 = vadd.s32 %v804, 24
          %v808 = vlaneseq
          %v809 = vand.u32 %v808, 127
          %vm810 = vcmp.ge.s32.totalorder %v804, 8
          %vm811 = vcmp.ge.s32.totalorder %v805, 8
          %vm812 = vcmp.ge.s32.totalorder %v806, 8
          %vm813 = vcmp.ge.s32.totalorder %v807, 8
          %v814 = vsel %vm810, 1, 0
          %v815 = vsel %vm811, 1, 0
          %v816 = vsel %vm812, 1, 0
          %v817 = vsel %vm813, 1, 0
          %vm818 = vcmp.ge.s32.totalorder %v809, 1
          %v819 = vsel %vm818, 1, 0
          %vm820 = vcmp.ge.s32.totalorder %v804, 16
          %vm821 = vcmp.ge.s32.totalorder %v805, 16
          %vm822 = vcmp.ge.s32.totalorder %v806, 16
          %vm823 = vcmp.ge.s32.totalorder %v807, 16
          %v824 = vsel %vm820, 1, 0
          %v825 = vsel %vm821, 1, 0
          %v826 = vsel %vm822, 1, 0
          %v827 = vsel %vm823, 1, 0
          %v828 = vadd.s32 %v814, %v824
          %v829 = vadd.s32 %v815, %v825
          %v830 = vadd.s32 %v816, %v826
          %v831 = vadd.s32 %v817, %v827
          %vm832 = vcmp.ge.s32.totalorder %v809, 5
          %v833 = vsel %vm832, 1, 0
          %v834 = vadd.s32 %v819, %v833
          %vm835 = vcmp.ge.s32.totalorder %v804, 24
          %vm836 = vcmp.ge.s32.totalorder %v805, 24
          %vm837 = vcmp.ge.s32.totalorder %v806, 24
          %vm838 = vcmp.ge.s32.totalorder %v807, 24
          %v839 = vsel %vm835, 1, 0
          %v840 = vsel %vm836, 1, 0
          %v841 = vsel %vm837, 1, 0
          %v842 = vsel %vm838, 1, 0
          %v843 = vadd.s32 %v828, %v839
          %v844 = vadd.s32 %v829, %v840
          %v845 = vadd.s32 %v830, %v841
          %v846 = vadd.s32 %v831, %v842
          %vm847 = vcmp.ge.s32.totalorder %v809, 14
          %v848 = vsel %vm847, 1, 0
          %v849 = vadd.s32 %v834, %v848
          %vm850 = vcmp.eq.s32.totalorder %v843, %v849
          %vm851 = vcmp.eq.s32.totalorder %v844, %v849
          %vm852 = vcmp.eq.s32.totalorder %v845, %v849
          %vm853 = vcmp.eq.s32.totalorder %v846, %v849
          %v854 = vsel %vm850, %v799, 0.0
          %v855 = vsel %vm851, %v800, 0.0
          %v856 = vsel %vm852, %v801, 0.0
          %v857 = vsel %vm853, %v802, 0.0
          %v858 = vpack.c.bf16 %v855, %v854
          %v859 = vpack.c.bf16 %v857, %v856
          %v862 = vunpack.c.l.b16 %v858
          %v863 = vunpack.c.h.b16 %v858
          %v864 = vunpack.c.l.b16 %v859
          %v865 = vunpack.c.h.b16 %v859
          %v866 = vpack.c.b16 %v862, %v862
          %v867 = vpack.c.b16 %v863, %v863
          %v868 = vpack.c.b16 %v864, %v864
          %v869 = vpack.c.b16 %v865, %v865
          %874 = vst.msk [vmem:[%s298] sm:$0xf] %vm658, %v866
          %875 = vst.msk [vmem:[%s298 + $0x4] sm:$0xf] %vm658, %v867
          %876 = vst.msk [vmem:[%s298 + $0x8] sm:$0xf] %vm658, %v868
          %877 = vst.msk [vmem:[%s298 + $0xc] sm:$0xf] %vm658, %v869
        $region60: #{_lambda_.2} parent=35 // pred_fallthru
          _
        %s878 = sand.u32 %s141, 1
        %s879 = scalar_lea.sflag [#allocation5], %s878
        %s880 = sand.u32 %s141, 1
        %s881 = smul.addr %s880, 16
        %s882 = scalar_lea.vmem [#allocation11], %s881
        // Predicated region
        $region61: #{_lambda_.2} parent=35 // pred_check
          %p883 = pneg %p151
        $region62: #{_lambda_.2} parent=35 // pred_check_branch
          %885 = sbr.rel (%p883) target = $region64
        $region63: #{_lambda_.2} parent=35 // pred_region
          %s887 = ssub.s32 256, 256
          %888 = vsyncadd %s879, %s887
          %s889 = smul.addr %s29, 4
          %s890 = smul.addr %s889, 64
          %s891 = scalar_lea.hbm %s4, %s890
          %s892 = sshll.u32 %s882, 4
          %s893 = int_to_ptr.vmem [resolvable:$true] %s892
          %898 = dma.vmem_to_hbm [thread:$0]  %s893, 256, %s891, %s879, 64, 64, 4
        $region64: #{_lambda_.2} parent=35 // pred_fallthru
          _
      $region36: #{_lambda_.2} parent=5 // pred_fallthru
        _
      %p899 = scmp.le.s32.totalorder 2, %s20
      // Predicated region
      $region65: #{_lambda_.2} parent=5 // pred_check
        %p900 = pneg %p899
      $region66: #{_lambda_.2} parent=5 // pred_check_branch
        %902 = sbr.rel (%p900) target = $region68
      $region67: #{_lambda_.2} parent=5 // pred_region
        %s903 = ssub.s32 %s20, 2
        // Predicated region
        $region69: #{_lambda_.2} parent=67 // pred_check
          %p904 = pneg %p157
        $region70: #{_lambda_.2} parent=67 // pred_check_branch
          %906 = sbr.rel (%p904) target = $region72
        $region71: #{_lambda_.2} parent=67 // pred_region
          %s907 = sand.u32 %s142, 1
          %s908 = scalar_lea.sflag [#allocation5], %s907
          %s909 = sand.u32 %s142, 1
          %s910 = smul.addr %s909, 16
          %s911 = scalar_lea.vmem [#allocation11], %s910
          %912 = dma.done %s908, 256
        $region72: #{_lambda_.2} parent=67 // pred_fallthru
          _
      $region68: #{_lambda_.2} parent=5 // pred_fallthru
        _
    $region6: #{_lambda_.2} parent=1 // loop_footer
      %s24 = sadd.s32 1, %s20
    $region7: #{_lambda_.2} parent=1 // loop_footer_branch
      %19 = sbr.rel target = $region3
    $region8: #{_lambda_.2} parent=1 // loop_exit
      _
    %913 = vsyncpa [#allocation4], 1
    %s914 = scalar_lea.sflag [#allocation4], 1
    %915 = vsyncpa %s914, 1
    %916 = vsyncpa [#allocation7], 1
    %s917 = scalar_lea.sflag [#allocation7], 1
    %918 = vsyncpa %s917, 1
    %919 = vsyncpa [#allocation10], 1
    %920 = vsyncpa [#allocation5], 1
    %s921 = scalar_lea.sflag [#allocation5], 1
    %922 = vsyncpa %s921, 1

</llo_original>
